<compile_context>
chip_gen: v7x
topology: tpu7x:2x2x1
jax: 0.10.0
libtpu: 0.0.40
codegen_flags: <defaults>
</compile_context>

<pallas_src>
import functools

import jax
import jax.numpy as jnp
from jax import lax
from jax.experimental import pallas as pl
from jax.experimental.pallas import tpu as pltpu

EPS = 1e-5


# ------------------------------ Pallas kernel ------------------------------- #

def _basic_block_kernel(xp_ref, w1_ref, s1_ref, b1_ref,
                        w2_ref, s2_ref, b2_ref,
                        *rest, stride, has_proj):
    """Fused BasicBlock forward for one image (one grid step = one batch elem).

    xp_ref : (1, H+2, W+2, Cin)  zero-padded NHWC input
    w1_ref : (9*Cin, Co)         conv1 weights, rows ordered (ky, kx, cin)
    w2_ref : (9*Co,  Co)         conv2 weights, rows ordered (ky, kx, cmid)
    s*/b*  : (1, Co)             folded BatchNorm scale / shift
    [proj] : xs (1,Ho,Wo,Cin), ws (Cin,Co), ss/bs (1,Co)
    o_ref  : (1, Ho*Wo, Co)
    """
    if has_proj:
        xs_ref, ws_ref, ss_ref, bs_ref, o_ref = rest
    else:
        (o_ref,) = rest

    _, Hp, Wp, Cin = xp_ref.shape
    H, W = Hp - 2, Wp - 2
    Ho, Wo = H // stride, W // stride
    Co = w2_ref.shape[1]

    xp = xp_ref[0].astype(jnp.float32)                       # (H+2, W+2, Cin)

    # ---- conv1: 3x3 as ONE im2col matmul (K = 9*Cin) + BN1 + ReLU ----------
    taps1 = [xp[dy:dy + H, dx:dx + W, :].reshape(H * W, Cin)
             for dy in range(3) for dx in range(3)]
    patches1 = jnp.concatenate(taps1, axis=1)                 # (H*W, 9*Cin)
    y = jnp.dot(patches1, w1_ref[...], preferred_element_type=jnp.float32)
    y = jnp.maximum(y * s1_ref[...] + b1_ref[...], 0.0)       # (H*W, Co)

    # Stride: decimate the unit-stride conv1 output (identical values at the
    # kept positions); uses only <=4-D reshapes and static indexing.
    if stride != 1:
        y = y.reshape(Ho, stride, W, Co)[:, 0, :, :]          # every s-th row
        y = y.reshape(Ho, Wo, stride, Co)[:, :, 0, :]         # every s-th col
    else:
        y = y.reshape(Ho, Wo, Co)

    # ---- zero-pad the VMEM-resident intermediate (halo for conv2) ----------
    zr = jnp.zeros((1, Wo, Co), jnp.float32)
    zc = jnp.zeros((Ho + 2, 1, Co), jnp.float32)
    ypad = jnp.concatenate([zr, y, zr], axis=0)               # (Ho+2, Wo, Co)
    ypad = jnp.concatenate([zc, ypad, zc], axis=1)            # (Ho+2, Wo+2, Co)

    # ---- conv2: 3x3 stride-1 as ONE im2col matmul (K = 9*Co) + BN2 ---------
    taps2 = [ypad[dy:dy + Ho, dx:dx + Wo, :].reshape(Ho * Wo, Co)
             for dy in range(3) for dx in range(3)]
    patches2 = jnp.concatenate(taps2, axis=1)                 # (Ho*Wo, 9*Co)
    main = jnp.dot(patches2, w2_ref[...], preferred_element_type=jnp.float32)
    main = main * s2_ref[...] + b2_ref[...]

    # ---- shortcut -----------------------------------------------------------
    if has_proj:                                              # 1x1 conv + BN
        xs = xs_ref[0].astype(jnp.float32).reshape(Ho * Wo, Cin)
        sc = jnp.dot(xs, ws_ref[...], preferred_element_type=jnp.float32)
        sc = sc * ss_ref[...] + bs_ref[...]
    else:                                                     # identity path
        sc = xp[1:1 + Ho, 1:1 + Wo, :].reshape(Ho * Wo, Co)

    out = jnp.maximum(main + sc, 0.0)                         # (Ho*Wo, Co)
    o_ref[0] = out.astype(o_ref.dtype)


# ------------------------------ wrapper (glue) ------------------------------ #

def _bn_fold(bn):
    gamma, beta, mean, var = bn
    scale = gamma / jnp.sqrt(var + EPS)
    shift = beta - mean * scale
    return (scale.reshape(1, -1).astype(jnp.float32),
            shift.reshape(1, -1).astype(jnp.float32))


def basic_block_forward(x_nchw, params, stride):
    N, Cin, H, W = x_nchw.shape
    assert H % stride == 0 and W % stride == 0
    w1 = params["w1"]                                         # (Co, Cin, 3, 3)
    Co = w1.shape[0]
    Ho, Wo = H // stride, W // stride

    x = jnp.transpose(x_nchw, (0, 2, 3, 1)).astype(jnp.float32)   # NHWC
    xp = jnp.pad(x, ((0, 0), (1, 1), (1, 1), (0, 0)))

    # Conv weights as (9*Cin, Co) with row order (ky, kx, cin) -- matches the
    # in-kernel tap concatenation order.
    w1_2d = jnp.transpose(w1, (2, 3, 1, 0)).reshape(9 * Cin, Co).astype(jnp.float32)
    w2_2d = jnp.transpose(params["w2"], (2, 3, 1, 0)).reshape(9 * Co, Co).astype(jnp.float32)
    s1, b1 = _bn_fold(params["bn1"])
    s2, b2 = _bn_fold(params["bn2"])

    has_proj = "ws" in params
    inputs = [xp, w1_2d, s1, b1, w2_2d, s2, b2]
    in_specs = [
        pl.BlockSpec((1, H + 2, W + 2, Cin), lambda n: (n, 0, 0, 0)),
        pl.BlockSpec((9 * Cin, Co), lambda n: (0, 0)),
        pl.BlockSpec((1, Co), lambda n: (0, 0)),
        pl.BlockSpec((1, Co), lambda n: (0, 0)),
        pl.BlockSpec((9 * Co, Co), lambda n: (0, 0)),
        pl.BlockSpec((1, Co), lambda n: (0, 0)),
        pl.BlockSpec((1, Co), lambda n: (0, 0)),
    ]
    if has_proj:
        xs = x[:, ::stride, ::stride, :]                      # (N, Ho, Wo, Cin)
        ws = params["ws"].reshape(Co, Cin).T.astype(jnp.float32)   # (Cin, Co)
        ss, bs = _bn_fold(params["bns"])
        inputs += [xs, ws, ss, bs]
        in_specs += [
            pl.BlockSpec((1, Ho, Wo, Cin), lambda n: (n, 0, 0, 0)),
            pl.BlockSpec((Cin, Co), lambda n: (0, 0)),
            pl.BlockSpec((1, Co), lambda n: (0, 0)),
            pl.BlockSpec((1, Co), lambda n: (0, 0)),
        ]

    kernel = functools.partial(_basic_block_kernel, stride=stride,
                               has_proj=has_proj)

    out = pl.pallas_call(
        kernel,
        out_shape=jax.ShapeDtypeStruct((N, Ho * Wo, Co), jnp.float32),
        grid=(N,),
        in_specs=in_specs,
        out_specs=pl.BlockSpec((1, Ho * Wo, Co), lambda n: (n, 0, 0)),
        compiler_params=pltpu.CompilerParams(
            dimension_semantics=("parallel",)),
    )(*inputs)

    out = out.reshape(N, Ho, Wo, Co)                          # 4-D reshape in XLA
    return jnp.transpose(out, (0, 3, 1, 2))                   # back to NCHW


# ----------------------------- pure-JAX reference --------------------------- #

def ref_basic_block(x, params, stride):
    def conv(inp, w, s, pad):
        return lax.conv_general_dilated(
            inp, w, (s, s), pad, dimension_numbers=("NCHW", "OIHW", "NCHW"))

    def bn(inp, bn_params):
        g, b, m, v = [t.reshape(1, -1, 1, 1) for t in bn_params]
        return (inp - m) / jnp.sqrt(v + EPS) * g + b

    out = jax.nn.relu(bn(conv(x, params["w1"], stride, ((1, 1), (1, 1))),
                         params["bn1"]))
    out = bn(conv(out, params["w2"], 1, ((1, 1), (1, 1))), params["bn2"])
    if "ws" in params:
        sc = bn(conv(x, params["ws"], stride, ((0, 0), (0, 0))), params["bns"])
    else:
        sc = x
    return jax.nn.relu(out + sc)


# ------------------------------- parameters --------------------------------- #

def make_params(key, in_planes, planes, stride):
    ks = jax.random.split(key, 16)

    def bn_params(k0, k1, k2, k3):
        return (jax.random.uniform(k0, (planes,), minval=0.5, maxval=1.5),
                jax.random.normal(k1, (planes,)) * 0.1,
                jax.random.normal(k2, (planes,)) * 0.1,
                jax.random.uniform(k3, (planes,), minval=0.5, maxval=1.5))

    p = {
        "w1": jax.random.normal(ks[0], (planes, in_planes, 3, 3),
                                jnp.float32) * 0.1,
        "bn1": bn_params(ks[1], ks[2], ks[3], ks[4]),
        "w2": jax.random.normal(ks[5], (planes, planes, 3, 3),
                                jnp.float32) * 0.1,
        "bn2": bn_params(ks[6], ks[7], ks[8], ks[9]),
    }
    if stride != 1 or in_planes != planes:
        p["ws"] = jax.random.normal(ks[10], (planes, in_planes, 1, 1),
                                    jnp.float32) * 0.1
        p["bns"] = bn_params(ks[11], ks[12], ks[13], ks[14])
    return p


if __name__ == "__main__":
    key = jax.random.PRNGKey(0)
    kx, kp1, kp2 = jax.random.split(key, 3)

    x = jax.random.normal(kx, (2, 4, 16, 16), jnp.float32)    # NCHW like PyTorch

    # case 1: downsampling block with projection shortcut (stride=2, 4 -> 8)
    params = make_params(kp1, 4, 8, 2)
    out = jax.block_until_ready(basic_block_forward(x, params, 2))
    ref = ref_basic_block(x, params, 2)
    assert out.shape == (2, 8, 8, 8), out.shape
    assert jnp.allclose(out, ref, atol=2e-4, rtol=1e-3), \
        float(jnp.max(jnp.abs(out - ref)))

    # case 2: identity shortcut (stride=1, 4 -> 4)
    params2 = make_params(kp2, 4, 4, 1)
    out2 = jax.block_until_ready(basic_block_forward(x, params2, 1))
    ref2 = ref_basic_block(x, params2, 1)
    assert out2.shape == (2, 4, 16, 16), out2.shape
    assert jnp.allclose(out2, ref2, atol=2e-4, rtol=1e-3), \
        float(jnp.max(jnp.abs(out2 - ref2)))

    print("KERNEL_OK")
</pallas_src>

<mosaic_0001>
module attributes {stable_mosaic.version = 11 : i64} {
  func.func @_basic_block_kernel(%arg0: i32, %arg1: memref<1x18x18x4xf32, #tpu.memory_space<vmem>>, %arg2: memref<36x8xf32, #tpu.memory_space<vmem>>, %arg3: memref<1x8xf32, #tpu.memory_space<vmem>>, %arg4: memref<1x8xf32, #tpu.memory_space<vmem>>, %arg5: memref<72x8xf32, #tpu.memory_space<vmem>>, %arg6: memref<1x8xf32, #tpu.memory_space<vmem>>, %arg7: memref<1x8xf32, #tpu.memory_space<vmem>>, %arg8: memref<1x8x8x4xf32, #tpu.memory_space<vmem>>, %arg9: memref<4x8xf32, #tpu.memory_space<vmem>>, %arg10: memref<1x8xf32, #tpu.memory_space<vmem>>, %arg11: memref<1x8xf32, #tpu.memory_space<vmem>>, %arg12: memref<1x64x8xf32, #tpu.memory_space<vmem>>) attributes {dimension_semantics = [#tpu.dimension_semantics<parallel>], iteration_bounds = array<i64: 2>, scalar_prefetch = 0 : i64, scratch_operands = 0 : i64, tpu.core_type = #tpu.core_type<tc>, window_params = [{transform_indices = @transform_0, window_bounds = array<i64: 1, 18, 18, 4>}, {pipeline_mode = #tpu.pipeline_mode<synchronous>, transform_indices = @transform_1, window_bounds = array<i64: 36, 8>}, {pipeline_mode = #tpu.pipeline_mode<synchronous>, transform_indices = @transform_2, window_bounds = array<i64: 1, 8>}, {pipeline_mode = #tpu.pipeline_mode<synchronous>, transform_indices = @transform_3, window_bounds = array<i64: 1, 8>}, {pipeline_mode = #tpu.pipeline_mode<synchronous>, transform_indices = @transform_4, window_bounds = array<i64: 72, 8>}, {pipeline_mode = #tpu.pipeline_mode<synchronous>, transform_indices = @transform_5, window_bounds = array<i64: 1, 8>}, {pipeline_mode = #tpu.pipeline_mode<synchronous>, transform_indices = @transform_6, window_bounds = array<i64: 1, 8>}, {transform_indices = @transform_7, window_bounds = array<i64: 1, 8, 8, 4>}, {pipeline_mode = #tpu.pipeline_mode<synchronous>, transform_indices = @transform_8, window_bounds = array<i64: 4, 8>}, {pipeline_mode = #tpu.pipeline_mode<synchronous>, transform_indices = @transform_9, window_bounds = array<i64: 1, 8>}, {pipeline_mode = #tpu.pipeline_mode<synchronous>, transform_indices = @transform_10, window_bounds = array<i64: 1, 8>}, {transform_indices = @transform_11, window_bounds = array<i64: 1, 64, 8>}]} {
    %c0 = arith.constant 0 : index
    %c0_0 = arith.constant 0 : index
    %c0_1 = arith.constant 0 : index
    %c0_2 = arith.constant 0 : index
    %0 = vector.load %arg1[%c0, %c0_0, %c0_1, %c0_2] : memref<1x18x18x4xf32, #tpu.memory_space<vmem>>, vector<1x18x18x4xf32>
    %1 = vector.shape_cast %0 : vector<1x18x18x4xf32> to vector<18x18x4xf32>
    %2 = vector.extract_strided_slice %1 {offsets = [0, 0, 0], sizes = [16, 16, 4], strides = [1, 1, 1]} : vector<18x18x4xf32> to vector<16x16x4xf32>
    %3 = vector.shape_cast %2 : vector<16x16x4xf32> to vector<256x4xf32>
    %4 = vector.extract_strided_slice %1 {offsets = [0, 1, 0], sizes = [16, 16, 4], strides = [1, 1, 1]} : vector<18x18x4xf32> to vector<16x16x4xf32>
    %5 = vector.shape_cast %4 : vector<16x16x4xf32> to vector<256x4xf32>
    %6 = vector.extract_strided_slice %1 {offsets = [0, 2, 0], sizes = [16, 16, 4], strides = [1, 1, 1]} : vector<18x18x4xf32> to vector<16x16x4xf32>
    %7 = vector.shape_cast %6 : vector<16x16x4xf32> to vector<256x4xf32>
    %8 = vector.extract_strided_slice %1 {offsets = [1, 0, 0], sizes = [16, 16, 4], strides = [1, 1, 1]} : vector<18x18x4xf32> to vector<16x16x4xf32>
    %9 = vector.shape_cast %8 : vector<16x16x4xf32> to vector<256x4xf32>
    %10 = vector.extract_strided_slice %1 {offsets = [1, 1, 0], sizes = [16, 16, 4], strides = [1, 1, 1]} : vector<18x18x4xf32> to vector<16x16x4xf32>
    %11 = vector.shape_cast %10 : vector<16x16x4xf32> to vector<256x4xf32>
    %12 = vector.extract_strided_slice %1 {offsets = [1, 2, 0], sizes = [16, 16, 4], strides = [1, 1, 1]} : vector<18x18x4xf32> to vector<16x16x4xf32>
    %13 = vector.shape_cast %12 : vector<16x16x4xf32> to vector<256x4xf32>
    %14 = vector.extract_strided_slice %1 {offsets = [2, 0, 0], sizes = [16, 16, 4], strides = [1, 1, 1]} : vector<18x18x4xf32> to vector<16x16x4xf32>
    %15 = vector.shape_cast %14 : vector<16x16x4xf32> to vector<256x4xf32>
    %16 = vector.extract_strided_slice %1 {offsets = [2, 1, 0], sizes = [16, 16, 4], strides = [1, 1, 1]} : vector<18x18x4xf32> to vector<16x16x4xf32>
    %17 = vector.shape_cast %16 : vector<16x16x4xf32> to vector<256x4xf32>
    %18 = vector.extract_strided_slice %1 {offsets = [2, 2, 0], sizes = [16, 16, 4], strides = [1, 1, 1]} : vector<18x18x4xf32> to vector<16x16x4xf32>
    %19 = vector.shape_cast %18 : vector<16x16x4xf32> to vector<256x4xf32>
    %20 = tpu.concatenate %3, %5, %7, %9, %11, %13, %15, %17, %19 in 1 : vector<256x4xf32>, vector<256x4xf32>, vector<256x4xf32>, vector<256x4xf32>, vector<256x4xf32>, vector<256x4xf32>, vector<256x4xf32>, vector<256x4xf32>, vector<256x4xf32> -> vector<256x36xf32>
    %c0_3 = arith.constant 0 : index
    %c0_4 = arith.constant 0 : index
    %21 = vector.load %arg2[%c0_3, %c0_4] : memref<36x8xf32, #tpu.memory_space<vmem>>, vector<36x8xf32>
    %cst = arith.constant dense<0.000000e+00> : vector<256x8xf32>
    %22 = tpu.matmul %20, %21, %cst {dimension_numbers = #tpu.dot_dimension_numbers<[1], [0], [0], [1], [0, 0, 1, 1], [], []>} : vector<256x36xf32>, vector<36x8xf32>, vector<256x8xf32> -> vector<256x8xf32>
    %c0_5 = arith.constant 0 : index
    %c0_6 = arith.constant 0 : index
    %23 = vector.load %arg3[%c0_5, %c0_6] : memref<1x8xf32, #tpu.memory_space<vmem>>, vector<1x8xf32>
    %24 = vector.broadcast %23 : vector<1x8xf32> to vector<256x8xf32>
    %25 = arith.mulf %22, %24 : vector<256x8xf32>
    %c0_7 = arith.constant 0 : index
    %c0_8 = arith.constant 0 : index
    %26 = vector.load %arg4[%c0_7, %c0_8] : memref<1x8xf32, #tpu.memory_space<vmem>>, vector<1x8xf32>
    %27 = vector.broadcast %26 : vector<1x8xf32> to vector<256x8xf32>
    %28 = arith.addf %25, %27 : vector<256x8xf32>
    %cst_9 = arith.constant 0.000000e+00 : f32
    %29 = vector.broadcast %cst_9 : f32 to vector<256x8xf32>
    %30 = arith.maximumf %28, %29 : vector<256x8xf32>
    %31 = vector.shape_cast %30 : vector<256x8xf32> to vector<8x2x16x8xf32>
    %32 = vector.extract_strided_slice %31 {offsets = [0, 0, 0, 0], sizes = [8, 1, 16, 8], strides = [1, 1, 1, 1]} : vector<8x2x16x8xf32> to vector<8x1x16x8xf32>
    %33 = vector.shape_cast %32 : vector<8x1x16x8xf32> to vector<8x16x8xf32>
    %34 = vector.shape_cast %33 : vector<8x16x8xf32> to vector<8x8x2x8xf32>
    %35 = vector.extract_strided_slice %34 {offsets = [0, 0, 0, 0], sizes = [8, 8, 1, 8], strides = [1, 1, 1, 1]} : vector<8x8x2x8xf32> to vector<8x8x1x8xf32>
    %36 = vector.shape_cast %35 : vector<8x8x1x8xf32> to vector<8x8x8xf32>
    %cst_10 = arith.constant 0.000000e+00 : f32
    %37 = vector.broadcast %cst_10 : f32 to vector<1x8x8xf32>
    %cst_11 = arith.constant 0.000000e+00 : f32
    %38 = vector.broadcast %cst_11 : f32 to vector<10x1x8xf32>
    %39 = tpu.concatenate %37, %36, %37 in 0 : vector<1x8x8xf32>, vector<8x8x8xf32>, vector<1x8x8xf32> -> vector<10x8x8xf32>
    %40 = tpu.concatenate %38, %39, %38 in 1 : vector<10x1x8xf32>, vector<10x8x8xf32>, vector<10x1x8xf32> -> vector<10x10x8xf32>
    %41 = vector.extract_strided_slice %40 {offsets = [0, 0, 0], sizes = [8, 8, 8], strides = [1, 1, 1]} : vector<10x10x8xf32> to vector<8x8x8xf32>
    %42 = vector.shape_cast %41 : vector<8x8x8xf32> to vector<64x8xf32>
    %43 = vector.extract_strided_slice %40 {offsets = [0, 1, 0], sizes = [8, 8, 8], strides = [1, 1, 1]} : vector<10x10x8xf32> to vector<8x8x8xf32>
    %44 = vector.shape_cast %43 : vector<8x8x8xf32> to vector<64x8xf32>
    %45 = vector.extract_strided_slice %40 {offsets = [0, 2, 0], sizes = [8, 8, 8], strides = [1, 1, 1]} : vector<10x10x8xf32> to vector<8x8x8xf32>
    %46 = vector.shape_cast %45 : vector<8x8x8xf32> to vector<64x8xf32>
    %47 = vector.extract_strided_slice %40 {offsets = [1, 0, 0], sizes = [8, 8, 8], strides = [1, 1, 1]} : vector<10x10x8xf32> to vector<8x8x8xf32>
    %48 = vector.shape_cast %47 : vector<8x8x8xf32> to vector<64x8xf32>
    %49 = vector.extract_strided_slice %40 {offsets = [1, 1, 0], sizes = [8, 8, 8], strides = [1, 1, 1]} : vector<10x10x8xf32> to vector<8x8x8xf32>
    %50 = vector.shape_cast %49 : vector<8x8x8xf32> to vector<64x8xf32>
    %51 = vector.extract_strided_slice %40 {offsets = [1, 2, 0], sizes = [8, 8, 8], strides = [1, 1, 1]} : vector<10x10x8xf32> to vector<8x8x8xf32>
    %52 = vector.shape_cast %51 : vector<8x8x8xf32> to vector<64x8xf32>
    %53 = vector.extract_strided_slice %40 {offsets = [2, 0, 0], sizes = [8, 8, 8], strides = [1, 1, 1]} : vector<10x10x8xf32> to vector<8x8x8xf32>
    %54 = vector.shape_cast %53 : vector<8x8x8xf32> to vector<64x8xf32>
    %55 = vector.extract_strided_slice %40 {offsets = [2, 1, 0], sizes = [8, 8, 8], strides = [1, 1, 1]} : vector<10x10x8xf32> to vector<8x8x8xf32>
    %56 = vector.shape_cast %55 : vector<8x8x8xf32> to vector<64x8xf32>
    %57 = vector.extract_strided_slice %40 {offsets = [2, 2, 0], sizes = [8, 8, 8], strides = [1, 1, 1]} : vector<10x10x8xf32> to vector<8x8x8xf32>
    %58 = vector.shape_cast %57 : vector<8x8x8xf32> to vector<64x8xf32>
    %59 = tpu.concatenate %42, %44, %46, %48, %50, %52, %54, %56, %58 in 1 : vector<64x8xf32>, vector<64x8xf32>, vector<64x8xf32>, vector<64x8xf32>, vector<64x8xf32>, vector<64x8xf32>, vector<64x8xf32>, vector<64x8xf32>, vector<64x8xf32> -> vector<64x72xf32>
    %c0_12 = arith.constant 0 : index
    %c0_13 = arith.constant 0 : index
    %60 = vector.load %arg5[%c0_12, %c0_13] : memref<72x8xf32, #tpu.memory_space<vmem>>, vector<72x8xf32>
    %cst_14 = arith.constant dense<0.000000e+00> : vector<64x8xf32>
    %61 = tpu.matmul %59, %60, %cst_14 {dimension_numbers = #tpu.dot_dimension_numbers<[1], [0], [0], [1], [0, 0, 1, 1], [], []>} : vector<64x72xf32>, vector<72x8xf32>, vector<64x8xf32> -> vector<64x8xf32>
    %c0_15 = arith.constant 0 : index
    %c0_16 = arith.constant 0 : index
    %62 = vector.load %arg6[%c0_15, %c0_16] : memref<1x8xf32, #tpu.memory_space<vmem>>, vector<1x8xf32>
    %63 = vector.broadcast %62 : vector<1x8xf32> to vector<64x8xf32>
    %64 = arith.mulf %61, %63 : vector<64x8xf32>
    %c0_17 = arith.constant 0 : index
    %c0_18 = arith.constant 0 : index
    %65 = vector.load %arg7[%c0_17, %c0_18] : memref<1x8xf32, #tpu.memory_space<vmem>>, vector<1x8xf32>
    %66 = vector.broadcast %65 : vector<1x8xf32> to vector<64x8xf32>
    %67 = arith.addf %64, %66 : vector<64x8xf32>
    %c0_19 = arith.constant 0 : index
    %c0_20 = arith.constant 0 : index
    %c0_21 = arith.constant 0 : index
    %c0_22 = arith.constant 0 : index
    %68 = vector.load %arg8[%c0_19, %c0_20, %c0_21, %c0_22] : memref<1x8x8x4xf32, #tpu.memory_space<vmem>>, vector<1x8x8x4xf32>
    %69 = vector.shape_cast %68 : vector<1x8x8x4xf32> to vector<8x8x4xf32>
    %70 = vector.shape_cast %69 : vector<8x8x4xf32> to vector<64x4xf32>
    %c0_23 = arith.constant 0 : index
    %c0_24 = arith.constant 0 : index
    %71 = vector.load %arg9[%c0_23, %c0_24] : memref<4x8xf32, #tpu.memory_space<vmem>>, vector<4x8xf32>
    %cst_25 = arith.constant dense<0.000000e+00> : vector<64x8xf32>
    %72 = tpu.matmul %70, %71, %cst_25 {dimension_numbers = #tpu.dot_dimension_numbers<[1], [0], [0], [1], [0, 0, 1, 1], [], []>} : vector<64x4xf32>, vector<4x8xf32>, vector<64x8xf32> -> vector<64x8xf32>
    %c0_26 = arith.constant 0 : index
    %c0_27 = arith.constant 0 : index
    %73 = vector.load %arg10[%c0_26, %c0_27] : memref<1x8xf32, #tpu.memory_space<vmem>>, vector<1x8xf32>
    %74 = vector.broadcast %73 : vector<1x8xf32> to vector<64x8xf32>
    %75 = arith.mulf %72, %74 : vector<64x8xf32>
    %c0_28 = arith.constant 0 : index
    %c0_29 = arith.constant 0 : index
    %76 = vector.load %arg11[%c0_28, %c0_29] : memref<1x8xf32, #tpu.memory_space<vmem>>, vector<1x8xf32>
    %77 = vector.broadcast %76 : vector<1x8xf32> to vector<64x8xf32>
    %78 = arith.addf %75, %77 : vector<64x8xf32>
    %79 = arith.addf %67, %78 : vector<64x8xf32>
    %cst_30 = arith.constant 0.000000e+00 : f32
    %80 = vector.broadcast %cst_30 : f32 to vector<64x8xf32>
    %81 = arith.maximumf %79, %80 : vector<64x8xf32>
    %c0_31 = arith.constant 0 : index
    %c0_32 = arith.constant 0 : index
    %c0_33 = arith.constant 0 : index
    %82 = vector.load %arg12[%c0_31, %c0_32, %c0_33] : memref<1x64x8xf32, #tpu.memory_space<vmem>>, vector<1x64x8xf32>
    %83 = vector.shape_cast %82 : vector<1x64x8xf32> to vector<64x8xf32>
    %84 = vector.shape_cast %81 : vector<64x8xf32> to vector<1x64x8xf32>
    tpu.vector_store %arg12[%c0_31, %c0_32, %c0_33], %84 {strides = array<i32>} : memref<1x64x8xf32, #tpu.memory_space<vmem>>, vector<1x64x8xf32>,
    return
  }
  func.func @transform_0(%arg0: i32) -> (i32, i32, i32, i32) {
    %c0_i32 = arith.constant 0 : i32
    %c0_i32_0 = arith.constant 0 : i32
    %c0_i32_1 = arith.constant 0 : i32
    %c0_i32_2 = arith.constant 0 : i32
    return %arg0, %c0_i32, %c0_i32_0, %c0_i32_1 : i32, i32, i32, i32
  }
  func.func @transform_1(%arg0: i32) -> (i32, i32) {
    %c0_i32 = arith.constant 0 : i32
    %c0_i32_0 = arith.constant 0 : i32
    %c0_i32_1 = arith.constant 0 : i32
    return %c0_i32, %c0_i32_0 : i32, i32
  }
  func.func @transform_2(%arg0: i32) -> (i32, i32) {
    %c0_i32 = arith.constant 0 : i32
    %c0_i32_0 = arith.constant 0 : i32
    %c0_i32_1 = arith.constant 0 : i32
    return %c0_i32, %c0_i32_0 : i32, i32
  }
  func.func @transform_3(%arg0: i32) -> (i32, i32) {
    %c0_i32 = arith.constant 0 : i32
    %c0_i32_0 = arith.constant 0 : i32
    %c0_i32_1 = arith.constant 0 : i32
    return %c0_i32, %c0_i32_0 : i32, i32
  }
  func.func @transform_4(%arg0: i32) -> (i32, i32) {
    %c0_i32 = arith.constant 0 : i32
    %c0_i32_0 = arith.constant 0 : i32
    %c0_i32_1 = arith.constant 0 : i32
    return %c0_i32, %c0_i32_0 : i32, i32
  }
  func.func @transform_5(%arg0: i32) -> (i32, i32) {
    %c0_i32 = arith.constant 0 : i32
    %c0_i32_0 = arith.constant 0 : i32
    %c0_i32_1 = arith.constant 0 : i32
    return %c0_i32, %c0_i32_0 : i32, i32
  }
  func.func @transform_6(%arg0: i32) -> (i32, i32) {
    %c0_i32 = arith.constant 0 : i32
    %c0_i32_0 = arith.constant 0 : i32
    %c0_i32_1 = arith.constant 0 : i32
    return %c0_i32, %c0_i32_0 : i32, i32
  }
  func.func @transform_7(%arg0: i32) -> (i32, i32, i32, i32) {
    %c0_i32 = arith.constant 0 : i32
    %c0_i32_0 = arith.constant 0 : i32
    %c0_i32_1 = arith.constant 0 : i32
    %c0_i32_2 = arith.constant 0 : i32
    return %arg0, %c0_i32, %c0_i32_0, %c0_i32_1 : i32, i32, i32, i32
  }
  func.func @transform_8(%arg0: i32) -> (i32, i32) {
    %c0_i32 = arith.constant 0 : i32
    %c0_i32_0 = arith.constant 0 : i32
    %c0_i32_1 = arith.constant 0 : i32
    return %c0_i32, %c0_i32_0 : i32, i32
  }
  func.func @transform_9(%arg0: i32) -> (i32, i32) {
    %c0_i32 = arith.constant 0 : i32
    %c0_i32_0 = arith.constant 0 : i32
    %c0_i32_1 = arith.constant 0 : i32
    return %c0_i32, %c0_i32_0 : i32, i32
  }
  func.func @transform_10(%arg0: i32) -> (i32, i32) {
    %c0_i32 = arith.constant 0 : i32
    %c0_i32_0 = arith.constant 0 : i32
    %c0_i32_1 = arith.constant 0 : i32
    return %c0_i32, %c0_i32_0 : i32, i32
  }
  func.func @transform_11(%arg0: i32) -> (i32, i32, i32) {
    %c0_i32 = arith.constant 0 : i32
    %c0_i32_0 = arith.constant 0 : i32
    %c0_i32_1 = arith.constant 0 : i32
    return %arg0, %c0_i32, %c0_i32_0 : i32, i32, i32
  }
}

</mosaic_0001>

<llo_original>
// kernel: tpu_custom_call.1
$region0: #{tpu_custom_call.1}
  #allocation0 [shape = 'u32[]', space=smem, size = 0x4, offset = 0x4, fixed_abs, tag = 'smem constant byte address 0x4 - core index']
  #allocation1 [shape = 'u32[144,128]{1,0:T(1,128)}', space=vmem, size = 0x12000, scoped, tag = 'internal scratch']
  %s0 = inlined_call_operand.vmem [shape: f32[2,18,18,4], index: 0, kind: input, shape index: {}]
  %s1 = inlined_call_operand.vmem [shape: f32[36,8], index: 1, kind: input, shape index: {}]
  %s2 = inlined_call_operand.vmem [shape: f32[1,8], index: 2, kind: input, shape index: {}]
  %s3 = inlined_call_operand.vmem [shape: f32[1,8], index: 3, kind: input, shape index: {}]
  %s4 = inlined_call_operand.vmem [shape: f32[72,8], index: 4, kind: input, shape index: {}]
  %s5 = inlined_call_operand.vmem [shape: f32[1,8], index: 5, kind: input, shape index: {}]
  %s6 = inlined_call_operand.vmem [shape: f32[1,8], index: 6, kind: input, shape index: {}]
  %s7 = inlined_call_operand.vmem [shape: f32[2,8,8,4], index: 7, kind: input, shape index: {}]
  %s8 = inlined_call_operand.vmem [shape: f32[4,8], index: 8, kind: input, shape index: {}]
  %s9 = inlined_call_operand.vmem [shape: f32[1,8], index: 9, kind: input, shape index: {}]
  %s10 = inlined_call_operand.vmem [shape: f32[1,8], index: 10, kind: input, shape index: {}]
  %s11 = inlined_call_operand.vmem [shape: f32[2,64,8], index: 11, kind: output, shape index: {}]
  %s12 = sld [smem:[#allocation0]]
  $region77: #{tpu_custom_call.1} parent=0
    _
  %s14 = ssub.s32 1, %s12
  %s15 = scalar_select 0, %s14, %s12
  loop: start=0, step=1, limit=4
  $region2: #{tpu_custom_call.1} parent=0 // loop_pre_header
    _
  $region3: #{tpu_custom_call.1} parent=0 // loop_header
    %s17 = sphi 0, %s21
    %p18 = scmp.ge.s32.totalorder %s17, 4
    %s27 = sphi 0, %s29
    %s30 = sphi 0, %s27
    %s31 = sphi 0, %s30
    %s47 = sphi 0, %s31
    %s51 = sphi 0, %s51
    %s53 = sphi 0, %s51
    %s54 = sphi 0, %s53
    %s68 = sphi 0, %s54
    %s72 = sphi 0, %s72
    %s74 = sphi 0, %s72
    %s75 = sphi 0, %s74
    %s89 = sphi 0, %s75
    %s93 = sphi 0, %s93
    %s95 = sphi 0, %s93
    %s96 = sphi 0, %s95
    %s110 = sphi 0, %s96
    %s114 = sphi 0, %s114
    %s116 = sphi 0, %s114
    %s117 = sphi 0, %s116
    %s131 = sphi 0, %s117
    %s135 = sphi 0, %s135
    %s137 = sphi 0, %s135
    %s138 = sphi 0, %s137
    %s152 = sphi 0, %s138
    %s156 = sphi 0, %s156
    %s158 = sphi 0, %s156
    %s159 = sphi 0, %s158
    %s173 = sphi 0, %s159
    %s179 = sphi 0, %s181
    %s182 = sphi 0, %s179
    %s183 = sphi 0, %s182
    %s199 = sphi 0, %s183
    %s203 = sphi 0, %s203
    %s205 = sphi 0, %s203
    %s206 = sphi 0, %s205
    %s220 = sphi 0, %s206
    %s224 = sphi 0, %s224
    %s226 = sphi 0, %s224
    %s227 = sphi 0, %s226
    %s241 = sphi 0, %s227
    %s245 = sphi 0, %s245
    %s247 = sphi 0, %s245
    %s248 = sphi 0, %s247
    %s262 = sphi 0, %s248
    %s268 = sphi 0, %s270
    %s271 = sphi 0, %s268
    %s272 = sphi 0, %s271
    %s288 = sphi 0, %s272
  $region4: #{tpu_custom_call.1} parent=0 // loop_header_branch
    %20 = sbr.rel (%p18) target = $region8
  $region5: #{tpu_custom_call.1} parent=0 // loop_body
    %s22 = ssub.s32 %s17, 1
    %s23 = ssub.s32 %s17, 2
    %s24 = sadd.s32 %s17, 1
    %s25 = ssub.s32 %s17, %s24
    %p26 = scmp.eq.s32.totalorder %s25, 0
    %s28 = sadd.s32 %s27, 1
    %s29 = scalar_select %p26, %s27, %s28
    %p32 = pneg %p26
    %p33 = scmp.eq.s32.totalorder %s17, 1
    %p34 = por %p32, %p33
    %p35 = scmp.ne.s32.totalorder %s27, %s30
    %p36 = scmp.eq.s32.totalorder %s17, 0
    %p37 = por %p35, %p36
    %p38 = scmp.ne.s32.totalorder %s27, %s30
    %p39 = scmp.eq.s32.totalorder %s22, 1
    %p40 = por %p38, %p39
    %p41 = scmp.ne.s32.totalorder %s30, %s31
    %p42 = scmp.eq.s32.totalorder %s22, 0
    %p43 = por %p41, %p42
    %p44 = scmp.ne.s32.totalorder %s30, %s31
    %p45 = scmp.eq.s32.totalorder %s23, 1
    %p46 = por %p44, %p45
    %p48 = scmp.ne.s32.totalorder %s31, %s47
    %p49 = scmp.eq.s32.totalorder %s23, 0
    %p50 = por %p48, %p49
    %s52 = sadd.s32 %s51, 1
    %p55 = scmp.eq.s32.totalorder %s17, 1
    %p56 = scmp.ne.s32.totalorder %s51, %s53
    %p57 = scmp.eq.s32.totalorder %s17, 0
    %p58 = por %p56, %p57
    %p59 = scmp.ne.s32.totalorder %s51, %s53
    %p60 = scmp.eq.s32.totalorder %s22, 1
    %p61 = por %p59, %p60
    %p62 = scmp.ne.s32.totalorder %s53, %s54
    %p63 = scmp.eq.s32.totalorder %s22, 0
    %p64 = por %p62, %p63
    %p65 = scmp.ne.s32.totalorder %s53, %s54
    %p66 = scmp.eq.s32.totalorder %s23, 1
    %p67 = por %p65, %p66
    %p69 = scmp.ne.s32.totalorder %s54, %s68
    %p70 = scmp.eq.s32.totalorder %s23, 0
    %p71 = por %p69, %p70
    %s73 = sadd.s32 %s72, 1
    %p76 = scmp.eq.s32.totalorder %s17, 1
    %p77 = scmp.ne.s32.totalorder %s72, %s74
    %p78 = scmp.eq.s32.totalorder %s17, 0
    %p79 = por %p77, %p78
    %p80 = scmp.ne.s32.totalorder %s72, %s74
    %p81 = scmp.eq.s32.totalorder %s22, 1
    %p82 = por %p80, %p81
    %p83 = scmp.ne.s32.totalorder %s74, %s75
    %p84 = scmp.eq.s32.totalorder %s22, 0
    %p85 = por %p83, %p84
    %p86 = scmp.ne.s32.totalorder %s74, %s75
    %p87 = scmp.eq.s32.totalorder %s23, 1
    %p88 = por %p86, %p87
    %p90 = scmp.ne.s32.totalorder %s75, %s89
    %p91 = scmp.eq.s32.totalorder %s23, 0
    %p92 = por %p90, %p91
    %s94 = sadd.s32 %s93, 1
    %p97 = scmp.eq.s32.totalorder %s17, 1
    %p98 = scmp.ne.s32.totalorder %s93, %s95
    %p99 = scmp.eq.s32.totalorder %s17, 0
    %p100 = por %p98, %p99
    %p101 = scmp.ne.s32.totalorder %s93, %s95
    %p102 = scmp.eq.s32.totalorder %s22, 1
    %p103 = por %p101, %p102
    %p104 = scmp.ne.s32.totalorder %s95, %s96
    %p105 = scmp.eq.s32.totalorder %s22, 0
    %p106 = por %p104, %p105
    %p107 = scmp.ne.s32.totalorder %s95, %s96
    %p108 = scmp.eq.s32.totalorder %s23, 1
    %p109 = por %p107, %p108
    %p111 = scmp.ne.s32.totalorder %s96, %s110
    %p112 = scmp.eq.s32.totalorder %s23, 0
    %p113 = por %p111, %p112
    %s115 = sadd.s32 %s114, 1
    %p118 = scmp.eq.s32.totalorder %s17, 1
    %p119 = scmp.ne.s32.totalorder %s114, %s116
    %p120 = scmp.eq.s32.totalorder %s17, 0
    %p121 = por %p119, %p120
    %p122 = scmp.ne.s32.totalorder %s114, %s116
    %p123 = scmp.eq.s32.totalorder %s22, 1
    %p124 = por %p122, %p123
    %p125 = scmp.ne.s32.totalorder %s116, %s117
    %p126 = scmp.eq.s32.totalorder %s22, 0
    %p127 = por %p125, %p126
    %p128 = scmp.ne.s32.totalorder %s116, %s117
    %p129 = scmp.eq.s32.totalorder %s23, 1
    %p130 = por %p128, %p129
    %p132 = scmp.ne.s32.totalorder %s117, %s131
    %p133 = scmp.eq.s32.totalorder %s23, 0
    %p134 = por %p132, %p133
    %s136 = sadd.s32 %s135, 1
    %p139 = scmp.eq.s32.totalorder %s17, 1
    %p140 = scmp.ne.s32.totalorder %s135, %s137
    %p141 = scmp.eq.s32.totalorder %s17, 0
    %p142 = por %p140, %p141
    %p143 = scmp.ne.s32.totalorder %s135, %s137
    %p144 = scmp.eq.s32.totalorder %s22, 1
    %p145 = por %p143, %p144
    %p146 = scmp.ne.s32.totalorder %s137, %s138
    %p147 = scmp.eq.s32.totalorder %s22, 0
    %p148 = por %p146, %p147
    %p149 = scmp.ne.s32.totalorder %s137, %s138
    %p150 = scmp.eq.s32.totalorder %s23, 1
    %p151 = por %p149, %p150
    %p153 = scmp.ne.s32.totalorder %s138, %s152
    %p154 = scmp.eq.s32.totalorder %s23, 0
    %p155 = por %p153, %p154
    %s157 = sadd.s32 %s156, 1
    %p160 = scmp.eq.s32.totalorder %s17, 1
    %p161 = scmp.ne.s32.totalorder %s156, %s158
    %p162 = scmp.eq.s32.totalorder %s17, 0
    %p163 = por %p161, %p162
    %p164 = scmp.ne.s32.totalorder %s156, %s158
    %p165 = scmp.eq.s32.totalorder %s22, 1
    %p166 = por %p164, %p165
    %p167 = scmp.ne.s32.totalorder %s158, %s159
    %p168 = scmp.eq.s32.totalorder %s22, 0
    %p169 = por %p167, %p168
    %p170 = scmp.ne.s32.totalorder %s158, %s159
    %p171 = scmp.eq.s32.totalorder %s23, 1
    %p172 = por %p170, %p171
    %p174 = scmp.ne.s32.totalorder %s159, %s173
    %p175 = scmp.eq.s32.totalorder %s23, 0
    %p176 = por %p174, %p175
    %s177 = ssub.s32 %s17, %s24
    %p178 = scmp.eq.s32.totalorder %s177, 0
    %s180 = sadd.s32 %s179, 1
    %s181 = scalar_select %p178, %s179, %s180
    %p184 = pneg %p178
    %p185 = scmp.eq.s32.totalorder %s17, 1
    %p186 = por %p184, %p185
    %p187 = scmp.ne.s32.totalorder %s179, %s182
    %p188 = scmp.eq.s32.totalorder %s17, 0
    %p189 = por %p187, %p188
    %p190 = scmp.ne.s32.totalorder %s179, %s182
    %p191 = scmp.eq.s32.totalorder %s22, 1
    %p192 = por %p190, %p191
    %p193 = scmp.ne.s32.totalorder %s182, %s183
    %p194 = scmp.eq.s32.totalorder %s22, 0
    %p195 = por %p193, %p194
    %p196 = scmp.ne.s32.totalorder %s182, %s183
    %p197 = scmp.eq.s32.totalorder %s23, 1
    %p198 = por %p196, %p197
    %p200 = scmp.ne.s32.totalorder %s183, %s199
    %p201 = scmp.eq.s32.totalorder %s23, 0
    %p202 = por %p200, %p201
    %s204 = sadd.s32 %s203, 1
    %p207 = scmp.eq.s32.totalorder %s17, 1
    %p208 = scmp.ne.s32.totalorder %s203, %s205
    %p209 = scmp.eq.s32.totalorder %s17, 0
    %p210 = por %p208, %p209
    %p211 = scmp.ne.s32.totalorder %s203, %s205
    %p212 = scmp.eq.s32.totalorder %s22, 1
    %p213 = por %p211, %p212
    %p214 = scmp.ne.s32.totalorder %s205, %s206
    %p215 = scmp.eq.s32.totalorder %s22, 0
    %p216 = por %p214, %p215
    %p217 = scmp.ne.s32.totalorder %s205, %s206
    %p218 = scmp.eq.s32.totalorder %s23, 1
    %p219 = por %p217, %p218
    %p221 = scmp.ne.s32.totalorder %s206, %s220
    %p222 = scmp.eq.s32.totalorder %s23, 0
    %p223 = por %p221, %p222
    %s225 = sadd.s32 %s224, 1
    %p228 = scmp.eq.s32.totalorder %s17, 1
    %p229 = scmp.ne.s32.totalorder %s224, %s226
    %p230 = scmp.eq.s32.totalorder %s17, 0
    %p231 = por %p229, %p230
    %p232 = scmp.ne.s32.totalorder %s224, %s226
    %p233 = scmp.eq.s32.totalorder %s22, 1
    %p234 = por %p232, %p233
    %p235 = scmp.ne.s32.totalorder %s226, %s227
    %p236 = scmp.eq.s32.totalorder %s22, 0
    %p237 = por %p235, %p236
    %p238 = scmp.ne.s32.totalorder %s226, %s227
    %p239 = scmp.eq.s32.totalorder %s23, 1
    %p240 = por %p238, %p239
    %p242 = scmp.ne.s32.totalorder %s227, %s241
    %p243 = scmp.eq.s32.totalorder %s23, 0
    %p244 = por %p242, %p243
    %s246 = sadd.s32 %s245, 1
    %p249 = scmp.eq.s32.totalorder %s17, 1
    %p250 = scmp.ne.s32.totalorder %s245, %s247
    %p251 = scmp.eq.s32.totalorder %s17, 0
    %p252 = por %p250, %p251
    %p253 = scmp.ne.s32.totalorder %s245, %s247
    %p254 = scmp.eq.s32.totalorder %s22, 1
    %p255 = por %p253, %p254
    %p256 = scmp.ne.s32.totalorder %s247, %s248
    %p257 = scmp.eq.s32.totalorder %s22, 0
    %p258 = por %p256, %p257
    %p259 = scmp.ne.s32.totalorder %s247, %s248
    %p260 = scmp.eq.s32.totalorder %s23, 1
    %p261 = por %p259, %p260
    %p263 = scmp.ne.s32.totalorder %s248, %s262
    %p264 = scmp.eq.s32.totalorder %s23, 0
    %p265 = por %p263, %p264
    %s266 = ssub.s32 %s17, %s24
    %p267 = scmp.eq.s32.totalorder %s266, 0
    %s269 = sadd.s32 %s268, 1
    %s270 = scalar_select %p267, %s268, %s269
    %p273 = pneg %p267
    %p274 = scmp.eq.s32.totalorder %s17, 1
    %p275 = por %p273, %p274
    %p276 = scmp.ne.s32.totalorder %s268, %s271
    %p277 = scmp.eq.s32.totalorder %s17, 0
    %p278 = por %p276, %p277
    %p279 = scmp.ne.s32.totalorder %s268, %s271
    %p280 = scmp.eq.s32.totalorder %s22, 1
    %p281 = por %p279, %p280
    %p282 = scmp.ne.s32.totalorder %s271, %s272
    %p283 = scmp.eq.s32.totalorder %s22, 0
    %p284 = por %p282, %p283
    %p285 = scmp.ne.s32.totalorder %s271, %s272
    %p286 = scmp.eq.s32.totalorder %s23, 1
    %p287 = por %p285, %p286
    %p289 = scmp.ne.s32.totalorder %s272, %s288
    %p290 = scmp.eq.s32.totalorder %s23, 0
    %p291 = por %p289, %p290
    %p292 = scmp.le.s32.totalorder 1, %s17
    %p293 = scmp.lt.s32.totalorder %s17, 3
    %p294 = pnand %p292, %p293
    %p295 = pneg %p294
    // Predicated region
    $region9: #{tpu_custom_call.1} parent=5 // pred_check
      _
    $region10: #{tpu_custom_call.1} parent=5 // pred_check_branch
      %297 = sbr.rel (%p294) target = $region12
    $region11: #{tpu_custom_call.1} parent=5 // pred_region
      %s298 = ssub.s32 %s17, 1
      // Predicated region
      $region13: #{tpu_custom_call.1} parent=11 // pred_check
        %p299 = pneg %p64
      $region14: #{tpu_custom_call.1} parent=11 // pred_check_branch
        %301 = sbr.rel (%p299) target = $region16
      $region15: #{tpu_custom_call.1} parent=11 // pred_region
        _
      $region16: #{tpu_custom_call.1} parent=11 // pred_fallthru
        _
      // Predicated region
      $region17: #{tpu_custom_call.1} parent=11 // pred_check
        %p302 = pneg %p85
      $region18: #{tpu_custom_call.1} parent=11 // pred_check_branch
        %304 = sbr.rel (%p302) target = $region20
      $region19: #{tpu_custom_call.1} parent=11 // pred_region
        _
      $region20: #{tpu_custom_call.1} parent=11 // pred_fallthru
        _
      // Predicated region
      $region21: #{tpu_custom_call.1} parent=11 // pred_check
        %p305 = pneg %p106
      $region22: #{tpu_custom_call.1} parent=11 // pred_check_branch
        %307 = sbr.rel (%p305) target = $region24
      $region23: #{tpu_custom_call.1} parent=11 // pred_region
        _
      $region24: #{tpu_custom_call.1} parent=11 // pred_fallthru
        _
      // Predicated region
      $region25: #{tpu_custom_call.1} parent=11 // pred_check
        %p308 = pneg %p127
      $region26: #{tpu_custom_call.1} parent=11 // pred_check_branch
        %310 = sbr.rel (%p308) target = $region28
      $region27: #{tpu_custom_call.1} parent=11 // pred_region
        _
      $region28: #{tpu_custom_call.1} parent=11 // pred_fallthru
        _
      // Predicated region
      $region29: #{tpu_custom_call.1} parent=11 // pred_check
        %p311 = pneg %p148
      $region30: #{tpu_custom_call.1} parent=11 // pred_check_branch
        %313 = sbr.rel (%p311) target = $region32
      $region31: #{tpu_custom_call.1} parent=11 // pred_region
        _
      $region32: #{tpu_custom_call.1} parent=11 // pred_fallthru
        _
      // Predicated region
      $region33: #{tpu_custom_call.1} parent=11 // pred_check
        %p314 = pneg %p169
      $region34: #{tpu_custom_call.1} parent=11 // pred_check_branch
        %316 = sbr.rel (%p314) target = $region36
      $region35: #{tpu_custom_call.1} parent=11 // pred_region
        _
      $region36: #{tpu_custom_call.1} parent=11 // pred_fallthru
        _
      // Predicated region
      $region37: #{tpu_custom_call.1} parent=11 // pred_check
        %p317 = pneg %p216
      $region38: #{tpu_custom_call.1} parent=11 // pred_check_branch
        %319 = sbr.rel (%p317) target = $region40
      $region39: #{tpu_custom_call.1} parent=11 // pred_region
        _
      $region40: #{tpu_custom_call.1} parent=11 // pred_fallthru
        _
      // Predicated region
      $region41: #{tpu_custom_call.1} parent=11 // pred_check
        %p320 = pneg %p237
      $region42: #{tpu_custom_call.1} parent=11 // pred_check_branch
        %322 = sbr.rel (%p320) target = $region44
      $region43: #{tpu_custom_call.1} parent=11 // pred_region
        _
      $region44: #{tpu_custom_call.1} parent=11 // pred_fallthru
        _
      // Predicated region
      $region45: #{tpu_custom_call.1} parent=11 // pred_check
        %p323 = pneg %p258
      $region46: #{tpu_custom_call.1} parent=11 // pred_check_branch
        %325 = sbr.rel (%p323) target = $region48
      $region47: #{tpu_custom_call.1} parent=11 // pred_region
        _
      $region48: #{tpu_custom_call.1} parent=11 // pred_fallthru
        _
    $region12: #{tpu_custom_call.1} parent=5 // pred_fallthru
      _
    %p326 = scmp.lt.s32.totalorder %s17, 2
    // Predicated region
    $region49: #{tpu_custom_call.1} parent=5 // pred_check
      %p327 = pneg %p326
    $region50: #{tpu_custom_call.1} parent=5 // pred_check_branch
      %329 = sbr.rel (%p327) target = $region52
    $region51: #{tpu_custom_call.1} parent=5 // pred_region
      // Predicated region
      $region53: #{tpu_custom_call.1} parent=51 // pred_check
        %p330 = pneg %p37
      $region54: #{tpu_custom_call.1} parent=51 // pred_check_branch
        %332 = sbr.rel (%p330) target = $region56
      $region55: #{tpu_custom_call.1} parent=51 // pred_region
        %p333 = scmp.lt.s32.totalorder %s17, 1
        %s334 = scalar_select %p333, %s17, 1
        %s335 = smul.addr %s334, 54
        %s336 = smul.addr %s335, 8
        %s337 = scalar_lea.vmem %s0, %s336
      $region56: #{tpu_custom_call.1} parent=51 // pred_fallthru
        _
      // Predicated region
      $region57: #{tpu_custom_call.1} parent=51 // pred_check
        %p338 = pneg %p189
      $region58: #{tpu_custom_call.1} parent=51 // pred_check_branch
        %340 = sbr.rel (%p338) target = $region60
      $region59: #{tpu_custom_call.1} parent=51 // pred_region
        %p341 = scmp.lt.s32.totalorder %s17, 1
        %s342 = scalar_select %p341, %s17, 1
        %s343 = smul.addr %s342, 8
        %s344 = smul.addr %s343, 8
        %s345 = scalar_lea.vmem %s7, %s344
      $region60: #{tpu_custom_call.1} parent=51 // pred_fallthru
        _
    $region52: #{tpu_custom_call.1} parent=5 // pred_fallthru
      _
    %p346 = scmp.le.s32.totalorder 1, %s17
    %p347 = scmp.lt.s32.totalorder %s17, 3
    %p348 = pnand %p346, %p347
    %p349 = pneg %p348
    // Predicated region
    $region61: #{tpu_custom_call.1} parent=5 // pred_check
      _
    $region62: #{tpu_custom_call.1} parent=5 // pred_check_branch
      %351 = sbr.rel (%p348) target = $region64
    $region63: #{tpu_custom_call.1} parent=5 // pred_region
      %s352 = ssub.s32 %s17, 1
      %p353 = scmp.lt.s32.totalorder %s22, 1
      %s354 = scalar_select %p353, %s22, 1
      %s355 = smul.addr %s354, 54
      %s356 = smul.addr %s355, 8
      %s357 = scalar_lea.vmem %s0, %s356
      %p358 = pneg %p43
      %p359 = pneg %p40
      %p360 = pneg %p64
      %p361 = pneg %p61
      %p362 = pneg %p85
      %p363 = pneg %p82
      %p364 = pneg %p106
      %p365 = pneg %p103
      %p366 = pneg %p127
      %p367 = pneg %p124
      %p368 = pneg %p148
      %p369 = pneg %p145
      %p370 = pneg %p169
      %p371 = pneg %p166
      %p372 = scmp.lt.s32.totalorder %s22, 1
      %s373 = scalar_select %p372, %s22, 1
      %s374 = smul.addr %s373, 8
      %s375 = smul.addr %s374, 8
      %s376 = scalar_lea.vmem %s7, %s375
      %p377 = pneg %p195
      %p378 = pneg %p192
      %p379 = pneg %p216
      %p380 = pneg %p213
      %p381 = pneg %p237
      %p382 = pneg %p234
      %p383 = pneg %p258
      %p384 = pneg %p255
      %p385 = pneg %p284
      %p386 = pneg %p281
      %p387 = scmp.lt.s32.totalorder %s22, 1
      %s388 = scalar_select %p387, %s22, 1
      %s389 = smul.addr %s388, 8
      %s390 = smul.addr %s389, 8
      %s391 = scalar_lea.vmem %s11, %s390
      %p392 = scmp.lt.s32.totalorder %s22, 1
      %s393 = scalar_select %p392, %s22, 1
      %s394 = smul.addr %s393, 54
      %s395 = smul.addr %s394, 8
      %s396 = scalar_lea.vmem %s0, %s395
      %p397 = scmp.lt.s32.totalorder %s22, 1
      %s398 = scalar_select %p397, %s22, 1
      %s399 = smul.addr %s398, 8
      %s400 = smul.addr %s399, 8
      %s401 = scalar_lea.vmem %s7, %s400
      %p402 = scmp.lt.s32.totalorder %s22, 1
      %s403 = scalar_select %p402, %s22, 1
      %s404 = smul.addr %s403, 8
      %s405 = smul.addr %s404, 8
      %s406 = scalar_lea.vmem %s11, %s405
      %v407 = vld [vmem:[%s396] sm:$0xff]
      %v408 = vld [vmem:[%s396 + $0x8] sm:$0xff]
      %v409 = vld [vmem:[%s396 + $0x10] sm:$0x3]
      %v410 = vld [vmem:[%s396 + $0x18] sm:$0xff]
      %v411 = vld [vmem:[%s396 + $0x20] sm:$0xff]
      %v412 = vld [vmem:[%s396 + $0x28] sm:$0x3]
      %v413 = vld [vmem:[%s396 + $0x30] sm:$0xff]
      %v414 = vld [vmem:[%s396 + $0x38] sm:$0xff]
      %v415 = vld [vmem:[%s396 + $0x40] sm:$0x3]
      %v416 = vld [vmem:[%s396 + $0x48] sm:$0xff]
      %v417 = vld [vmem:[%s396 + $0x50] sm:$0xff]
      %v418 = vld [vmem:[%s396 + $0x58] sm:$0x3]
      %v419 = vld [vmem:[%s396 + $0x60] sm:$0xff]
      %v420 = vld [vmem:[%s396 + $0x68] sm:$0xff]
      %v421 = vld [vmem:[%s396 + $0x70] sm:$0x3]
      %v422 = vld [vmem:[%s396 + $0x78] sm:$0xff]
      %v423 = vld [vmem:[%s396 + $0x80] sm:$0xff]
      %v424 = vld [vmem:[%s396 + $0x88] sm:$0x3]
      %v425 = vld [vmem:[%s396 + $0x90] sm:$0xff]
      %v426 = vld [vmem:[%s396 + $0x98] sm:$0xff]
      %v427 = vld [vmem:[%s396 + $0xa0] sm:$0x3]
      %v428 = vld [vmem:[%s396 + $0xa8] sm:$0xff]
      %v429 = vld [vmem:[%s396 + $0xb0] sm:$0xff]
      %v430 = vld [vmem:[%s396 + $0xb8] sm:$0x3]
      %v431 = vld [vmem:[%s396 + $0xc0] sm:$0xff]
      %v432 = vld [vmem:[%s396 + $0xc8] sm:$0xff]
      %v433 = vld [vmem:[%s396 + $0xd0] sm:$0x3]
      %v434 = vld [vmem:[%s396 + $0xd8] sm:$0xff]
      %v435 = vld [vmem:[%s396 + $0xe0] sm:$0xff]
      %v436 = vld [vmem:[%s396 + $0xe8] sm:$0x3]
      %v437 = vld [vmem:[%s396 + $0xf0] sm:$0xff]
      %v438 = vld [vmem:[%s396 + $0xf8] sm:$0xff]
      %v439 = vld [vmem:[%s396 + $0x100] sm:$0x3]
      %v440 = vld [vmem:[%s396 + $0x108] sm:$0xff]
      %v441 = vld [vmem:[%s396 + $0x110] sm:$0xff]
      %v442 = vld [vmem:[%s396 + $0x118] sm:$0x3]
      %v443 = vld [vmem:[%s396 + $0x120] sm:$0xff]
      %v444 = vld [vmem:[%s396 + $0x128] sm:$0xff]
      %v445 = vld [vmem:[%s396 + $0x130] sm:$0x3]
      %v446 = vld [vmem:[%s396 + $0x138] sm:$0xff]
      %v447 = vld [vmem:[%s396 + $0x140] sm:$0xff]
      %v448 = vld [vmem:[%s396 + $0x148] sm:$0x3]
      %v449 = vld [vmem:[%s396 + $0x150] sm:$0xff]
      %v450 = vld [vmem:[%s396 + $0x158] sm:$0xff]
      %v451 = vld [vmem:[%s396 + $0x160] sm:$0x3]
      %v452 = vld [vmem:[%s396 + $0x168] sm:$0xff]
      %v453 = vld [vmem:[%s396 + $0x170] sm:$0xff]
      %v454 = vld [vmem:[%s396 + $0x178] sm:$0x3]
      %v455 = vld [vmem:[%s396 + $0x180] sm:$0xff]
      %v456 = vld [vmem:[%s396 + $0x188] sm:$0xff]
      %v457 = vld [vmem:[%s396 + $0x190] sm:$0x3]
      %v458 = vld [vmem:[%s396 + $0x198] sm:$0xff]
      %v459 = vld [vmem:[%s396 + $0x1a0] sm:$0xff]
      %v460 = vld [vmem:[%s396 + $0x1a8] sm:$0x3]
      %vm509 = vcmask 1046528
      %v510 = vrot.slane %v407, 1
      %v511 = vrot.slane %v408, 1
      %v512 = vsel %vm509, %v510, %v511
      %v513 = vrot.slane %v409, 1
      %v514 = vsel %vm509, %v511, %v513
      %v515 = vrot.slane %v410, 1
      %v516 = vrot.slane %v411, 1
      %v517 = vsel %vm509, %v515, %v516
      %v518 = vrot.slane %v412, 1
      %v519 = vsel %vm509, %v516, %v518
      %v520 = vrot.slane %v413, 1
      %v521 = vrot.slane %v414, 1
      %v522 = vsel %vm509, %v520, %v521
      %v523 = vrot.slane %v415, 1
      %v524 = vsel %vm509, %v521, %v523
      %v525 = vrot.slane %v416, 1
      %v526 = vrot.slane %v417, 1
      %v527 = vsel %vm509, %v525, %v526
      %v528 = vrot.slane %v418, 1
      %v529 = vsel %vm509, %v526, %v528
      %v530 = vrot.slane %v419, 1
      %v531 = vrot.slane %v420, 1
      %v532 = vsel %vm509, %v530, %v531
      %v533 = vrot.slane %v421, 1
      %v534 = vsel %vm509, %v531, %v533
      %v535 = vrot.slane %v422, 1
      %v536 = vrot.slane %v423, 1
      %v537 = vsel %vm509, %v535, %v536
      %v538 = vrot.slane %v424, 1
      %v539 = vsel %vm509, %v536, %v538
      %v540 = vrot.slane %v425, 1
      %v541 = vrot.slane %v426, 1
      %v542 = vsel %vm509, %v540, %v541
      %v543 = vrot.slane %v427, 1
      %v544 = vsel %vm509, %v541, %v543
      %v545 = vrot.slane %v428, 1
      %v546 = vrot.slane %v429, 1
      %v547 = vsel %vm509, %v545, %v546
      %v548 = vrot.slane %v430, 1
      %v549 = vsel %vm509, %v546, %v548
      %v550 = vrot.slane %v431, 1
      %v551 = vrot.slane %v432, 1
      %v552 = vsel %vm509, %v550, %v551
      %v553 = vrot.slane %v433, 1
      %v554 = vsel %vm509, %v551, %v553
      %v555 = vrot.slane %v434, 1
      %v556 = vrot.slane %v435, 1
      %v557 = vsel %vm509, %v555, %v556
      %v558 = vrot.slane %v436, 1
      %v559 = vsel %vm509, %v556, %v558
      %v560 = vrot.slane %v437, 1
      %v561 = vrot.slane %v438, 1
      %v562 = vsel %vm509, %v560, %v561
      %v563 = vrot.slane %v439, 1
      %v564 = vsel %vm509, %v561, %v563
      %v565 = vrot.slane %v440, 1
      %v566 = vrot.slane %v441, 1
      %v567 = vsel %vm509, %v565, %v566
      %v568 = vrot.slane %v442, 1
      %v569 = vsel %vm509, %v566, %v568
      %v570 = vrot.slane %v443, 1
      %v571 = vrot.slane %v444, 1
      %v572 = vsel %vm509, %v570, %v571
      %v573 = vrot.slane %v445, 1
      %v574 = vsel %vm509, %v571, %v573
      %v575 = vrot.slane %v446, 1
      %v576 = vrot.slane %v447, 1
      %v577 = vsel %vm509, %v575, %v576
      %v578 = vrot.slane %v448, 1
      %v579 = vsel %vm509, %v576, %v578
      %v580 = vrot.slane %v449, 1
      %v581 = vrot.slane %v450, 1
      %v582 = vsel %vm509, %v580, %v581
      %v583 = vrot.slane %v451, 1
      %v584 = vsel %vm509, %v581, %v583
      %v585 = vrot.slane %v452, 1
      %v586 = vrot.slane %v453, 1
      %v587 = vsel %vm509, %v585, %v586
      %v588 = vrot.slane %v454, 1
      %v589 = vsel %vm509, %v586, %v588
      %vm590 = vcmask 1045504
      %v591 = vrot.slane %v407, 2
      %v592 = vrot.slane %v408, 2
      %v593 = vsel %vm590, %v591, %v592
      %v594 = vrot.slane %v409, 2
      %v595 = vsel %vm590, %v592, %v594
      %v596 = vrot.slane %v410, 2
      %v597 = vrot.slane %v411, 2
      %v598 = vsel %vm590, %v596, %v597
      %v599 = vrot.slane %v412, 2
      %v600 = vsel %vm590, %v597, %v599
      %v601 = vrot.slane %v413, 2
      %v602 = vrot.slane %v414, 2
      %v603 = vsel %vm590, %v601, %v602
      %v604 = vrot.slane %v415, 2
      %v605 = vsel %vm590, %v602, %v604
      %v606 = vrot.slane %v416, 2
      %v607 = vrot.slane %v417, 2
      %v608 = vsel %vm590, %v606, %v607
      %v609 = vrot.slane %v418, 2
      %v610 = vsel %vm590, %v607, %v609
      %v611 = vrot.slane %v419, 2
      %v612 = vrot.slane %v420, 2
      %v613 = vsel %vm590, %v611, %v612
      %v614 = vrot.slane %v421, 2
      %v615 = vsel %vm590, %v612, %v614
      %v616 = vrot.slane %v422, 2
      %v617 = vrot.slane %v423, 2
      %v618 = vsel %vm590, %v616, %v617
      %v619 = vrot.slane %v424, 2
      %v620 = vsel %vm590, %v617, %v619
      %v621 = vrot.slane %v425, 2
      %v622 = vrot.slane %v426, 2
      %v623 = vsel %vm590, %v621, %v622
      %v624 = vrot.slane %v427, 2
      %v625 = vsel %vm590, %v622, %v624
      %v626 = vrot.slane %v428, 2
      %v627 = vrot.slane %v429, 2
      %v628 = vsel %vm590, %v626, %v627
      %v629 = vrot.slane %v430, 2
      %v630 = vsel %vm590, %v627, %v629
      %v631 = vrot.slane %v431, 2
      %v632 = vrot.slane %v432, 2
      %v633 = vsel %vm590, %v631, %v632
      %v634 = vrot.slane %v433, 2
      %v635 = vsel %vm590, %v632, %v634
      %v636 = vrot.slane %v434, 2
      %v637 = vrot.slane %v435, 2
      %v638 = vsel %vm590, %v636, %v637
      %v639 = vrot.slane %v436, 2
      %v640 = vsel %vm590, %v637, %v639
      %v641 = vrot.slane %v437, 2
      %v642 = vrot.slane %v438, 2
      %v643 = vsel %vm590, %v641, %v642
      %v644 = vrot.slane %v439, 2
      %v645 = vsel %vm590, %v642, %v644
      %v646 = vrot.slane %v440, 2
      %v647 = vrot.slane %v441, 2
      %v648 = vsel %vm590, %v646, %v647
      %v649 = vrot.slane %v442, 2
      %v650 = vsel %vm590, %v647, %v649
      %v651 = vrot.slane %v443, 2
      %v652 = vrot.slane %v444, 2
      %v653 = vsel %vm590, %v651, %v652
      %v654 = vrot.slane %v445, 2
      %v655 = vsel %vm590, %v652, %v654
      %v656 = vrot.slane %v446, 2
      %v657 = vrot.slane %v447, 2
      %v658 = vsel %vm590, %v656, %v657
      %v659 = vrot.slane %v448, 2
      %v660 = vsel %vm590, %v657, %v659
      %v661 = vrot.slane %v449, 2
      %v662 = vrot.slane %v450, 2
      %v663 = vsel %vm590, %v661, %v662
      %v664 = vrot.slane %v451, 2
      %v665 = vsel %vm590, %v662, %v664
      %v666 = vrot.slane %v452, 2
      %v667 = vrot.slane %v453, 2
      %v668 = vsel %vm590, %v666, %v667
      %v669 = vrot.slane %v454, 2
      %v670 = vsel %vm590, %v667, %v669
      %v674 = vrot.slane %v455, 1
      %v675 = vrot.slane %v456, 1
      %v676 = vsel %vm509, %v674, %v675
      %v677 = vrot.slane %v457, 1
      %v678 = vsel %vm509, %v675, %v677
      %v679 = vrot.slane %v455, 2
      %v680 = vrot.slane %v456, 2
      %v681 = vsel %vm590, %v679, %v680
      %v682 = vrot.slane %v457, 2
      %v683 = vsel %vm590, %v680, %v682
      %v687 = vrot.slane %v458, 1
      %v688 = vrot.slane %v459, 1
      %v689 = vsel %vm509, %v687, %v688
      %v690 = vrot.slane %v460, 1
      %v691 = vsel %vm509, %v688, %v690
      %v692 = vrot.slane %v458, 2
      %v693 = vrot.slane %v459, 2
      %v694 = vsel %vm590, %v692, %v693
      %v695 = vrot.slane %v460, 2
      %v696 = vsel %vm590, %v693, %v695
      %697 = vrot.lane.b32.xlu0 %v512, 4
      %v698 = vpop.permute.xlu0 %697
      %699 = vrot.lane.b32.xlu0 %v514, 4
      %v700 = vpop.permute.xlu0 %699
      %701 = vrot.lane.b32.xlu0 %v517, 4
      %v702 = vpop.permute.xlu0 %701
      %703 = vrot.lane.b32.xlu0 %v519, 4
      %v704 = vpop.permute.xlu0 %703
      %705 = vrot.lane.b32.xlu0 %v522, 4
      %v706 = vpop.permute.xlu0 %705
      %707 = vrot.lane.b32.xlu0 %v524, 4
      %v708 = vpop.permute.xlu0 %707
      %709 = vrot.lane.b32.xlu0 %v527, 4
      %v710 = vpop.permute.xlu0 %709
      %711 = vrot.lane.b32.xlu0 %v529, 4
      %v712 = vpop.permute.xlu0 %711
      %713 = vrot.lane.b32.xlu0 %v532, 4
      %v714 = vpop.permute.xlu0 %713
      %715 = vrot.lane.b32.xlu0 %v534, 4
      %v716 = vpop.permute.xlu0 %715
      %717 = vrot.lane.b32.xlu0 %v537, 4
      %v718 = vpop.permute.xlu0 %717
      %719 = vrot.lane.b32.xlu0 %v539, 4
      %v720 = vpop.permute.xlu0 %719
      %721 = vrot.lane.b32.xlu0 %v542, 4
      %v722 = vpop.permute.xlu0 %721
      %723 = vrot.lane.b32.xlu0 %v544, 4
      %v724 = vpop.permute.xlu0 %723
      %725 = vrot.lane.b32.xlu0 %v547, 4
      %v726 = vpop.permute.xlu0 %725
      %727 = vrot.lane.b32.xlu0 %v549, 4
      %v728 = vpop.permute.xlu0 %727
      %729 = vrot.lane.b32.xlu0 %v552, 4
      %v730 = vpop.permute.xlu0 %729
      %731 = vrot.lane.b32.xlu0 %v554, 4
      %v732 = vpop.permute.xlu0 %731
      %733 = vrot.lane.b32.xlu0 %v557, 4
      %v734 = vpop.permute.xlu0 %733
      %735 = vrot.lane.b32.xlu0 %v559, 4
      %v736 = vpop.permute.xlu0 %735
      %737 = vrot.lane.b32.xlu0 %v562, 4
      %v738 = vpop.permute.xlu0 %737
      %739 = vrot.lane.b32.xlu0 %v564, 4
      %v740 = vpop.permute.xlu0 %739
      %741 = vrot.lane.b32.xlu0 %v567, 4
      %v742 = vpop.permute.xlu0 %741
      %743 = vrot.lane.b32.xlu0 %v569, 4
      %v744 = vpop.permute.xlu0 %743
      %745 = vrot.lane.b32.xlu0 %v572, 4
      %v746 = vpop.permute.xlu0 %745
      %747 = vrot.lane.b32.xlu0 %v574, 4
      %v748 = vpop.permute.xlu0 %747
      %749 = vrot.lane.b32.xlu0 %v577, 4
      %v750 = vpop.permute.xlu0 %749
      %751 = vrot.lane.b32.xlu0 %v579, 4
      %v752 = vpop.permute.xlu0 %751
      %753 = vrot.lane.b32.xlu0 %v582, 4
      %v754 = vpop.permute.xlu0 %753
      %755 = vrot.lane.b32.xlu0 %v584, 4
      %v756 = vpop.permute.xlu0 %755
      %757 = vrot.lane.b32.xlu0 %v587, 4
      %v758 = vpop.permute.xlu0 %757
      %759 = vrot.lane.b32.xlu0 %v589, 4
      %v760 = vpop.permute.xlu0 %759
      %793 = vrot.lane.b32.xlu0 %v593, 8
      %v794 = vpop.permute.xlu0 %793
      %795 = vrot.lane.b32.xlu0 %v595, 8
      %v796 = vpop.permute.xlu0 %795
      %797 = vrot.lane.b32.xlu0 %v598, 8
      %v798 = vpop.permute.xlu0 %797
      %799 = vrot.lane.b32.xlu0 %v600, 8
      %v800 = vpop.permute.xlu0 %799
      %801 = vrot.lane.b32.xlu0 %v603, 8
      %v802 = vpop.permute.xlu0 %801
      %803 = vrot.lane.b32.xlu0 %v605, 8
      %v804 = vpop.permute.xlu0 %803
      %805 = vrot.lane.b32.xlu0 %v608, 8
      %v806 = vpop.permute.xlu0 %805
      %807 = vrot.lane.b32.xlu0 %v610, 8
      %v808 = vpop.permute.xlu0 %807
      %809 = vrot.lane.b32.xlu0 %v613, 8
      %v810 = vpop.permute.xlu0 %809
      %811 = vrot.lane.b32.xlu0 %v615, 8
      %v812 = vpop.permute.xlu0 %811
      %813 = vrot.lane.b32.xlu0 %v618, 8
      %v814 = vpop.permute.xlu0 %813
      %815 = vrot.lane.b32.xlu0 %v620, 8
      %v816 = vpop.permute.xlu0 %815
      %817 = vrot.lane.b32.xlu0 %v623, 8
      %v818 = vpop.permute.xlu0 %817
      %819 = vrot.lane.b32.xlu0 %v625, 8
      %v820 = vpop.permute.xlu0 %819
      %821 = vrot.lane.b32.xlu0 %v628, 8
      %v822 = vpop.permute.xlu0 %821
      %823 = vrot.lane.b32.xlu0 %v630, 8
      %v824 = vpop.permute.xlu0 %823
      %825 = vrot.lane.b32.xlu0 %v633, 8
      %v826 = vpop.permute.xlu0 %825
      %827 = vrot.lane.b32.xlu0 %v635, 8
      %v828 = vpop.permute.xlu0 %827
      %829 = vrot.lane.b32.xlu0 %v638, 8
      %v830 = vpop.permute.xlu0 %829
      %831 = vrot.lane.b32.xlu0 %v640, 8
      %v832 = vpop.permute.xlu0 %831
      %833 = vrot.lane.b32.xlu0 %v643, 8
      %v834 = vpop.permute.xlu0 %833
      %835 = vrot.lane.b32.xlu0 %v645, 8
      %v836 = vpop.permute.xlu0 %835
      %837 = vrot.lane.b32.xlu0 %v648, 8
      %v838 = vpop.permute.xlu0 %837
      %839 = vrot.lane.b32.xlu0 %v650, 8
      %v840 = vpop.permute.xlu0 %839
      %841 = vrot.lane.b32.xlu0 %v653, 8
      %v842 = vpop.permute.xlu0 %841
      %843 = vrot.lane.b32.xlu0 %v655, 8
      %v844 = vpop.permute.xlu0 %843
      %845 = vrot.lane.b32.xlu0 %v658, 8
      %v846 = vpop.permute.xlu0 %845
      %847 = vrot.lane.b32.xlu0 %v660, 8
      %v848 = vpop.permute.xlu0 %847
      %849 = vrot.lane.b32.xlu0 %v663, 8
      %v850 = vpop.permute.xlu0 %849
      %851 = vrot.lane.b32.xlu0 %v665, 8
      %v852 = vpop.permute.xlu0 %851
      %853 = vrot.lane.b32.xlu0 %v668, 8
      %v854 = vpop.permute.xlu0 %853
      %855 = vrot.lane.b32.xlu0 %v670, 8
      %v856 = vpop.permute.xlu0 %855
      %889 = vrot.lane.b32.xlu0 %v410, 12
      %v890 = vpop.permute.xlu0 %889
      %891 = vrot.lane.b32.xlu0 %v411, 12
      %v892 = vpop.permute.xlu0 %891
      %893 = vrot.lane.b32.xlu0 %v413, 12
      %v894 = vpop.permute.xlu0 %893
      %895 = vrot.lane.b32.xlu0 %v414, 12
      %v896 = vpop.permute.xlu0 %895
      %897 = vrot.lane.b32.xlu0 %v416, 12
      %v898 = vpop.permute.xlu0 %897
      %899 = vrot.lane.b32.xlu0 %v417, 12
      %v900 = vpop.permute.xlu0 %899
      %901 = vrot.lane.b32.xlu0 %v419, 12
      %v902 = vpop.permute.xlu0 %901
      %903 = vrot.lane.b32.xlu0 %v420, 12
      %v904 = vpop.permute.xlu0 %903
      %905 = vrot.lane.b32.xlu0 %v422, 12
      %v906 = vpop.permute.xlu0 %905
      %907 = vrot.lane.b32.xlu0 %v423, 12
      %v908 = vpop.permute.xlu0 %907
      %909 = vrot.lane.b32.xlu0 %v425, 12
      %v910 = vpop.permute.xlu0 %909
      %911 = vrot.lane.b32.xlu0 %v426, 12
      %v912 = vpop.permute.xlu0 %911
      %913 = vrot.lane.b32.xlu0 %v428, 12
      %v914 = vpop.permute.xlu0 %913
      %915 = vrot.lane.b32.xlu0 %v429, 12
      %v916 = vpop.permute.xlu0 %915
      %917 = vrot.lane.b32.xlu0 %v431, 12
      %v918 = vpop.permute.xlu0 %917
      %919 = vrot.lane.b32.xlu0 %v432, 12
      %v920 = vpop.permute.xlu0 %919
      %921 = vrot.lane.b32.xlu0 %v434, 12
      %v922 = vpop.permute.xlu0 %921
      %923 = vrot.lane.b32.xlu0 %v435, 12
      %v924 = vpop.permute.xlu0 %923
      %925 = vrot.lane.b32.xlu0 %v437, 12
      %v926 = vpop.permute.xlu0 %925
      %927 = vrot.lane.b32.xlu0 %v438, 12
      %v928 = vpop.permute.xlu0 %927
      %929 = vrot.lane.b32.xlu0 %v440, 12
      %v930 = vpop.permute.xlu0 %929
      %931 = vrot.lane.b32.xlu0 %v441, 12
      %v932 = vpop.permute.xlu0 %931
      %933 = vrot.lane.b32.xlu0 %v443, 12
      %v934 = vpop.permute.xlu0 %933
      %935 = vrot.lane.b32.xlu0 %v444, 12
      %v936 = vpop.permute.xlu0 %935
      %937 = vrot.lane.b32.xlu0 %v446, 12
      %v938 = vpop.permute.xlu0 %937
      %939 = vrot.lane.b32.xlu0 %v447, 12
      %v940 = vpop.permute.xlu0 %939
      %941 = vrot.lane.b32.xlu0 %v449, 12
      %v942 = vpop.permute.xlu0 %941
      %943 = vrot.lane.b32.xlu0 %v450, 12
      %v944 = vpop.permute.xlu0 %943
      %945 = vrot.lane.b32.xlu0 %v452, 12
      %v946 = vpop.permute.xlu0 %945
      %947 = vrot.lane.b32.xlu0 %v453, 12
      %v948 = vpop.permute.xlu0 %947
      %949 = vrot.lane.b32.xlu0 %v455, 12
      %v950 = vpop.permute.xlu0 %949
      %951 = vrot.lane.b32.xlu0 %v456, 12
      %v952 = vpop.permute.xlu0 %951
      %985 = vrot.lane.b32.xlu0 %v517, 16
      %v986 = vpop.permute.xlu0 %985
      %987 = vrot.lane.b32.xlu0 %v519, 16
      %v988 = vpop.permute.xlu0 %987
      %989 = vrot.lane.b32.xlu0 %v522, 16
      %v990 = vpop.permute.xlu0 %989
      %991 = vrot.lane.b32.xlu0 %v524, 16
      %v992 = vpop.permute.xlu0 %991
      %993 = vrot.lane.b32.xlu0 %v527, 16
      %v994 = vpop.permute.xlu0 %993
      %995 = vrot.lane.b32.xlu0 %v529, 16
      %v996 = vpop.permute.xlu0 %995
      %997 = vrot.lane.b32.xlu0 %v532, 16
      %v998 = vpop.permute.xlu0 %997
      %999 = vrot.lane.b32.xlu0 %v534, 16
      %v1000 = vpop.permute.xlu0 %999
      %1001 = vrot.lane.b32.xlu0 %v537, 16
      %v1002 = vpop.permute.xlu0 %1001
      %1003 = vrot.lane.b32.xlu0 %v539, 16
      %v1004 = vpop.permute.xlu0 %1003
      %1005 = vrot.lane.b32.xlu0 %v542, 16
      %v1006 = vpop.permute.xlu0 %1005
      %1007 = vrot.lane.b32.xlu0 %v544, 16
      %v1008 = vpop.permute.xlu0 %1007
      %1009 = vrot.lane.b32.xlu0 %v547, 16
      %v1010 = vpop.permute.xlu0 %1009
      %1011 = vrot.lane.b32.xlu0 %v549, 16
      %v1012 = vpop.permute.xlu0 %1011
      %1013 = vrot.lane.b32.xlu0 %v552, 16
      %v1014 = vpop.permute.xlu0 %1013
      %1015 = vrot.lane.b32.xlu0 %v554, 16
      %v1016 = vpop.permute.xlu0 %1015
      %1017 = vrot.lane.b32.xlu0 %v557, 16
      %v1018 = vpop.permute.xlu0 %1017
      %1019 = vrot.lane.b32.xlu0 %v559, 16
      %v1020 = vpop.permute.xlu0 %1019
      %1021 = vrot.lane.b32.xlu0 %v562, 16
      %v1022 = vpop.permute.xlu0 %1021
      %1023 = vrot.lane.b32.xlu0 %v564, 16
      %v1024 = vpop.permute.xlu0 %1023
      %1025 = vrot.lane.b32.xlu0 %v567, 16
      %v1026 = vpop.permute.xlu0 %1025
      %1027 = vrot.lane.b32.xlu0 %v569, 16
      %v1028 = vpop.permute.xlu0 %1027
      %1029 = vrot.lane.b32.xlu0 %v572, 16
      %v1030 = vpop.permute.xlu0 %1029
      %1031 = vrot.lane.b32.xlu0 %v574, 16
      %v1032 = vpop.permute.xlu0 %1031
      %1033 = vrot.lane.b32.xlu0 %v577, 16
      %v1034 = vpop.permute.xlu0 %1033
      %1035 = vrot.lane.b32.xlu0 %v579, 16
      %v1036 = vpop.permute.xlu0 %1035
      %1037 = vrot.lane.b32.xlu0 %v582, 16
      %v1038 = vpop.permute.xlu0 %1037
      %1039 = vrot.lane.b32.xlu0 %v584, 16
      %v1040 = vpop.permute.xlu0 %1039
      %1041 = vrot.lane.b32.xlu0 %v587, 16
      %v1042 = vpop.permute.xlu0 %1041
      %1043 = vrot.lane.b32.xlu0 %v589, 16
      %v1044 = vpop.permute.xlu0 %1043
      %1045 = vrot.lane.b32.xlu0 %v676, 16
      %v1046 = vpop.permute.xlu0 %1045
      %1047 = vrot.lane.b32.xlu0 %v678, 16
      %v1048 = vpop.permute.xlu0 %1047
      %1081 = vrot.lane.b32.xlu0 %v598, 20
      %v1082 = vpop.permute.xlu0 %1081
      %1083 = vrot.lane.b32.xlu0 %v600, 20
      %v1084 = vpop.permute.xlu0 %1083
      %1085 = vrot.lane.b32.xlu0 %v603, 20
      %v1086 = vpop.permute.xlu0 %1085
      %1087 = vrot.lane.b32.xlu0 %v605, 20
      %v1088 = vpop.permute.xlu0 %1087
      %1089 = vrot.lane.b32.xlu0 %v608, 20
      %v1090 = vpop.permute.xlu0 %1089
      %1091 = vrot.lane.b32.xlu0 %v610, 20
      %v1092 = vpop.permute.xlu0 %1091
      %1093 = vrot.lane.b32.xlu0 %v613, 20
      %v1094 = vpop.permute.xlu0 %1093
      %1095 = vrot.lane.b32.xlu0 %v615, 20
      %v1096 = vpop.permute.xlu0 %1095
      %1097 = vrot.lane.b32.xlu0 %v618, 20
      %v1098 = vpop.permute.xlu0 %1097
      %1099 = vrot.lane.b32.xlu0 %v620, 20
      %v1100 = vpop.permute.xlu0 %1099
      %1101 = vrot.lane.b32.xlu0 %v623, 20
      %v1102 = vpop.permute.xlu0 %1101
      %1103 = vrot.lane.b32.xlu0 %v625, 20
      %v1104 = vpop.permute.xlu0 %1103
      %1105 = vrot.lane.b32.xlu0 %v628, 20
      %v1106 = vpop.permute.xlu0 %1105
      %1107 = vrot.lane.b32.xlu0 %v630, 20
      %v1108 = vpop.permute.xlu0 %1107
      %1109 = vrot.lane.b32.xlu0 %v633, 20
      %v1110 = vpop.permute.xlu0 %1109
      %1111 = vrot.lane.b32.xlu0 %v635, 20
      %v1112 = vpop.permute.xlu0 %1111
      %1113 = vrot.lane.b32.xlu0 %v638, 20
      %v1114 = vpop.permute.xlu0 %1113
      %1115 = vrot.lane.b32.xlu0 %v640, 20
      %v1116 = vpop.permute.xlu0 %1115
      %1117 = vrot.lane.b32.xlu0 %v643, 20
      %v1118 = vpop.permute.xlu0 %1117
      %1119 = vrot.lane.b32.xlu0 %v645, 20
      %v1120 = vpop.permute.xlu0 %1119
      %1121 = vrot.lane.b32.xlu0 %v648, 20
      %v1122 = vpop.permute.xlu0 %1121
      %1123 = vrot.lane.b32.xlu0 %v650, 20
      %v1124 = vpop.permute.xlu0 %1123
      %1125 = vrot.lane.b32.xlu0 %v653, 20
      %v1126 = vpop.permute.xlu0 %1125
      %1127 = vrot.lane.b32.xlu0 %v655, 20
      %v1128 = vpop.permute.xlu0 %1127
      %1129 = vrot.lane.b32.xlu0 %v658, 20
      %v1130 = vpop.permute.xlu0 %1129
      %1131 = vrot.lane.b32.xlu0 %v660, 20
      %v1132 = vpop.permute.xlu0 %1131
      %1133 = vrot.lane.b32.xlu0 %v663, 20
      %v1134 = vpop.permute.xlu0 %1133
      %1135 = vrot.lane.b32.xlu0 %v665, 20
      %v1136 = vpop.permute.xlu0 %1135
      %1137 = vrot.lane.b32.xlu0 %v668, 20
      %v1138 = vpop.permute.xlu0 %1137
      %1139 = vrot.lane.b32.xlu0 %v670, 20
      %v1140 = vpop.permute.xlu0 %1139
      %1141 = vrot.lane.b32.xlu0 %v681, 20
      %v1142 = vpop.permute.xlu0 %1141
      %1143 = vrot.lane.b32.xlu0 %v683, 20
      %v1144 = vpop.permute.xlu0 %1143
      %1177 = vrot.lane.b32.xlu0 %v413, 24
      %v1178 = vpop.permute.xlu0 %1177
      %1179 = vrot.lane.b32.xlu0 %v414, 24
      %v1180 = vpop.permute.xlu0 %1179
      %1181 = vrot.lane.b32.xlu0 %v416, 24
      %v1182 = vpop.permute.xlu0 %1181
      %1183 = vrot.lane.b32.xlu0 %v417, 24
      %v1184 = vpop.permute.xlu0 %1183
      %1185 = vrot.lane.b32.xlu0 %v419, 24
      %v1186 = vpop.permute.xlu0 %1185
      %1187 = vrot.lane.b32.xlu0 %v420, 24
      %v1188 = vpop.permute.xlu0 %1187
      %1189 = vrot.lane.b32.xlu0 %v422, 24
      %v1190 = vpop.permute.xlu0 %1189
      %1191 = vrot.lane.b32.xlu0 %v423, 24
      %v1192 = vpop.permute.xlu0 %1191
      %1193 = vrot.lane.b32.xlu0 %v425, 24
      %v1194 = vpop.permute.xlu0 %1193
      %1195 = vrot.lane.b32.xlu0 %v426, 24
      %v1196 = vpop.permute.xlu0 %1195
      %1197 = vrot.lane.b32.xlu0 %v428, 24
      %v1198 = vpop.permute.xlu0 %1197
      %1199 = vrot.lane.b32.xlu0 %v429, 24
      %v1200 = vpop.permute.xlu0 %1199
      %1201 = vrot.lane.b32.xlu0 %v431, 24
      %v1202 = vpop.permute.xlu0 %1201
      %1203 = vrot.lane.b32.xlu0 %v432, 24
      %v1204 = vpop.permute.xlu0 %1203
      %1205 = vrot.lane.b32.xlu0 %v434, 24
      %v1206 = vpop.permute.xlu0 %1205
      %1207 = vrot.lane.b32.xlu0 %v435, 24
      %v1208 = vpop.permute.xlu0 %1207
      %1209 = vrot.lane.b32.xlu0 %v437, 24
      %v1210 = vpop.permute.xlu0 %1209
      %1211 = vrot.lane.b32.xlu0 %v438, 24
      %v1212 = vpop.permute.xlu0 %1211
      %1213 = vrot.lane.b32.xlu0 %v440, 24
      %v1214 = vpop.permute.xlu0 %1213
      %1215 = vrot.lane.b32.xlu0 %v441, 24
      %v1216 = vpop.permute.xlu0 %1215
      %1217 = vrot.lane.b32.xlu0 %v443, 24
      %v1218 = vpop.permute.xlu0 %1217
      %1219 = vrot.lane.b32.xlu0 %v444, 24
      %v1220 = vpop.permute.xlu0 %1219
      %1221 = vrot.lane.b32.xlu0 %v446, 24
      %v1222 = vpop.permute.xlu0 %1221
      %1223 = vrot.lane.b32.xlu0 %v447, 24
      %v1224 = vpop.permute.xlu0 %1223
      %1225 = vrot.lane.b32.xlu0 %v449, 24
      %v1226 = vpop.permute.xlu0 %1225
      %1227 = vrot.lane.b32.xlu0 %v450, 24
      %v1228 = vpop.permute.xlu0 %1227
      %1229 = vrot.lane.b32.xlu0 %v452, 24
      %v1230 = vpop.permute.xlu0 %1229
      %1231 = vrot.lane.b32.xlu0 %v453, 24
      %v1232 = vpop.permute.xlu0 %1231
      %1233 = vrot.lane.b32.xlu0 %v455, 24
      %v1234 = vpop.permute.xlu0 %1233
      %1235 = vrot.lane.b32.xlu0 %v456, 24
      %v1236 = vpop.permute.xlu0 %1235
      %1237 = vrot.lane.b32.xlu0 %v458, 24
      %v1238 = vpop.permute.xlu0 %1237
      %1239 = vrot.lane.b32.xlu0 %v459, 24
      %v1240 = vpop.permute.xlu0 %1239
      %1273 = vrot.lane.b32.xlu0 %v522, 28
      %v1274 = vpop.permute.xlu0 %1273
      %1275 = vrot.lane.b32.xlu0 %v524, 28
      %v1276 = vpop.permute.xlu0 %1275
      %1277 = vrot.lane.b32.xlu0 %v527, 28
      %v1278 = vpop.permute.xlu0 %1277
      %1279 = vrot.lane.b32.xlu0 %v529, 28
      %v1280 = vpop.permute.xlu0 %1279
      %1281 = vrot.lane.b32.xlu0 %v532, 28
      %v1282 = vpop.permute.xlu0 %1281
      %1283 = vrot.lane.b32.xlu0 %v534, 28
      %v1284 = vpop.permute.xlu0 %1283
      %1285 = vrot.lane.b32.xlu0 %v537, 28
      %v1286 = vpop.permute.xlu0 %1285
      %1287 = vrot.lane.b32.xlu0 %v539, 28
      %v1288 = vpop.permute.xlu0 %1287
      %1289 = vrot.lane.b32.xlu0 %v542, 28
      %v1290 = vpop.permute.xlu0 %1289
      %1291 = vrot.lane.b32.xlu0 %v544, 28
      %v1292 = vpop.permute.xlu0 %1291
      %1293 = vrot.lane.b32.xlu0 %v547, 28
      %v1294 = vpop.permute.xlu0 %1293
      %1295 = vrot.lane.b32.xlu0 %v549, 28
      %v1296 = vpop.permute.xlu0 %1295
      %1297 = vrot.lane.b32.xlu0 %v552, 28
      %v1298 = vpop.permute.xlu0 %1297
      %1299 = vrot.lane.b32.xlu0 %v554, 28
      %v1300 = vpop.permute.xlu0 %1299
      %1301 = vrot.lane.b32.xlu0 %v557, 28
      %v1302 = vpop.permute.xlu0 %1301
      %1303 = vrot.lane.b32.xlu0 %v559, 28
      %v1304 = vpop.permute.xlu0 %1303
      %1305 = vrot.lane.b32.xlu0 %v562, 28
      %v1306 = vpop.permute.xlu0 %1305
      %1307 = vrot.lane.b32.xlu0 %v564, 28
      %v1308 = vpop.permute.xlu0 %1307
      %1309 = vrot.lane.b32.xlu0 %v567, 28
      %v1310 = vpop.permute.xlu0 %1309
      %1311 = vrot.lane.b32.xlu0 %v569, 28
      %v1312 = vpop.permute.xlu0 %1311
      %1313 = vrot.lane.b32.xlu0 %v572, 28
      %v1314 = vpop.permute.xlu0 %1313
      %1315 = vrot.lane.b32.xlu0 %v574, 28
      %v1316 = vpop.permute.xlu0 %1315
      %1317 = vrot.lane.b32.xlu0 %v577, 28
      %v1318 = vpop.permute.xlu0 %1317
      %1319 = vrot.lane.b32.xlu0 %v579, 28
      %v1320 = vpop.permute.xlu0 %1319
      %1321 = vrot.lane.b32.xlu0 %v582, 28
      %v1322 = vpop.permute.xlu0 %1321
      %1323 = vrot.lane.b32.xlu0 %v584, 28
      %v1324 = vpop.permute.xlu0 %1323
      %1325 = vrot.lane.b32.xlu0 %v587, 28
      %v1326 = vpop.permute.xlu0 %1325
      %1327 = vrot.lane.b32.xlu0 %v589, 28
      %v1328 = vpop.permute.xlu0 %1327
      %1329 = vrot.lane.b32.xlu0 %v676, 28
      %v1330 = vpop.permute.xlu0 %1329
      %1331 = vrot.lane.b32.xlu0 %v678, 28
      %v1332 = vpop.permute.xlu0 %1331
      %1333 = vrot.lane.b32.xlu0 %v689, 28
      %v1334 = vpop.permute.xlu0 %1333
      %1335 = vrot.lane.b32.xlu0 %v691, 28
      %v1336 = vpop.permute.xlu0 %1335
      %1369 = vrot.lane.b32.xlu0 %v603, 32
      %v1370 = vpop.permute.xlu0 %1369
      %1371 = vrot.lane.b32.xlu0 %v605, 32
      %v1372 = vpop.permute.xlu0 %1371
      %1373 = vrot.lane.b32.xlu0 %v608, 32
      %v1374 = vpop.permute.xlu0 %1373
      %1375 = vrot.lane.b32.xlu0 %v610, 32
      %v1376 = vpop.permute.xlu0 %1375
      %1377 = vrot.lane.b32.xlu0 %v613, 32
      %v1378 = vpop.permute.xlu0 %1377
      %1379 = vrot.lane.b32.xlu0 %v615, 32
      %v1380 = vpop.permute.xlu0 %1379
      %1381 = vrot.lane.b32.xlu0 %v618, 32
      %v1382 = vpop.permute.xlu0 %1381
      %1383 = vrot.lane.b32.xlu0 %v620, 32
      %v1384 = vpop.permute.xlu0 %1383
      %1385 = vrot.lane.b32.xlu0 %v623, 32
      %v1386 = vpop.permute.xlu0 %1385
      %1387 = vrot.lane.b32.xlu0 %v625, 32
      %v1388 = vpop.permute.xlu0 %1387
      %1389 = vrot.lane.b32.xlu0 %v628, 32
      %v1390 = vpop.permute.xlu0 %1389
      %1391 = vrot.lane.b32.xlu0 %v630, 32
      %v1392 = vpop.permute.xlu0 %1391
      %1393 = vrot.lane.b32.xlu0 %v633, 32
      %v1394 = vpop.permute.xlu0 %1393
      %1395 = vrot.lane.b32.xlu0 %v635, 32
      %v1396 = vpop.permute.xlu0 %1395
      %1397 = vrot.lane.b32.xlu0 %v638, 32
      %v1398 = vpop.permute.xlu0 %1397
      %1399 = vrot.lane.b32.xlu0 %v640, 32
      %v1400 = vpop.permute.xlu0 %1399
      %1401 = vrot.lane.b32.xlu0 %v643, 32
      %v1402 = vpop.permute.xlu0 %1401
      %1403 = vrot.lane.b32.xlu0 %v645, 32
      %v1404 = vpop.permute.xlu0 %1403
      %1405 = vrot.lane.b32.xlu0 %v648, 32
      %v1406 = vpop.permute.xlu0 %1405
      %1407 = vrot.lane.b32.xlu0 %v650, 32
      %v1408 = vpop.permute.xlu0 %1407
      %1409 = vrot.lane.b32.xlu0 %v653, 32
      %v1410 = vpop.permute.xlu0 %1409
      %1411 = vrot.lane.b32.xlu0 %v655, 32
      %v1412 = vpop.permute.xlu0 %1411
      %1413 = vrot.lane.b32.xlu0 %v658, 32
      %v1414 = vpop.permute.xlu0 %1413
      %1415 = vrot.lane.b32.xlu0 %v660, 32
      %v1416 = vpop.permute.xlu0 %1415
      %1417 = vrot.lane.b32.xlu0 %v663, 32
      %v1418 = vpop.permute.xlu0 %1417
      %1419 = vrot.lane.b32.xlu0 %v665, 32
      %v1420 = vpop.permute.xlu0 %1419
      %1421 = vrot.lane.b32.xlu0 %v668, 32
      %v1422 = vpop.permute.xlu0 %1421
      %1423 = vrot.lane.b32.xlu0 %v670, 32
      %v1424 = vpop.permute.xlu0 %1423
      %1425 = vrot.lane.b32.xlu0 %v681, 32
      %v1426 = vpop.permute.xlu0 %1425
      %1427 = vrot.lane.b32.xlu0 %v683, 32
      %v1428 = vpop.permute.xlu0 %1427
      %1429 = vrot.lane.b32.xlu0 %v694, 32
      %v1430 = vpop.permute.xlu0 %1429
      %1431 = vrot.lane.b32.xlu0 %v696, 32
      %v1432 = vpop.permute.xlu0 %1431
      %vm1465 = vcmask 31744
      %v1466 = vsel %vm1465, %v407, %v698
      %v1467 = vsel %vm1465, %v408, %v700
      %v1468 = vsel %vm1465, %v410, %v702
      %v1469 = vsel %vm1465, %v411, %v704
      %v1470 = vsel %vm1465, %v413, %v706
      %v1471 = vsel %vm1465, %v414, %v708
      %v1472 = vsel %vm1465, %v416, %v710
      %v1473 = vsel %vm1465, %v417, %v712
      %v1474 = vsel %vm1465, %v419, %v714
      %v1475 = vsel %vm1465, %v420, %v716
      %v1476 = vsel %vm1465, %v422, %v718
      %v1477 = vsel %vm1465, %v423, %v720
      %v1478 = vsel %vm1465, %v425, %v722
      %v1479 = vsel %vm1465, %v426, %v724
      %v1480 = vsel %vm1465, %v428, %v726
      %v1481 = vsel %vm1465, %v429, %v728
      %v1482 = vsel %vm1465, %v431, %v730
      %v1483 = vsel %vm1465, %v432, %v732
      %v1484 = vsel %vm1465, %v434, %v734
      %v1485 = vsel %vm1465, %v435, %v736
      %v1486 = vsel %vm1465, %v437, %v738
      %v1487 = vsel %vm1465, %v438, %v740
      %v1488 = vsel %vm1465, %v440, %v742
      %v1489 = vsel %vm1465, %v441, %v744
      %v1490 = vsel %vm1465, %v443, %v746
      %v1491 = vsel %vm1465, %v444, %v748
      %v1492 = vsel %vm1465, %v446, %v750
      %v1493 = vsel %vm1465, %v447, %v752
      %v1494 = vsel %vm1465, %v449, %v754
      %v1495 = vsel %vm1465, %v450, %v756
      %v1496 = vsel %vm1465, %v452, %v758
      %v1497 = vsel %vm1465, %v453, %v760
      %vm1498 = vcmask 64512
      %v1499 = vsel %vm1498, %v1466, %v794
      %v1500 = vsel %vm1498, %v1467, %v796
      %v1501 = vsel %vm1498, %v1468, %v798
      %v1502 = vsel %vm1498, %v1469, %v800
      %v1503 = vsel %vm1498, %v1470, %v802
      %v1504 = vsel %vm1498, %v1471, %v804
      %v1505 = vsel %vm1498, %v1472, %v806
      %v1506 = vsel %vm1498, %v1473, %v808
      %v1507 = vsel %vm1498, %v1474, %v810
      %v1508 = vsel %vm1498, %v1475, %v812
      %v1509 = vsel %vm1498, %v1476, %v814
      %v1510 = vsel %vm1498, %v1477, %v816
      %v1511 = vsel %vm1498, %v1478, %v818
      %v1512 = vsel %vm1498, %v1479, %v820
      %v1513 = vsel %vm1498, %v1480, %v822
      %v1514 = vsel %vm1498, %v1481, %v824
      %v1515 = vsel %vm1498, %v1482, %v826
      %v1516 = vsel %vm1498, %v1483, %v828
      %v1517 = vsel %vm1498, %v1484, %v830
      %v1518 = vsel %vm1498, %v1485, %v832
      %v1519 = vsel %vm1498, %v1486, %v834
      %v1520 = vsel %vm1498, %v1487, %v836
      %v1521 = vsel %vm1498, %v1488, %v838
      %v1522 = vsel %vm1498, %v1489, %v840
      %v1523 = vsel %vm1498, %v1490, %v842
      %v1524 = vsel %vm1498, %v1491, %v844
      %v1525 = vsel %vm1498, %v1492, %v846
      %v1526 = vsel %vm1498, %v1493, %v848
      %v1527 = vsel %vm1498, %v1494, %v850
      %v1528 = vsel %vm1498, %v1495, %v852
      %v1529 = vsel %vm1498, %v1496, %v854
      %v1530 = vsel %vm1498, %v1497, %v856
      %vm1531 = vcmask 97280
      %v1532 = vsel %vm1531, %v1499, %v890
      %v1533 = vsel %vm1531, %v1500, %v892
      %v1534 = vsel %vm1531, %v1501, %v894
      %v1535 = vsel %vm1531, %v1502, %v896
      %v1536 = vsel %vm1531, %v1503, %v898
      %v1537 = vsel %vm1531, %v1504, %v900
      %v1538 = vsel %vm1531, %v1505, %v902
      %v1539 = vsel %vm1531, %v1506, %v904
      %v1540 = vsel %vm1531, %v1507, %v906
      %v1541 = vsel %vm1531, %v1508, %v908
      %v1542 = vsel %vm1531, %v1509, %v910
      %v1543 = vsel %vm1531, %v1510, %v912
      %v1544 = vsel %vm1531, %v1511, %v914
      %v1545 = vsel %vm1531, %v1512, %v916
      %v1546 = vsel %vm1531, %v1513, %v918
      %v1547 = vsel %vm1531, %v1514, %v920
      %v1548 = vsel %vm1531, %v1515, %v922
      %v1549 = vsel %vm1531, %v1516, %v924
      %v1550 = vsel %vm1531, %v1517, %v926
      %v1551 = vsel %vm1531, %v1518, %v928
      %v1552 = vsel %vm1531, %v1519, %v930
      %v1553 = vsel %vm1531, %v1520, %v932
      %v1554 = vsel %vm1531, %v1521, %v934
      %v1555 = vsel %vm1531, %v1522, %v936
      %v1556 = vsel %vm1531, %v1523, %v938
      %v1557 = vsel %vm1531, %v1524, %v940
      %v1558 = vsel %vm1531, %v1525, %v942
      %v1559 = vsel %vm1531, %v1526, %v944
      %v1560 = vsel %vm1531, %v1527, %v946
      %v1561 = vsel %vm1531, %v1528, %v948
      %v1562 = vsel %vm1531, %v1529, %v950
      %v1563 = vsel %vm1531, %v1530, %v952
      %vm1564 = vcmask 130048
      %v1565 = vsel %vm1564, %v1532, %v986
      %v1566 = vsel %vm1564, %v1533, %v988
      %v1567 = vsel %vm1564, %v1534, %v990
      %v1568 = vsel %vm1564, %v1535, %v992
      %v1569 = vsel %vm1564, %v1536, %v994
      %v1570 = vsel %vm1564, %v1537, %v996
      %v1571 = vsel %vm1564, %v1538, %v998
      %v1572 = vsel %vm1564, %v1539, %v1000
      %v1573 = vsel %vm1564, %v1540, %v1002
      %v1574 = vsel %vm1564, %v1541, %v1004
      %v1575 = vsel %vm1564, %v1542, %v1006
      %v1576 = vsel %vm1564, %v1543, %v1008
      %v1577 = vsel %vm1564, %v1544, %v1010
      %v1578 = vsel %vm1564, %v1545, %v1012
      %v1579 = vsel %vm1564, %v1546, %v1014
      %v1580 = vsel %vm1564, %v1547, %v1016
      %v1581 = vsel %vm1564, %v1548, %v1018
      %v1582 = vsel %vm1564, %v1549, %v1020
      %v1583 = vsel %vm1564, %v1550, %v1022
      %v1584 = vsel %vm1564, %v1551, %v1024
      %v1585 = vsel %vm1564, %v1552, %v1026
      %v1586 = vsel %vm1564, %v1553, %v1028
      %v1587 = vsel %vm1564, %v1554, %v1030
      %v1588 = vsel %vm1564, %v1555, %v1032
      %v1589 = vsel %vm1564, %v1556, %v1034
      %v1590 = vsel %vm1564, %v1557, %v1036
      %v1591 = vsel %vm1564, %v1558, %v1038
      %v1592 = vsel %vm1564, %v1559, %v1040
      %v1593 = vsel %vm1564, %v1560, %v1042
      %v1594 = vsel %vm1564, %v1561, %v1044
      %v1595 = vsel %vm1564, %v1562, %v1046
      %v1596 = vsel %vm1564, %v1563, %v1048
      %vm1597 = vcmask 162816
      %v1598 = vsel %vm1597, %v1565, %v1082
      %v1599 = vsel %vm1597, %v1566, %v1084
      %v1600 = vsel %vm1597, %v1567, %v1086
      %v1601 = vsel %vm1597, %v1568, %v1088
      %v1602 = vsel %vm1597, %v1569, %v1090
      %v1603 = vsel %vm1597, %v1570, %v1092
      %v1604 = vsel %vm1597, %v1571, %v1094
      %v1605 = vsel %vm1597, %v1572, %v1096
      %v1606 = vsel %vm1597, %v1573, %v1098
      %v1607 = vsel %vm1597, %v1574, %v1100
      %v1608 = vsel %vm1597, %v1575, %v1102
      %v1609 = vsel %vm1597, %v1576, %v1104
      %v1610 = vsel %vm1597, %v1577, %v1106
      %v1611 = vsel %vm1597, %v1578, %v1108
      %v1612 = vsel %vm1597, %v1579, %v1110
      %v1613 = vsel %vm1597, %v1580, %v1112
      %v1614 = vsel %vm1597, %v1581, %v1114
      %v1615 = vsel %vm1597, %v1582, %v1116
      %v1616 = vsel %vm1597, %v1583, %v1118
      %v1617 = vsel %vm1597, %v1584, %v1120
      %v1618 = vsel %vm1597, %v1585, %v1122
      %v1619 = vsel %vm1597, %v1586, %v1124
      %v1620 = vsel %vm1597, %v1587, %v1126
      %v1621 = vsel %vm1597, %v1588, %v1128
      %v1622 = vsel %vm1597, %v1589, %v1130
      %v1623 = vsel %vm1597, %v1590, %v1132
      %v1624 = vsel %vm1597, %v1591, %v1134
      %v1625 = vsel %vm1597, %v1592, %v1136
      %v1626 = vsel %vm1597, %v1593, %v1138
      %v1627 = vsel %vm1597, %v1594, %v1140
      %v1628 = vsel %vm1597, %v1595, %v1142
      %v1629 = vsel %vm1597, %v1596, %v1144
      %vm1630 = vcmask 195584
      %v1631 = vsel %vm1630, %v1598, %v1178
      %v1632 = vsel %vm1630, %v1599, %v1180
      %v1633 = vsel %vm1630, %v1600, %v1182
      %v1634 = vsel %vm1630, %v1601, %v1184
      %v1635 = vsel %vm1630, %v1602, %v1186
      %v1636 = vsel %vm1630, %v1603, %v1188
      %v1637 = vsel %vm1630, %v1604, %v1190
      %v1638 = vsel %vm1630, %v1605, %v1192
      %v1639 = vsel %vm1630, %v1606, %v1194
      %v1640 = vsel %vm1630, %v1607, %v1196
      %v1641 = vsel %vm1630, %v1608, %v1198
      %v1642 = vsel %vm1630, %v1609, %v1200
      %v1643 = vsel %vm1630, %v1610, %v1202
      %v1644 = vsel %vm1630, %v1611, %v1204
      %v1645 = vsel %vm1630, %v1612, %v1206
      %v1646 = vsel %vm1630, %v1613, %v1208
      %v1647 = vsel %vm1630, %v1614, %v1210
      %v1648 = vsel %vm1630, %v1615, %v1212
      %v1649 = vsel %vm1630, %v1616, %v1214
      %v1650 = vsel %vm1630, %v1617, %v1216
      %v1651 = vsel %vm1630, %v1618, %v1218
      %v1652 = vsel %vm1630, %v1619, %v1220
      %v1653 = vsel %vm1630, %v1620, %v1222
      %v1654 = vsel %vm1630, %v1621, %v1224
      %v1655 = vsel %vm1630, %v1622, %v1226
      %v1656 = vsel %vm1630, %v1623, %v1228
      %v1657 = vsel %vm1630, %v1624, %v1230
      %v1658 = vsel %vm1630, %v1625, %v1232
      %v1659 = vsel %vm1630, %v1626, %v1234
      %v1660 = vsel %vm1630, %v1627, %v1236
      %v1661 = vsel %vm1630, %v1628, %v1238
      %v1662 = vsel %vm1630, %v1629, %v1240
      %vm1663 = vcmask 228352
      %v1664 = vsel %vm1663, %v1631, %v1274
      %v1665 = vsel %vm1663, %v1632, %v1276
      %v1666 = vsel %vm1663, %v1633, %v1278
      %v1667 = vsel %vm1663, %v1634, %v1280
      %v1668 = vsel %vm1663, %v1635, %v1282
      %v1669 = vsel %vm1663, %v1636, %v1284
      %v1670 = vsel %vm1663, %v1637, %v1286
      %v1671 = vsel %vm1663, %v1638, %v1288
      %v1672 = vsel %vm1663, %v1639, %v1290
      %v1673 = vsel %vm1663, %v1640, %v1292
      %v1674 = vsel %vm1663, %v1641, %v1294
      %v1675 = vsel %vm1663, %v1642, %v1296
      %v1676 = vsel %vm1663, %v1643, %v1298
      %v1677 = vsel %vm1663, %v1644, %v1300
      %v1678 = vsel %vm1663, %v1645, %v1302
      %v1679 = vsel %vm1663, %v1646, %v1304
      %v1680 = vsel %vm1663, %v1647, %v1306
      %v1681 = vsel %vm1663, %v1648, %v1308
      %v1682 = vsel %vm1663, %v1649, %v1310
      %v1683 = vsel %vm1663, %v1650, %v1312
      %v1684 = vsel %vm1663, %v1651, %v1314
      %v1685 = vsel %vm1663, %v1652, %v1316
      %v1686 = vsel %vm1663, %v1653, %v1318
      %v1687 = vsel %vm1663, %v1654, %v1320
      %v1688 = vsel %vm1663, %v1655, %v1322
      %v1689 = vsel %vm1663, %v1656, %v1324
      %v1690 = vsel %vm1663, %v1657, %v1326
      %v1691 = vsel %vm1663, %v1658, %v1328
      %v1692 = vsel %vm1663, %v1659, %v1330
      %v1693 = vsel %vm1663, %v1660, %v1332
      %v1694 = vsel %vm1663, %v1661, %v1334
      %v1695 = vsel %vm1663, %v1662, %v1336
      %vm1696 = vcmask 261120
      %v1697 = vsel %vm1696, %v1664, %v1370
      %v1698 = vsel %vm1696, %v1665, %v1372
      %v1699 = vsel %vm1696, %v1666, %v1374
      %v1700 = vsel %vm1696, %v1667, %v1376
      %v1701 = vsel %vm1696, %v1668, %v1378
      %v1702 = vsel %vm1696, %v1669, %v1380
      %v1703 = vsel %vm1696, %v1670, %v1382
      %v1704 = vsel %vm1696, %v1671, %v1384
      %v1705 = vsel %vm1696, %v1672, %v1386
      %v1706 = vsel %vm1696, %v1673, %v1388
      %v1707 = vsel %vm1696, %v1674, %v1390
      %v1708 = vsel %vm1696, %v1675, %v1392
      %v1709 = vsel %vm1696, %v1676, %v1394
      %v1710 = vsel %vm1696, %v1677, %v1396
      %v1711 = vsel %vm1696, %v1678, %v1398
      %v1712 = vsel %vm1696, %v1679, %v1400
      %v1713 = vsel %vm1696, %v1680, %v1402
      %v1714 = vsel %vm1696, %v1681, %v1404
      %v1715 = vsel %vm1696, %v1682, %v1406
      %v1716 = vsel %vm1696, %v1683, %v1408
      %v1717 = vsel %vm1696, %v1684, %v1410
      %v1718 = vsel %vm1696, %v1685, %v1412
      %v1719 = vsel %vm1696, %v1686, %v1414
      %v1720 = vsel %vm1696, %v1687, %v1416
      %v1721 = vsel %vm1696, %v1688, %v1418
      %v1722 = vsel %vm1696, %v1689, %v1420
      %v1723 = vsel %vm1696, %v1690, %v1422
      %v1724 = vsel %vm1696, %v1691, %v1424
      %v1725 = vsel %vm1696, %v1692, %v1426
      %v1726 = vsel %vm1696, %v1693, %v1428
      %v1727 = vsel %vm1696, %v1694, %v1430
      %v1728 = vsel %vm1696, %v1695, %v1432
      %v1729 = vld [vmem:[%s1] sm:$0xff]
      %v1730 = vld [vmem:[%s1 + $0x8] sm:$0xff]
      %v1731 = vld [vmem:[%s1 + $0x10] sm:$0xff]
      %v1732 = vld [vmem:[%s1 + $0x18] sm:$0xff]
      %v1733 = vld [vmem:[%s1 + $0x20] sm:$0xf]
      %vm1734 = vcmask 293888
      %v1736 = vsel %vm1734, %v1697, 0
      %v1739 = vsel %vm1734, %v1698, 0
      %v1742 = vsel %vm1734, %v1699, 0
      %v1745 = vsel %vm1734, %v1700, 0
      %v1748 = vsel %vm1734, %v1701, 0
      %v1751 = vsel %vm1734, %v1702, 0
      %v1754 = vsel %vm1734, %v1703, 0
      %v1757 = vsel %vm1734, %v1704, 0
      %v1760 = vsel %vm1734, %v1705, 0
      %v1763 = vsel %vm1734, %v1706, 0
      %v1766 = vsel %vm1734, %v1707, 0
      %v1769 = vsel %vm1734, %v1708, 0
      %v1772 = vsel %vm1734, %v1709, 0
      %v1775 = vsel %vm1734, %v1710, 0
      %v1778 = vsel %vm1734, %v1711, 0
      %v1781 = vsel %vm1734, %v1712, 0
      %v1784 = vsel %vm1734, %v1713, 0
      %v1787 = vsel %vm1734, %v1714, 0
      %v1790 = vsel %vm1734, %v1715, 0
      %v1793 = vsel %vm1734, %v1716, 0
      %v1796 = vsel %vm1734, %v1717, 0
      %v1799 = vsel %vm1734, %v1718, 0
      %v1802 = vsel %vm1734, %v1719, 0
      %v1805 = vsel %vm1734, %v1720, 0
      %v1808 = vsel %vm1734, %v1721, 0
      %v1811 = vsel %vm1734, %v1722, 0
      %v1814 = vsel %vm1734, %v1723, 0
      %v1817 = vsel %vm1734, %v1724, 0
      %v1820 = vsel %vm1734, %v1725, 0
      %v1823 = vsel %vm1734, %v1726, 0
      %v1826 = vsel %vm1734, %v1727, 0
      %v1829 = vsel %vm1734, %v1728, 0
      %vm1831 = vcmask 1043456
      %v1833 = vsel %vm1831, %v1733, 0
      %1835 = vmatprep.subr.mxu0 0.0
      %1836 = vmatpush1.msra.mxu0 %v1729
      %1837 = vmatprep.subr.mxu0 0.0
      %1838 = vmatpush1.msra.mxu0 %v1730
      %1839 = vmatprep.subr.mxu0 0.0
      %1840 = vmatpush1.msra.mxu0 %v1731
      %1841 = vmatprep.subr.mxu0 0.0
      %1842 = vmatpush1.msra.mxu0 %v1732
      %1843 = vmatprep.subr.mxu0 0.0
      %1844 = vmatpush1.msra.mxu0 %v1833
      %1845 = vmatprep.subr.mxu0 0.0
      %1846 = vmatpush1.msra.mxu0 0.0
      %1847 = vmatprep.subr.mxu0 0.0
      %1848 = vmatpush1.msra.mxu0 0.0
      %1849 = vmatprep.subr.mxu0 0.0
      %1850 = vmatpush1.msra.mxu0 0.0
      %1851 = vmatprep.subr.mxu0 0.0
      %1852 = vmatpush1.msra.mxu0 0.0
      %1853 = vmatprep.subr.mxu0 0.0
      %1854 = vmatpush1.msra.mxu0 0.0
      %1855 = vmatprep.subr.mxu0 0.0
      %1856 = vmatpush1.msra.mxu0 0.0
      %1857 = vmatprep.subr.mxu0 0.0
      %1858 = vmatpush1.msra.mxu0 0.0
      %1859 = vmatprep.subr.mxu0 0.0
      %1860 = vmatpush1.msra.mxu0 0.0
      %1861 = vmatprep.subr.mxu0 0.0
      %1862 = vmatpush1.msra.mxu0 0.0
      %1863 = vmatprep.subr.mxu0 0.0
      %1864 = vmatpush1.msra.mxu0 0.0
      %1865 = vmatprep.subr.mxu0 0.0
      %1866 = vmatpush1.msra.mxu0 0.0
      %1867 = vmatprep.subr.mxu0 0.0
      %1868 = vmatpush1.msra.mxu0 0.0
      %1869 = vmatprep.subr.mxu0 0.0
      %1870 = vmatpush1.msra.mxu0 0.0
      %1871 = vmatprep.subr.mxu0 0.0
      %1872 = vmatpush1.msra.mxu0 0.0
      %1873 = vmatprep.subr.mxu0 0.0
      %1874 = vmatpush1.msra.mxu0 0.0
      %1875 = vmatprep.subr.mxu0 0.0
      %1876 = vmatpush1.msra.mxu0 0.0
      %1877 = vmatprep.subr.mxu0 0.0
      %1878 = vmatpush1.msra.mxu0 0.0
      %1879 = vmatprep.subr.mxu0 0.0
      %1880 = vmatpush1.msra.mxu0 0.0
      %1881 = vmatprep.subr.mxu0 0.0
      %1882 = vmatpush1.msra.mxu0 0.0
      %1883 = vmatprep.subr.mxu0 0.0
      %1884 = vmatpush1.msra.mxu0 0.0
      %1885 = vmatprep.subr.mxu0 0.0
      %1886 = vmatpush1.msra.mxu0 0.0
      %1887 = vmatprep.subr.mxu0 0.0
      %1888 = vmatpush1.msra.mxu0 0.0
      %1889 = vmatprep.subr.mxu0 0.0
      %1890 = vmatpush1.msra.mxu0 0.0
      %1891 = vmatprep.subr.mxu0 0.0
      %1892 = vmatpush1.msra.mxu0 0.0
      %1893 = vmatprep.subr.mxu0 0.0
      %1894 = vmatpush1.msra.mxu0 0.0
      %1895 = vmatprep.subr.mxu0 0.0
      %1896 = vmatpush1.msra.mxu0 0.0
      %1897 = vmatprep.subr.mxu0 0.0
      %1898 = vmatpush1.msra.mxu0 0.0
      %1899 = vmatprep.mubr.f32.mxu0 0.0
      %1900 = vmatmul.mubr.f32.gmra.mrb[0].mxu0 %v1736
      %v1901 = vpop.f32.mrb[0].mxu0
      %v1902 = vadd.f32 0.0, %v1901
      %v1903 = vpop.f32.mrb[0].mxu0
      %1904 = vmatprep.mubr.f32.mxu0 0.0
      %1905 = vmatmul.mubr.f32.gmra.mrb[0].mxu0 %v1739
      %v1906 = vpop.f32.mrb[0].mxu0
      %v1907 = vadd.f32 0.0, %v1906
      %v1908 = vpop.f32.mrb[0].mxu0
      %1909 = vmatprep.mubr.f32.mxu0 0.0
      %1910 = vmatmul.mubr.f32.gmra.mrb[0].mxu0 %v1742
      %v1911 = vpop.f32.mrb[0].mxu0
      %v1912 = vpop.f32.mrb[0].mxu0
      %1913 = vmatprep.mubr.f32.mxu0 0.0
      %1914 = vmatmul.mubr.f32.gmra.mrb[0].mxu0 %v1745
      %v1915 = vpop.f32.mrb[0].mxu0
      %v1916 = vpop.f32.mrb[0].mxu0
      %1917 = vmatprep.mubr.f32.mxu0 0.0
      %1918 = vmatmul.mubr.f32.gmra.mrb[0].mxu0 %v1748
      %v1919 = vpop.f32.mrb[0].mxu0
      %v1920 = vadd.f32 0.0, %v1919
      %v1921 = vpop.f32.mrb[0].mxu0
      %1922 = vmatprep.mubr.f32.mxu0 0.0
      %1923 = vmatmul.mubr.f32.gmra.mrb[0].mxu0 %v1751
      %v1924 = vpop.f32.mrb[0].mxu0
      %v1925 = vadd.f32 0.0, %v1924
      %v1926 = vpop.f32.mrb[0].mxu0
      %1927 = vmatprep.mubr.f32.mxu0 0.0
      %1928 = vmatmul.mubr.f32.gmra.mrb[0].mxu0 %v1754
      %v1929 = vpop.f32.mrb[0].mxu0
      %v1930 = vpop.f32.mrb[0].mxu0
      %1931 = vmatprep.mubr.f32.mxu0 0.0
      %1932 = vmatmul.mubr.f32.gmra.mrb[0].mxu0 %v1757
      %v1933 = vpop.f32.mrb[0].mxu0
      %v1934 = vpop.f32.mrb[0].mxu0
      %1935 = vmatprep.mubr.f32.mxu0 0.0
      %1936 = vmatmul.mubr.f32.gmra.mrb[0].mxu0 %v1760
      %v1937 = vpop.f32.mrb[0].mxu0
      %v1938 = vadd.f32 0.0, %v1937
      %v1939 = vpop.f32.mrb[0].mxu0
      %1940 = vmatprep.mubr.f32.mxu0 0.0
      %1941 = vmatmul.mubr.f32.gmra.mrb[0].mxu0 %v1763
      %v1942 = vpop.f32.mrb[0].mxu0
      %v1943 = vadd.f32 0.0, %v1942
      %v1944 = vpop.f32.mrb[0].mxu0
      %1945 = vmatprep.mubr.f32.mxu0 0.0
      %1946 = vmatmul.mubr.f32.gmra.mrb[0].mxu0 %v1766
      %v1947 = vpop.f32.mrb[0].mxu0
      %v1948 = vpop.f32.mrb[0].mxu0
      %1949 = vmatprep.mubr.f32.mxu0 0.0
      %1950 = vmatmul.mubr.f32.gmra.mrb[0].mxu0 %v1769
      %v1951 = vpop.f32.mrb[0].mxu0
      %v1952 = vpop.f32.mrb[0].mxu0
      %1953 = vmatprep.mubr.f32.mxu0 0.0
      %1954 = vmatmul.mubr.f32.gmra.mrb[0].mxu0 %v1772
      %v1955 = vpop.f32.mrb[0].mxu0
      %v1956 = vadd.f32 0.0, %v1955
      %v1957 = vpop.f32.mrb[0].mxu0
      %1958 = vmatprep.mubr.f32.mxu0 0.0
      %1959 = vmatmul.mubr.f32.gmra.mrb[0].mxu0 %v1775
      %v1960 = vpop.f32.mrb[0].mxu0
      %v1961 = vadd.f32 0.0, %v1960
      %v1962 = vpop.f32.mrb[0].mxu0
      %1963 = vmatprep.mubr.f32.mxu0 0.0
      %1964 = vmatmul.mubr.f32.gmra.mrb[0].mxu0 %v1778
      %v1965 = vpop.f32.mrb[0].mxu0
      %v1966 = vpop.f32.mrb[0].mxu0
      %1967 = vmatprep.mubr.f32.mxu0 0.0
      %1968 = vmatmul.mubr.f32.gmra.mrb[0].mxu0 %v1781
      %v1969 = vpop.f32.mrb[0].mxu0
      %v1970 = vpop.f32.mrb[0].mxu0
      %1971 = vmatprep.mubr.f32.mxu0 0.0
      %1972 = vmatmul.mubr.f32.gmra.mrb[0].mxu0 %v1784
      %v1973 = vpop.f32.mrb[0].mxu0
      %v1974 = vadd.f32 0.0, %v1973
      %v1975 = vpop.f32.mrb[0].mxu0
      %1976 = vmatprep.mubr.f32.mxu0 0.0
      %1977 = vmatmul.mubr.f32.gmra.mrb[0].mxu0 %v1787
      %v1978 = vpop.f32.mrb[0].mxu0
      %v1979 = vadd.f32 0.0, %v1978
      %v1980 = vpop.f32.mrb[0].mxu0
      %1981 = vmatprep.mubr.f32.mxu0 0.0
      %1982 = vmatmul.mubr.f32.gmra.mrb[0].mxu0 %v1790
      %v1983 = vpop.f32.mrb[0].mxu0
      %v1984 = vpop.f32.mrb[0].mxu0
      %1985 = vmatprep.mubr.f32.mxu0 0.0
      %1986 = vmatmul.mubr.f32.gmra.mrb[0].mxu0 %v1793
      %v1987 = vpop.f32.mrb[0].mxu0
      %v1988 = vpop.f32.mrb[0].mxu0
      %1989 = vmatprep.mubr.f32.mxu0 0.0
      %1990 = vmatmul.mubr.f32.gmra.mrb[0].mxu0 %v1796
      %v1991 = vpop.f32.mrb[0].mxu0
      %v1992 = vadd.f32 0.0, %v1991
      %v1993 = vpop.f32.mrb[0].mxu0
      %1994 = vmatprep.mubr.f32.mxu0 0.0
      %1995 = vmatmul.mubr.f32.gmra.mrb[0].mxu0 %v1799
      %v1996 = vpop.f32.mrb[0].mxu0
      %v1997 = vadd.f32 0.0, %v1996
      %v1998 = vpop.f32.mrb[0].mxu0
      %1999 = vmatprep.mubr.f32.mxu0 0.0
      %2000 = vmatmul.mubr.f32.gmra.mrb[0].mxu0 %v1802
      %v2001 = vpop.f32.mrb[0].mxu0
      %v2002 = vpop.f32.mrb[0].mxu0
      %2003 = vmatprep.mubr.f32.mxu0 0.0
      %2004 = vmatmul.mubr.f32.gmra.mrb[0].mxu0 %v1805
      %v2005 = vpop.f32.mrb[0].mxu0
      %v2006 = vpop.f32.mrb[0].mxu0
      %2007 = vmatprep.mubr.f32.mxu0 0.0
      %2008 = vmatmul.mubr.f32.gmra.mrb[0].mxu0 %v1808
      %v2009 = vpop.f32.mrb[0].mxu0
      %v2010 = vadd.f32 0.0, %v2009
      %v2011 = vpop.f32.mrb[0].mxu0
      %2012 = vmatprep.mubr.f32.mxu0 0.0
      %2013 = vmatmul.mubr.f32.gmra.mrb[0].mxu0 %v1811
      %v2014 = vpop.f32.mrb[0].mxu0
      %v2015 = vadd.f32 0.0, %v2014
      %v2016 = vpop.f32.mrb[0].mxu0
      %2017 = vmatprep.mubr.f32.mxu0 0.0
      %2018 = vmatmul.mubr.f32.gmra.mrb[0].mxu0 %v1814
      %v2019 = vpop.f32.mrb[0].mxu0
      %v2020 = vpop.f32.mrb[0].mxu0
      %2021 = vmatprep.mubr.f32.mxu0 0.0
      %2022 = vmatmul.mubr.f32.gmra.mrb[0].mxu0 %v1817
      %v2023 = vpop.f32.mrb[0].mxu0
      %v2024 = vpop.f32.mrb[0].mxu0
      %2025 = vmatprep.mubr.f32.mxu0 0.0
      %2026 = vmatmul.mubr.f32.gmra.mrb[0].mxu0 %v1820
      %v2027 = vpop.f32.mrb[0].mxu0
      %v2028 = vadd.f32 0.0, %v2027
      %v2029 = vpop.f32.mrb[0].mxu0
      %2030 = vmatprep.mubr.f32.mxu0 0.0
      %2031 = vmatmul.mubr.f32.gmra.mrb[0].mxu0 %v1823
      %v2032 = vpop.f32.mrb[0].mxu0
      %v2033 = vadd.f32 0.0, %v2032
      %v2034 = vpop.f32.mrb[0].mxu0
      %2035 = vmatprep.mubr.f32.mxu0 0.0
      %2036 = vmatmul.mubr.f32.gmra.mrb[0].mxu0 %v1826
      %v2037 = vpop.f32.mrb[0].mxu0
      %v2038 = vpop.f32.mrb[0].mxu0
      %2039 = vmatprep.mubr.f32.mxu0 0.0
      %2040 = vmatmul.mubr.f32.gmra.mrb[0].mxu0 %v1829
      %v2041 = vpop.f32.mrb[0].mxu0
      %v2042 = vpop.f32.mrb[0].mxu0
      %2043 = vdwg.mxu0
      %v2044 = vld [vmem:[%s2] sm:$0x1]
      %v2046 = vlaneseq
      %v2047 = vshrl.u32 %v2046, 7
      %v2048 = vsub.s32 0, %v2047
      %v2049 = vrot.slane %v2044, %v2048
      %v2051 = vmul.f32 %v1902, %v2049
      %v2052 = vmul.f32 %v1907, %v2049
      %v2053 = vmul.f32 %v1920, %v2049
      %v2054 = vmul.f32 %v1925, %v2049
      %v2055 = vmul.f32 %v1938, %v2049
      %v2056 = vmul.f32 %v1943, %v2049
      %v2057 = vmul.f32 %v1956, %v2049
      %v2058 = vmul.f32 %v1961, %v2049
      %v2059 = vmul.f32 %v1974, %v2049
      %v2060 = vmul.f32 %v1979, %v2049
      %v2061 = vmul.f32 %v1992, %v2049
      %v2062 = vmul.f32 %v1997, %v2049
      %v2063 = vmul.f32 %v2010, %v2049
      %v2064 = vmul.f32 %v2015, %v2049
      %v2065 = vmul.f32 %v2028, %v2049
      %v2066 = vmul.f32 %v2033, %v2049
      %v2067 = vld [vmem:[%s3] sm:$0x1]
      %v2069 = vlaneseq
      %v2070 = vshrl.u32 %v2069, 7
      %v2071 = vsub.s32 0, %v2070
      %v2072 = vrot.slane %v2067, %v2071
      %v2074 = vadd.f32 %v2051, %v2072
      %v2075 = vadd.f32 %v2052, %v2072
      %v2076 = vadd.f32 %v2053, %v2072
      %v2077 = vadd.f32 %v2054, %v2072
      %v2078 = vadd.f32 %v2055, %v2072
      %v2079 = vadd.f32 %v2056, %v2072
      %v2080 = vadd.f32 %v2057, %v2072
      %v2081 = vadd.f32 %v2058, %v2072
      %v2082 = vadd.f32 %v2059, %v2072
      %v2083 = vadd.f32 %v2060, %v2072
      %v2084 = vadd.f32 %v2061, %v2072
      %v2085 = vadd.f32 %v2062, %v2072
      %v2086 = vadd.f32 %v2063, %v2072
      %v2087 = vadd.f32 %v2064, %v2072
      %v2088 = vadd.f32 %v2065, %v2072
      %v2089 = vadd.f32 %v2066, %v2072
      %v2090 = vmax.f32 %v2074, 0.0
      %v2091 = vmax.f32 %v2075, 0.0
      %v2092 = vmax.f32 %v2076, 0.0
      %v2093 = vmax.f32 %v2077, 0.0
      %v2094 = vmax.f32 %v2078, 0.0
      %v2095 = vmax.f32 %v2079, 0.0
      %v2096 = vmax.f32 %v2080, 0.0
      %v2097 = vmax.f32 %v2081, 0.0
      %v2098 = vmax.f32 %v2082, 0.0
      %v2099 = vmax.f32 %v2083, 0.0
      %v2100 = vmax.f32 %v2084, 0.0
      %v2101 = vmax.f32 %v2085, 0.0
      %v2102 = vmax.f32 %v2086, 0.0
      %v2103 = vmax.f32 %v2087, 0.0
      %v2104 = vmax.f32 %v2088, 0.0
      %v2105 = vmax.f32 %v2089, 0.0
      %v2122 = vcombine.high %v2090, %v2090
      %v2124 = vunpack.c.l.s4 1983009808
      %v2125 = vunpack.c.0.s8 %v2124
      %v2126 = vlaneseq
      %v2127 = vshrl.u32 %v2126, 7
      %v2128 = vsub.s32 %v2125, %v2127
      %v2129 = vrot.slane %v2090, %v2128
      %v2131 = vunpack.c.l.s4 1983009808
      %v2132 = vunpack.c.0.s8 %v2131
      %v2133 = vlaneseq
      %v2134 = vshrl.u32 %v2133, 7
      %v2135 = vsub.s32 %v2132, %v2134
      %v2136 = vrot.slane %v2122, %v2135
      %v2137 = vcombine.high %v2129, %v2129
      %v2138 = vcombine.high %v2136, %v2136
      %v2139 = vcombine.high %v2091, %v2091
      %v2141 = vunpack.c.l.s4 1983009808
      %v2142 = vunpack.c.0.s8 %v2141
      %v2143 = vlaneseq
      %v2144 = vshrl.u32 %v2143, 7
      %v2145 = vsub.s32 %v2142, %v2144
      %v2146 = vrot.slane %v2091, %v2145
      %v2148 = vunpack.c.l.s4 1983009808
      %v2149 = vunpack.c.0.s8 %v2148
      %v2150 = vlaneseq
      %v2151 = vshrl.u32 %v2150, 7
      %v2152 = vsub.s32 %v2149, %v2151
      %v2153 = vrot.slane %v2139, %v2152
      %v2154 = vcombine.high %v2146, %v2146
      %v2155 = vcombine.high %v2153, %v2153
      %v2156 = vcombine.high %v2092, %v2092
      %v2158 = vunpack.c.l.s4 1983009808
      %v2159 = vunpack.c.0.s8 %v2158
      %v2160 = vlaneseq
      %v2161 = vshrl.u32 %v2160, 7
      %v2162 = vsub.s32 %v2159, %v2161
      %v2163 = vrot.slane %v2092, %v2162
      %v2165 = vunpack.c.l.s4 1983009808
      %v2166 = vunpack.c.0.s8 %v2165
      %v2167 = vlaneseq
      %v2168 = vshrl.u32 %v2167, 7
      %v2169 = vsub.s32 %v2166, %v2168
      %v2170 = vrot.slane %v2156, %v2169
      %v2171 = vcombine.high %v2163, %v2163
      %v2172 = vcombine.high %v2170, %v2170
      %v2173 = vcombine.high %v2093, %v2093
      %v2175 = vunpack.c.l.s4 1983009808
      %v2176 = vunpack.c.0.s8 %v2175
      %v2177 = vlaneseq
      %v2178 = vshrl.u32 %v2177, 7
      %v2179 = vsub.s32 %v2176, %v2178
      %v2180 = vrot.slane %v2093, %v2179
      %v2182 = vunpack.c.l.s4 1983009808
      %v2183 = vunpack.c.0.s8 %v2182
      %v2184 = vlaneseq
      %v2185 = vshrl.u32 %v2184, 7
      %v2186 = vsub.s32 %v2183, %v2185
      %v2187 = vrot.slane %v2173, %v2186
      %v2188 = vcombine.high %v2180, %v2180
      %v2189 = vcombine.high %v2187, %v2187
      %v2190 = vcombine.high %v2094, %v2094
      %v2192 = vunpack.c.l.s4 1983009808
      %v2193 = vunpack.c.0.s8 %v2192
      %v2194 = vlaneseq
      %v2195 = vshrl.u32 %v2194, 7
      %v2196 = vsub.s32 %v2193, %v2195
      %v2197 = vrot.slane %v2094, %v2196
      %v2199 = vunpack.c.l.s4 1983009808
      %v2200 = vunpack.c.0.s8 %v2199
      %v2201 = vlaneseq
      %v2202 = vshrl.u32 %v2201, 7
      %v2203 = vsub.s32 %v2200, %v2202
      %v2204 = vrot.slane %v2190, %v2203
      %v2205 = vcombine.high %v2197, %v2197
      %v2206 = vcombine.high %v2204, %v2204
      %v2207 = vcombine.high %v2095, %v2095
      %v2209 = vunpack.c.l.s4 1983009808
      %v2210 = vunpack.c.0.s8 %v2209
      %v2211 = vlaneseq
      %v2212 = vshrl.u32 %v2211, 7
      %v2213 = vsub.s32 %v2210, %v2212
      %v2214 = vrot.slane %v2095, %v2213
      %v2216 = vunpack.c.l.s4 1983009808
      %v2217 = vunpack.c.0.s8 %v2216
      %v2218 = vlaneseq
      %v2219 = vshrl.u32 %v2218, 7
      %v2220 = vsub.s32 %v2217, %v2219
      %v2221 = vrot.slane %v2207, %v2220
      %v2222 = vcombine.high %v2214, %v2214
      %v2223 = vcombine.high %v2221, %v2221
      %v2224 = vcombine.high %v2096, %v2096
      %v2226 = vunpack.c.l.s4 1983009808
      %v2227 = vunpack.c.0.s8 %v2226
      %v2228 = vlaneseq
      %v2229 = vshrl.u32 %v2228, 7
      %v2230 = vsub.s32 %v2227, %v2229
      %v2231 = vrot.slane %v2096, %v2230
      %v2233 = vunpack.c.l.s4 1983009808
      %v2234 = vunpack.c.0.s8 %v2233
      %v2235 = vlaneseq
      %v2236 = vshrl.u32 %v2235, 7
      %v2237 = vsub.s32 %v2234, %v2236
      %v2238 = vrot.slane %v2224, %v2237
      %v2239 = vcombine.high %v2231, %v2231
      %v2240 = vcombine.high %v2238, %v2238
      %v2241 = vcombine.high %v2097, %v2097
      %v2243 = vunpack.c.l.s4 1983009808
      %v2244 = vunpack.c.0.s8 %v2243
      %v2245 = vlaneseq
      %v2246 = vshrl.u32 %v2245, 7
      %v2247 = vsub.s32 %v2244, %v2246
      %v2248 = vrot.slane %v2097, %v2247
      %v2250 = vunpack.c.l.s4 1983009808
      %v2251 = vunpack.c.0.s8 %v2250
      %v2252 = vlaneseq
      %v2253 = vshrl.u32 %v2252, 7
      %v2254 = vsub.s32 %v2251, %v2253
      %v2255 = vrot.slane %v2241, %v2254
      %v2256 = vcombine.high %v2248, %v2248
      %v2257 = vcombine.high %v2255, %v2255
      %v2258 = vcombine.high %v2098, %v2098
      %v2260 = vunpack.c.l.s4 1983009808
      %v2261 = vunpack.c.0.s8 %v2260
      %v2262 = vlaneseq
      %v2263 = vshrl.u32 %v2262, 7
      %v2264 = vsub.s32 %v2261, %v2263
      %v2265 = vrot.slane %v2098, %v2264
      %v2267 = vunpack.c.l.s4 1983009808
      %v2268 = vunpack.c.0.s8 %v2267
      %v2269 = vlaneseq
      %v2270 = vshrl.u32 %v2269, 7
      %v2271 = vsub.s32 %v2268, %v2270
      %v2272 = vrot.slane %v2258, %v2271
      %v2273 = vcombine.high %v2265, %v2265
      %v2274 = vcombine.high %v2272, %v2272
      %v2275 = vcombine.high %v2099, %v2099
      %v2277 = vunpack.c.l.s4 1983009808
      %v2278 = vunpack.c.0.s8 %v2277
      %v2279 = vlaneseq
      %v2280 = vshrl.u32 %v2279, 7
      %v2281 = vsub.s32 %v2278, %v2280
      %v2282 = vrot.slane %v2099, %v2281
      %v2284 = vunpack.c.l.s4 1983009808
      %v2285 = vunpack.c.0.s8 %v2284
      %v2286 = vlaneseq
      %v2287 = vshrl.u32 %v2286, 7
      %v2288 = vsub.s32 %v2285, %v2287
      %v2289 = vrot.slane %v2275, %v2288
      %v2290 = vcombine.high %v2282, %v2282
      %v2291 = vcombine.high %v2289, %v2289
      %v2292 = vcombine.high %v2100, %v2100
      %v2294 = vunpack.c.l.s4 1983009808
      %v2295 = vunpack.c.0.s8 %v2294
      %v2296 = vlaneseq
      %v2297 = vshrl.u32 %v2296, 7
      %v2298 = vsub.s32 %v2295, %v2297
      %v2299 = vrot.slane %v2100, %v2298
      %v2301 = vunpack.c.l.s4 1983009808
      %v2302 = vunpack.c.0.s8 %v2301
      %v2303 = vlaneseq
      %v2304 = vshrl.u32 %v2303, 7
      %v2305 = vsub.s32 %v2302, %v2304
      %v2306 = vrot.slane %v2292, %v2305
      %v2307 = vcombine.high %v2299, %v2299
      %v2308 = vcombine.high %v2306, %v2306
      %v2309 = vcombine.high %v2101, %v2101
      %v2311 = vunpack.c.l.s4 1983009808
      %v2312 = vunpack.c.0.s8 %v2311
      %v2313 = vlaneseq
      %v2314 = vshrl.u32 %v2313, 7
      %v2315 = vsub.s32 %v2312, %v2314
      %v2316 = vrot.slane %v2101, %v2315
      %v2318 = vunpack.c.l.s4 1983009808
      %v2319 = vunpack.c.0.s8 %v2318
      %v2320 = vlaneseq
      %v2321 = vshrl.u32 %v2320, 7
      %v2322 = vsub.s32 %v2319, %v2321
      %v2323 = vrot.slane %v2309, %v2322
      %v2324 = vcombine.high %v2316, %v2316
      %v2325 = vcombine.high %v2323, %v2323
      %v2326 = vcombine.high %v2102, %v2102
      %v2328 = vunpack.c.l.s4 1983009808
      %v2329 = vunpack.c.0.s8 %v2328
      %v2330 = vlaneseq
      %v2331 = vshrl.u32 %v2330, 7
      %v2332 = vsub.s32 %v2329, %v2331
      %v2333 = vrot.slane %v2102, %v2332
      %v2335 = vunpack.c.l.s4 1983009808
      %v2336 = vunpack.c.0.s8 %v2335
      %v2337 = vlaneseq
      %v2338 = vshrl.u32 %v2337, 7
      %v2339 = vsub.s32 %v2336, %v2338
      %v2340 = vrot.slane %v2326, %v2339
      %v2341 = vcombine.high %v2333, %v2333
      %v2342 = vcombine.high %v2340, %v2340
      %v2343 = vcombine.high %v2103, %v2103
      %v2345 = vunpack.c.l.s4 1983009808
      %v2346 = vunpack.c.0.s8 %v2345
      %v2347 = vlaneseq
      %v2348 = vshrl.u32 %v2347, 7
      %v2349 = vsub.s32 %v2346, %v2348
      %v2350 = vrot.slane %v2103, %v2349
      %v2352 = vunpack.c.l.s4 1983009808
      %v2353 = vunpack.c.0.s8 %v2352
      %v2354 = vlaneseq
      %v2355 = vshrl.u32 %v2354, 7
      %v2356 = vsub.s32 %v2353, %v2355
      %v2357 = vrot.slane %v2343, %v2356
      %v2358 = vcombine.high %v2350, %v2350
      %v2359 = vcombine.high %v2357, %v2357
      %v2360 = vcombine.high %v2104, %v2104
      %v2362 = vunpack.c.l.s4 1983009808
      %v2363 = vunpack.c.0.s8 %v2362
      %v2364 = vlaneseq
      %v2365 = vshrl.u32 %v2364, 7
      %v2366 = vsub.s32 %v2363, %v2365
      %v2367 = vrot.slane %v2104, %v2366
      %v2369 = vunpack.c.l.s4 1983009808
      %v2370 = vunpack.c.0.s8 %v2369
      %v2371 = vlaneseq
      %v2372 = vshrl.u32 %v2371, 7
      %v2373 = vsub.s32 %v2370, %v2372
      %v2374 = vrot.slane %v2360, %v2373
      %v2375 = vcombine.high %v2367, %v2367
      %v2376 = vcombine.high %v2374, %v2374
      %v2377 = vcombine.high %v2105, %v2105
      %v2379 = vunpack.c.l.s4 1983009808
      %v2380 = vunpack.c.0.s8 %v2379
      %v2381 = vlaneseq
      %v2382 = vshrl.u32 %v2381, 7
      %v2383 = vsub.s32 %v2380, %v2382
      %v2384 = vrot.slane %v2105, %v2383
      %v2386 = vunpack.c.l.s4 1983009808
      %v2387 = vunpack.c.0.s8 %v2386
      %v2388 = vlaneseq
      %v2389 = vshrl.u32 %v2388, 7
      %v2390 = vsub.s32 %v2387, %v2389
      %v2391 = vrot.slane %v2377, %v2390
      %v2392 = vcombine.high %v2384, %v2384
      %v2393 = vcombine.high %v2391, %v2391
      %v2394 = vlaneseq
      %v2395 = vshrl.u32 %v2394, 7
      %v2396 = vsub.s32 0, %v2395
      %v2397 = vrot.slane %v2129, %v2396
      %v2398 = vlaneseq
      %v2399 = vshrl.u32 %v2398, 7
      %v2400 = vsub.s32 0, %v2399
      %v2401 = vrot.slane %v2137, %v2400
      %v2402 = vlaneseq
      %v2403 = vshrl.u32 %v2402, 7
      %v2404 = vsub.s32 0, %v2403
      %v2405 = vrot.slane %v2136, %v2404
      %v2406 = vlaneseq
      %v2407 = vshrl.u32 %v2406, 7
      %v2408 = vsub.s32 0, %v2407
      %v2409 = vrot.slane %v2138, %v2408
      %v2410 = vlaneseq
      %v2411 = vshrl.u32 %v2410, 7
      %v2412 = vsub.s32 0, %v2411
      %v2413 = vrot.slane %v2146, %v2412
      %v2414 = vlaneseq
      %v2415 = vshrl.u32 %v2414, 7
      %v2416 = vsub.s32 0, %v2415
      %v2417 = vrot.slane %v2154, %v2416
      %v2418 = vlaneseq
      %v2419 = vshrl.u32 %v2418, 7
      %v2420 = vsub.s32 0, %v2419
      %v2421 = vrot.slane %v2153, %v2420
      %v2422 = vlaneseq
      %v2423 = vshrl.u32 %v2422, 7
      %v2424 = vsub.s32 0, %v2423
      %v2425 = vrot.slane %v2155, %v2424
      %v2426 = vlaneseq
      %v2427 = vshrl.u32 %v2426, 7
      %v2428 = vsub.s32 0, %v2427
      %v2429 = vrot.slane %v2163, %v2428
      %v2430 = vlaneseq
      %v2431 = vshrl.u32 %v2430, 7
      %v2432 = vsub.s32 0, %v2431
      %v2433 = vrot.slane %v2171, %v2432
      %v2434 = vlaneseq
      %v2435 = vshrl.u32 %v2434, 7
      %v2436 = vsub.s32 0, %v2435
      %v2437 = vrot.slane %v2170, %v2436
      %v2438 = vlaneseq
      %v2439 = vshrl.u32 %v2438, 7
      %v2440 = vsub.s32 0, %v2439
      %v2441 = vrot.slane %v2172, %v2440
      %v2442 = vlaneseq
      %v2443 = vshrl.u32 %v2442, 7
      %v2444 = vsub.s32 0, %v2443
      %v2445 = vrot.slane %v2180, %v2444
      %v2446 = vlaneseq
      %v2447 = vshrl.u32 %v2446, 7
      %v2448 = vsub.s32 0, %v2447
      %v2449 = vrot.slane %v2188, %v2448
      %v2450 = vlaneseq
      %v2451 = vshrl.u32 %v2450, 7
      %v2452 = vsub.s32 0, %v2451
      %v2453 = vrot.slane %v2187, %v2452
      %v2454 = vlaneseq
      %v2455 = vshrl.u32 %v2454, 7
      %v2456 = vsub.s32 0, %v2455
      %v2457 = vrot.slane %v2189, %v2456
      %v2458 = vlaneseq
      %v2459 = vshrl.u32 %v2458, 7
      %v2460 = vsub.s32 0, %v2459
      %v2461 = vrot.slane %v2197, %v2460
      %v2462 = vlaneseq
      %v2463 = vshrl.u32 %v2462, 7
      %v2464 = vsub.s32 0, %v2463
      %v2465 = vrot.slane %v2205, %v2464
      %v2466 = vlaneseq
      %v2467 = vshrl.u32 %v2466, 7
      %v2468 = vsub.s32 0, %v2467
      %v2469 = vrot.slane %v2204, %v2468
      %v2470 = vlaneseq
      %v2471 = vshrl.u32 %v2470, 7
      %v2472 = vsub.s32 0, %v2471
      %v2473 = vrot.slane %v2206, %v2472
      %v2474 = vlaneseq
      %v2475 = vshrl.u32 %v2474, 7
      %v2476 = vsub.s32 0, %v2475
      %v2477 = vrot.slane %v2214, %v2476
      %v2478 = vlaneseq
      %v2479 = vshrl.u32 %v2478, 7
      %v2480 = vsub.s32 0, %v2479
      %v2481 = vrot.slane %v2222, %v2480
      %v2482 = vlaneseq
      %v2483 = vshrl.u32 %v2482, 7
      %v2484 = vsub.s32 0, %v2483
      %v2485 = vrot.slane %v2221, %v2484
      %v2486 = vlaneseq
      %v2487 = vshrl.u32 %v2486, 7
      %v2488 = vsub.s32 0, %v2487
      %v2489 = vrot.slane %v2223, %v2488
      %v2490 = vlaneseq
      %v2491 = vshrl.u32 %v2490, 7
      %v2492 = vsub.s32 0, %v2491
      %v2493 = vrot.slane %v2231, %v2492
      %v2494 = vlaneseq
      %v2495 = vshrl.u32 %v2494, 7
      %v2496 = vsub.s32 0, %v2495
      %v2497 = vrot.slane %v2239, %v2496
      %v2498 = vlaneseq
      %v2499 = vshrl.u32 %v2498, 7
      %v2500 = vsub.s32 0, %v2499
      %v2501 = vrot.slane %v2238, %v2500
      %v2502 = vlaneseq
      %v2503 = vshrl.u32 %v2502, 7
      %v2504 = vsub.s32 0, %v2503
      %v2505 = vrot.slane %v2240, %v2504
      %v2506 = vlaneseq
      %v2507 = vshrl.u32 %v2506, 7
      %v2508 = vsub.s32 0, %v2507
      %v2509 = vrot.slane %v2248, %v2508
      %v2510 = vlaneseq
      %v2511 = vshrl.u32 %v2510, 7
      %v2512 = vsub.s32 0, %v2511
      %v2513 = vrot.slane %v2256, %v2512
      %v2514 = vlaneseq
      %v2515 = vshrl.u32 %v2514, 7
      %v2516 = vsub.s32 0, %v2515
      %v2517 = vrot.slane %v2255, %v2516
      %v2518 = vlaneseq
      %v2519 = vshrl.u32 %v2518, 7
      %v2520 = vsub.s32 0, %v2519
      %v2521 = vrot.slane %v2257, %v2520
      %v2522 = vlaneseq
      %v2523 = vshrl.u32 %v2522, 7
      %v2524 = vsub.s32 0, %v2523
      %v2525 = vrot.slane %v2265, %v2524
      %v2526 = vlaneseq
      %v2527 = vshrl.u32 %v2526, 7
      %v2528 = vsub.s32 0, %v2527
      %v2529 = vrot.slane %v2273, %v2528
      %v2530 = vlaneseq
      %v2531 = vshrl.u32 %v2530, 7
      %v2532 = vsub.s32 0, %v2531
      %v2533 = vrot.slane %v2272, %v2532
      %v2534 = vlaneseq
      %v2535 = vshrl.u32 %v2534, 7
      %v2536 = vsub.s32 0, %v2535
      %v2537 = vrot.slane %v2274, %v2536
      %v2538 = vlaneseq
      %v2539 = vshrl.u32 %v2538, 7
      %v2540 = vsub.s32 0, %v2539
      %v2541 = vrot.slane %v2282, %v2540
      %v2542 = vlaneseq
      %v2543 = vshrl.u32 %v2542, 7
      %v2544 = vsub.s32 0, %v2543
      %v2545 = vrot.slane %v2290, %v2544
      %v2546 = vlaneseq
      %v2547 = vshrl.u32 %v2546, 7
      %v2548 = vsub.s32 0, %v2547
      %v2549 = vrot.slane %v2289, %v2548
      %v2550 = vlaneseq
      %v2551 = vshrl.u32 %v2550, 7
      %v2552 = vsub.s32 0, %v2551
      %v2553 = vrot.slane %v2291, %v2552
      %v2554 = vlaneseq
      %v2555 = vshrl.u32 %v2554, 7
      %v2556 = vsub.s32 0, %v2555
      %v2557 = vrot.slane %v2299, %v2556
      %v2558 = vlaneseq
      %v2559 = vshrl.u32 %v2558, 7
      %v2560 = vsub.s32 0, %v2559
      %v2561 = vrot.slane %v2307, %v2560
      %v2562 = vlaneseq
      %v2563 = vshrl.u32 %v2562, 7
      %v2564 = vsub.s32 0, %v2563
      %v2565 = vrot.slane %v2306, %v2564
      %v2566 = vlaneseq
      %v2567 = vshrl.u32 %v2566, 7
      %v2568 = vsub.s32 0, %v2567
      %v2569 = vrot.slane %v2308, %v2568
      %v2570 = vlaneseq
      %v2571 = vshrl.u32 %v2570, 7
      %v2572 = vsub.s32 0, %v2571
      %v2573 = vrot.slane %v2316, %v2572
      %v2574 = vlaneseq
      %v2575 = vshrl.u32 %v2574, 7
      %v2576 = vsub.s32 0, %v2575
      %v2577 = vrot.slane %v2324, %v2576
      %v2578 = vlaneseq
      %v2579 = vshrl.u32 %v2578, 7
      %v2580 = vsub.s32 0, %v2579
      %v2581 = vrot.slane %v2323, %v2580
      %v2582 = vlaneseq
      %v2583 = vshrl.u32 %v2582, 7
      %v2584 = vsub.s32 0, %v2583
      %v2585 = vrot.slane %v2325, %v2584
      %v2586 = vlaneseq
      %v2587 = vshrl.u32 %v2586, 7
      %v2588 = vsub.s32 0, %v2587
      %v2589 = vrot.slane %v2333, %v2588
      %v2590 = vlaneseq
      %v2591 = vshrl.u32 %v2590, 7
      %v2592 = vsub.s32 0, %v2591
      %v2593 = vrot.slane %v2341, %v2592
      %v2594 = vlaneseq
      %v2595 = vshrl.u32 %v2594, 7
      %v2596 = vsub.s32 0, %v2595
      %v2597 = vrot.slane %v2340, %v2596
      %v2598 = vlaneseq
      %v2599 = vshrl.u32 %v2598, 7
      %v2600 = vsub.s32 0, %v2599
      %v2601 = vrot.slane %v2342, %v2600
      %v2602 = vlaneseq
      %v2603 = vshrl.u32 %v2602, 7
      %v2604 = vsub.s32 0, %v2603
      %v2605 = vrot.slane %v2350, %v2604
      %v2606 = vlaneseq
      %v2607 = vshrl.u32 %v2606, 7
      %v2608 = vsub.s32 0, %v2607
      %v2609 = vrot.slane %v2358, %v2608
      %v2610 = vlaneseq
      %v2611 = vshrl.u32 %v2610, 7
      %v2612 = vsub.s32 0, %v2611
      %v2613 = vrot.slane %v2357, %v2612
      %v2614 = vlaneseq
      %v2615 = vshrl.u32 %v2614, 7
      %v2616 = vsub.s32 0, %v2615
      %v2617 = vrot.slane %v2359, %v2616
      %v2618 = vlaneseq
      %v2619 = vshrl.u32 %v2618, 7
      %v2620 = vsub.s32 0, %v2619
      %v2621 = vrot.slane %v2367, %v2620
      %v2622 = vlaneseq
      %v2623 = vshrl.u32 %v2622, 7
      %v2624 = vsub.s32 0, %v2623
      %v2625 = vrot.slane %v2375, %v2624
      %v2626 = vlaneseq
      %v2627 = vshrl.u32 %v2626, 7
      %v2628 = vsub.s32 0, %v2627
      %v2629 = vrot.slane %v2374, %v2628
      %v2630 = vlaneseq
      %v2631 = vshrl.u32 %v2630, 7
      %v2632 = vsub.s32 0, %v2631
      %v2633 = vrot.slane %v2376, %v2632
      %v2634 = vlaneseq
      %v2635 = vshrl.u32 %v2634, 7
      %v2636 = vsub.s32 0, %v2635
      %v2637 = vrot.slane %v2384, %v2636
      %v2638 = vlaneseq
      %v2639 = vshrl.u32 %v2638, 7
      %v2640 = vsub.s32 0, %v2639
      %v2641 = vrot.slane %v2392, %v2640
      %v2642 = vlaneseq
      %v2643 = vshrl.u32 %v2642, 7
      %v2644 = vsub.s32 0, %v2643
      %v2645 = vrot.slane %v2391, %v2644
      %v2646 = vlaneseq
      %v2647 = vshrl.u32 %v2646, 7
      %v2648 = vsub.s32 0, %v2647
      %v2649 = vrot.slane %v2393, %v2648
      %vm2650 = vcmask 1041409
      %v2651 = vsel %vm2650, %v2401, %v2397
      %vm2652 = vcmask 1042434
      %v2653 = vsel %vm2652, %v2405, %v2651
      %vm2654 = vcmask 1043459
      %v2655 = vsel %vm2654, %v2409, %v2653
      %vm2656 = vcmask 1044484
      %v2657 = vsel %vm2656, %v2413, %v2655
      %vm2658 = vcmask 1045509
      %v2659 = vsel %vm2658, %v2417, %v2657
      %vm2660 = vcmask 1046534
      %v2661 = vsel %vm2660, %v2421, %v2659
      %vm2662 = vcmask 1047559
      %v2663 = vsel %vm2662, %v2425, %v2661
      %v2664 = vsel %vm2650, %v2433, %v2429
      %v2665 = vsel %vm2652, %v2437, %v2664
      %v2666 = vsel %vm2654, %v2441, %v2665
      %v2667 = vsel %vm2656, %v2445, %v2666
      %v2668 = vsel %vm2658, %v2449, %v2667
      %v2669 = vsel %vm2660, %v2453, %v2668
      %v2670 = vsel %vm2662, %v2457, %v2669
      %v2671 = vsel %vm2650, %v2465, %v2461
      %v2672 = vsel %vm2652, %v2469, %v2671
      %v2673 = vsel %vm2654, %v2473, %v2672
      %v2674 = vsel %vm2656, %v2477, %v2673
      %v2675 = vsel %vm2658, %v2481, %v2674
      %v2676 = vsel %vm2660, %v2485, %v2675
      %v2677 = vsel %vm2662, %v2489, %v2676
      %v2678 = vsel %vm2650, %v2497, %v2493
      %v2679 = vsel %vm2652, %v2501, %v2678
      %v2680 = vsel %vm2654, %v2505, %v2679
      %v2681 = vsel %vm2656, %v2509, %v2680
      %v2682 = vsel %vm2658, %v2513, %v2681
      %v2683 = vsel %vm2660, %v2517, %v2682
      %v2684 = vsel %vm2662, %v2521, %v2683
      %v2685 = vsel %vm2650, %v2529, %v2525
      %v2686 = vsel %vm2652, %v2533, %v2685
      %v2687 = vsel %vm2654, %v2537, %v2686
      %v2688 = vsel %vm2656, %v2541, %v2687
      %v2689 = vsel %vm2658, %v2545, %v2688
      %v2690 = vsel %vm2660, %v2549, %v2689
      %v2691 = vsel %vm2662, %v2553, %v2690
      %v2692 = vsel %vm2650, %v2561, %v2557
      %v2693 = vsel %vm2652, %v2565, %v2692
      %v2694 = vsel %vm2654, %v2569, %v2693
      %v2695 = vsel %vm2656, %v2573, %v2694
      %v2696 = vsel %vm2658, %v2577, %v2695
      %v2697 = vsel %vm2660, %v2581, %v2696
      %v2698 = vsel %vm2662, %v2585, %v2697
      %v2699 = vsel %vm2650, %v2593, %v2589
      %v2700 = vsel %vm2652, %v2597, %v2699
      %v2701 = vsel %vm2654, %v2601, %v2700
      %v2702 = vsel %vm2656, %v2605, %v2701
      %v2703 = vsel %vm2658, %v2609, %v2702
      %v2704 = vsel %vm2660, %v2613, %v2703
      %v2705 = vsel %vm2662, %v2617, %v2704
      %v2706 = vsel %vm2650, %v2625, %v2621
      %v2707 = vsel %vm2652, %v2629, %v2706
      %v2708 = vsel %vm2654, %v2633, %v2707
      %v2709 = vsel %vm2656, %v2637, %v2708
      %v2710 = vsel %vm2658, %v2641, %v2709
      %v2711 = vsel %vm2660, %v2645, %v2710
      %v2712 = vsel %vm2662, %v2649, %v2711
      %v2714 = vrot.slane 0.0, 7
      %v2715 = vrot.slane %v2663, 7
      %v2716 = vrot.slane %v2670, 7
      %v2717 = vrot.slane %v2677, 7
      %v2718 = vrot.slane %v2684, 7
      %v2719 = vrot.slane %v2691, 7
      %v2720 = vrot.slane %v2698, 7
      %v2721 = vrot.slane %v2705, 7
      %v2722 = vrot.slane %v2712, 7
      %vm2732 = vcmask 1040384
      %v2733 = vsel %vm2732, 0.0, %v2714
      %v2734 = vsel %vm2732, 0.0, %v2715
      %v2735 = vsel %vm2732, 0.0, %v2716
      %v2736 = vsel %vm2732, 0.0, %v2717
      %v2737 = vsel %vm2732, 0.0, %v2718
      %v2738 = vsel %vm2732, 0.0, %v2719
      %v2739 = vsel %vm2732, 0.0, %v2720
      %v2740 = vsel %vm2732, 0.0, %v2721
      %v2741 = vsel %vm2732, 0.0, %v2722
      %v2742 = vsel %vm2732, %v2714, 0.0
      %v2743 = vsel %vm2732, %v2715, 0.0
      %v2744 = vsel %vm2732, %v2716, 0.0
      %v2745 = vsel %vm2732, %v2717, 0.0
      %v2746 = vsel %vm2732, %v2718, 0.0
      %v2747 = vsel %vm2732, %v2719, 0.0
      %v2748 = vsel %vm2732, %v2720, 0.0
      %v2749 = vsel %vm2732, %v2721, 0.0
      %v2750 = vsel %vm2732, %v2722, 0.0
      %v2767 = vrot.slane %v2733, 1
      %v2768 = vrot.slane %v2742, 1
      %v2769 = vsel %vm509, %v2767, %v2768
      %v2770 = vrot.slane %v2734, 1
      %v2771 = vrot.slane %v2743, 1
      %v2772 = vsel %vm509, %v2770, %v2771
      %v2773 = vrot.slane %v2735, 1
      %v2774 = vrot.slane %v2744, 1
      %v2775 = vsel %vm509, %v2773, %v2774
      %v2776 = vrot.slane %v2736, 1
      %v2777 = vrot.slane %v2745, 1
      %v2778 = vsel %vm509, %v2776, %v2777
      %v2779 = vrot.slane %v2737, 1
      %v2780 = vrot.slane %v2746, 1
      %v2781 = vsel %vm509, %v2779, %v2780
      %v2782 = vrot.slane %v2738, 1
      %v2783 = vrot.slane %v2747, 1
      %v2784 = vsel %vm509, %v2782, %v2783
      %v2785 = vrot.slane %v2739, 1
      %v2786 = vrot.slane %v2748, 1
      %v2787 = vsel %vm509, %v2785, %v2786
      %v2788 = vrot.slane %v2740, 1
      %v2789 = vrot.slane %v2749, 1
      %v2790 = vsel %vm509, %v2788, %v2789
      %v2791 = vrot.slane %v2733, 2
      %v2792 = vrot.slane %v2742, 2
      %v2793 = vsel %vm590, %v2791, %v2792
      %v2794 = vrot.slane %v2734, 2
      %v2795 = vrot.slane %v2743, 2
      %v2796 = vsel %vm590, %v2794, %v2795
      %v2797 = vrot.slane %v2735, 2
      %v2798 = vrot.slane %v2744, 2
      %v2799 = vsel %vm590, %v2797, %v2798
      %v2800 = vrot.slane %v2736, 2
      %v2801 = vrot.slane %v2745, 2
      %v2802 = vsel %vm590, %v2800, %v2801
      %v2803 = vrot.slane %v2737, 2
      %v2804 = vrot.slane %v2746, 2
      %v2805 = vsel %vm590, %v2803, %v2804
      %v2806 = vrot.slane %v2738, 2
      %v2807 = vrot.slane %v2747, 2
      %v2808 = vsel %vm590, %v2806, %v2807
      %v2809 = vrot.slane %v2739, 2
      %v2810 = vrot.slane %v2748, 2
      %v2811 = vsel %vm590, %v2809, %v2810
      %v2812 = vrot.slane %v2740, 2
      %v2813 = vrot.slane %v2749, 2
      %v2814 = vsel %vm590, %v2812, %v2813
      %v2817 = vrot.slane %v2741, 1
      %v2818 = vrot.slane %v2750, 1
      %v2819 = vsel %vm509, %v2817, %v2818
      %v2820 = vrot.slane %v2741, 2
      %v2821 = vrot.slane %v2750, 2
      %v2822 = vsel %vm590, %v2820, %v2821
      %2823 = vrot.lane.b32.xlu0 %v2769, 8
      %v2824 = vpop.permute.xlu0 %2823
      %2825 = vrot.lane.b32.xlu0 %v2772, 8
      %v2826 = vpop.permute.xlu0 %2825
      %2827 = vrot.lane.b32.xlu0 %v2775, 8
      %v2828 = vpop.permute.xlu0 %2827
      %2829 = vrot.lane.b32.xlu0 %v2778, 8
      %v2830 = vpop.permute.xlu0 %2829
      %2831 = vrot.lane.b32.xlu0 %v2781, 8
      %v2832 = vpop.permute.xlu0 %2831
      %2833 = vrot.lane.b32.xlu0 %v2784, 8
      %v2834 = vpop.permute.xlu0 %2833
      %2835 = vrot.lane.b32.xlu0 %v2787, 8
      %v2836 = vpop.permute.xlu0 %2835
      %2837 = vrot.lane.b32.xlu0 %v2790, 8
      %v2838 = vpop.permute.xlu0 %2837
      %2847 = vrot.lane.b32.xlu0 %v2793, 16
      %v2848 = vpop.permute.xlu0 %2847
      %2849 = vrot.lane.b32.xlu0 %v2796, 16
      %v2850 = vpop.permute.xlu0 %2849
      %2851 = vrot.lane.b32.xlu0 %v2799, 16
      %v2852 = vpop.permute.xlu0 %2851
      %2853 = vrot.lane.b32.xlu0 %v2802, 16
      %v2854 = vpop.permute.xlu0 %2853
      %2855 = vrot.lane.b32.xlu0 %v2805, 16
      %v2856 = vpop.permute.xlu0 %2855
      %2857 = vrot.lane.b32.xlu0 %v2808, 16
      %v2858 = vpop.permute.xlu0 %2857
      %2859 = vrot.lane.b32.xlu0 %v2811, 16
      %v2860 = vpop.permute.xlu0 %2859
      %2861 = vrot.lane.b32.xlu0 %v2814, 16
      %v2862 = vpop.permute.xlu0 %2861
      %2871 = vrot.lane.b32.xlu0 %v2734, 24
      %v2872 = vpop.permute.xlu0 %2871
      %2873 = vrot.lane.b32.xlu0 %v2735, 24
      %v2874 = vpop.permute.xlu0 %2873
      %2875 = vrot.lane.b32.xlu0 %v2736, 24
      %v2876 = vpop.permute.xlu0 %2875
      %2877 = vrot.lane.b32.xlu0 %v2737, 24
      %v2878 = vpop.permute.xlu0 %2877
      %2879 = vrot.lane.b32.xlu0 %v2738, 24
      %v2880 = vpop.permute.xlu0 %2879
      %2881 = vrot.lane.b32.xlu0 %v2739, 24
      %v2882 = vpop.permute.xlu0 %2881
      %2883 = vrot.lane.b32.xlu0 %v2740, 24
      %v2884 = vpop.permute.xlu0 %2883
      %2885 = vrot.lane.b32.xlu0 %v2741, 24
      %v2886 = vpop.permute.xlu0 %2885
      %2895 = vrot.lane.b32.xlu0 %v2772, 32
      %v2896 = vpop.permute.xlu0 %2895
      %2897 = vrot.lane.b32.xlu0 %v2775, 32
      %v2898 = vpop.permute.xlu0 %2897
      %2899 = vrot.lane.b32.xlu0 %v2778, 32
      %v2900 = vpop.permute.xlu0 %2899
      %2901 = vrot.lane.b32.xlu0 %v2781, 32
      %v2902 = vpop.permute.xlu0 %2901
      %2903 = vrot.lane.b32.xlu0 %v2784, 32
      %v2904 = vpop.permute.xlu0 %2903
      %2905 = vrot.lane.b32.xlu0 %v2787, 32
      %v2906 = vpop.permute.xlu0 %2905
      %2907 = vrot.lane.b32.xlu0 %v2790, 32
      %v2908 = vpop.permute.xlu0 %2907
      %2909 = vrot.lane.b32.xlu0 %v2819, 32
      %v2910 = vpop.permute.xlu0 %2909
      %2919 = vrot.lane.b32.xlu0 %v2796, 40
      %v2920 = vpop.permute.xlu0 %2919
      %2921 = vrot.lane.b32.xlu0 %v2799, 40
      %v2922 = vpop.permute.xlu0 %2921
      %2923 = vrot.lane.b32.xlu0 %v2802, 40
      %v2924 = vpop.permute.xlu0 %2923
      %2925 = vrot.lane.b32.xlu0 %v2805, 40
      %v2926 = vpop.permute.xlu0 %2925
      %2927 = vrot.lane.b32.xlu0 %v2808, 40
      %v2928 = vpop.permute.xlu0 %2927
      %2929 = vrot.lane.b32.xlu0 %v2811, 40
      %v2930 = vpop.permute.xlu0 %2929
      %2931 = vrot.lane.b32.xlu0 %v2814, 40
      %v2932 = vpop.permute.xlu0 %2931
      %2933 = vrot.lane.b32.xlu0 %v2822, 40
      %v2934 = vpop.permute.xlu0 %2933
      %2943 = vrot.lane.b32.xlu0 %v2735, 48
      %v2944 = vpop.permute.xlu0 %2943
      %2945 = vrot.lane.b32.xlu0 %v2736, 48
      %v2946 = vpop.permute.xlu0 %2945
      %2947 = vrot.lane.b32.xlu0 %v2737, 48
      %v2948 = vpop.permute.xlu0 %2947
      %2949 = vrot.lane.b32.xlu0 %v2738, 48
      %v2950 = vpop.permute.xlu0 %2949
      %2951 = vrot.lane.b32.xlu0 %v2739, 48
      %v2952 = vpop.permute.xlu0 %2951
      %2953 = vrot.lane.b32.xlu0 %v2740, 48
      %v2954 = vpop.permute.xlu0 %2953
      %2955 = vrot.lane.b32.xlu0 %v2741, 48
      %v2956 = vpop.permute.xlu0 %2955
      %2957 = vrot.lane.b32.xlu0 %v2733, 48
      %v2958 = vpop.permute.xlu0 %2957
      %2967 = vrot.lane.b32.xlu0 %v2775, 56
      %v2968 = vpop.permute.xlu0 %2967
      %2969 = vrot.lane.b32.xlu0 %v2778, 56
      %v2970 = vpop.permute.xlu0 %2969
      %2971 = vrot.lane.b32.xlu0 %v2781, 56
      %v2972 = vpop.permute.xlu0 %2971
      %2973 = vrot.lane.b32.xlu0 %v2784, 56
      %v2974 = vpop.permute.xlu0 %2973
      %2975 = vrot.lane.b32.xlu0 %v2787, 56
      %v2976 = vpop.permute.xlu0 %2975
      %2977 = vrot.lane.b32.xlu0 %v2790, 56
      %v2978 = vpop.permute.xlu0 %2977
      %2979 = vrot.lane.b32.xlu0 %v2819, 56
      %v2980 = vpop.permute.xlu0 %2979
      %2981 = vrot.lane.b32.xlu0 %v2769, 56
      %v2982 = vpop.permute.xlu0 %2981
      %2991 = vrot.lane.b32.xlu0 %v2799, 64
      %v2992 = vpop.permute.xlu0 %2991
      %2993 = vrot.lane.b32.xlu0 %v2802, 64
      %v2994 = vpop.permute.xlu0 %2993
      %2995 = vrot.lane.b32.xlu0 %v2805, 64
      %v2996 = vpop.permute.xlu0 %2995
      %2997 = vrot.lane.b32.xlu0 %v2808, 64
      %v2998 = vpop.permute.xlu0 %2997
      %2999 = vrot.lane.b32.xlu0 %v2811, 64
      %v3000 = vpop.permute.xlu0 %2999
      %3001 = vrot.lane.b32.xlu0 %v2814, 64
      %v3002 = vpop.permute.xlu0 %3001
      %3003 = vrot.lane.b32.xlu0 %v2822, 64
      %v3004 = vpop.permute.xlu0 %3003
      %3005 = vrot.lane.b32.xlu0 %v2793, 64
      %v3006 = vpop.permute.xlu0 %3005
      %v3015 = vsel %vm1498, %v2733, %v2824
      %v3016 = vsel %vm1498, %v2734, %v2826
      %v3017 = vsel %vm1498, %v2735, %v2828
      %v3018 = vsel %vm1498, %v2736, %v2830
      %v3019 = vsel %vm1498, %v2737, %v2832
      %v3020 = vsel %vm1498, %v2738, %v2834
      %v3021 = vsel %vm1498, %v2739, %v2836
      %v3022 = vsel %vm1498, %v2740, %v2838
      %v3023 = vsel %vm1564, %v3015, %v2848
      %v3024 = vsel %vm1564, %v3016, %v2850
      %v3025 = vsel %vm1564, %v3017, %v2852
      %v3026 = vsel %vm1564, %v3018, %v2854
      %v3027 = vsel %vm1564, %v3019, %v2856
      %v3028 = vsel %vm1564, %v3020, %v2858
      %v3029 = vsel %vm1564, %v3021, %v2860
      %v3030 = vsel %vm1564, %v3022, %v2862
      %v3031 = vsel %vm1630, %v3023, %v2872
      %v3032 = vsel %vm1630, %v3024, %v2874
      %v3033 = vsel %vm1630, %v3025, %v2876
      %v3034 = vsel %vm1630, %v3026, %v2878
      %v3035 = vsel %vm1630, %v3027, %v2880
      %v3036 = vsel %vm1630, %v3028, %v2882
      %v3037 = vsel %vm1630, %v3029, %v2884
      %v3038 = vsel %vm1630, %v3030, %v2886
      %v3039 = vsel %vm1696, %v3031, %v2896
      %v3040 = vsel %vm1696, %v3032, %v2898
      %v3041 = vsel %vm1696, %v3033, %v2900
      %v3042 = vsel %vm1696, %v3034, %v2902
      %v3043 = vsel %vm1696, %v3035, %v2904
      %v3044 = vsel %vm1696, %v3036, %v2906
      %v3045 = vsel %vm1696, %v3037, %v2908
      %v3046 = vsel %vm1696, %v3038, %v2910
      %vm3047 = vcmask 326656
      %v3048 = vsel %vm3047, %v3039, %v2920
      %v3049 = vsel %vm3047, %v3040, %v2922
      %v3050 = vsel %vm3047, %v3041, %v2924
      %v3051 = vsel %vm3047, %v3042, %v2926
      %v3052 = vsel %vm3047, %v3043, %v2928
      %v3053 = vsel %vm3047, %v3044, %v2930
      %v3054 = vsel %vm3047, %v3045, %v2932
      %v3055 = vsel %vm3047, %v3046, %v2934
      %vm3056 = vcmask 392192
      %v3057 = vsel %vm3056, %v3048, %v2944
      %v3058 = vsel %vm3056, %v3049, %v2946
      %v3059 = vsel %vm3056, %v3050, %v2948
      %v3060 = vsel %vm3056, %v3051, %v2950
      %v3061 = vsel %vm3056, %v3052, %v2952
      %v3062 = vsel %vm3056, %v3053, %v2954
      %v3063 = vsel %vm3056, %v3054, %v2956
      %v3064 = vsel %vm3056, %v3055, %v2958
      %vm3065 = vcmask 457728
      %v3066 = vsel %vm3065, %v3057, %v2968
      %v3067 = vsel %vm3065, %v3058, %v2970
      %v3068 = vsel %vm3065, %v3059, %v2972
      %v3069 = vsel %vm3065, %v3060, %v2974
      %v3070 = vsel %vm3065, %v3061, %v2976
      %v3071 = vsel %vm3065, %v3062, %v2978
      %v3072 = vsel %vm3065, %v3063, %v2980
      %v3073 = vsel %vm3065, %v3064, %v2982
      %vm3074 = vcmask 523264
      %v3075 = vsel %vm3074, %v3066, %v2992
      %v3076 = vsel %vm3074, %v3067, %v2994
      %v3077 = vsel %vm3074, %v3068, %v2996
      %v3078 = vsel %vm3074, %v3069, %v2998
      %v3079 = vsel %vm3074, %v3070, %v3000
      %v3080 = vsel %vm3074, %v3071, %v3002
      %v3081 = vsel %vm3074, %v3072, %v3004
      %v3082 = vsel %vm3074, %v3073, %v3006
      %v3083 = vld [vmem:[%s4] sm:$0xff]
      %v3084 = vld [vmem:[%s4 + $0x8] sm:$0xff]
      %v3085 = vld [vmem:[%s4 + $0x10] sm:$0xff]
      %v3086 = vld [vmem:[%s4 + $0x18] sm:$0xff]
      %v3087 = vld [vmem:[%s4 + $0x20] sm:$0xff]
      %v3088 = vld [vmem:[%s4 + $0x28] sm:$0xff]
      %v3089 = vld [vmem:[%s4 + $0x30] sm:$0xff]
      %v3090 = vld [vmem:[%s4 + $0x38] sm:$0xff]
      %v3091 = vld [vmem:[%s4 + $0x40] sm:$0xff]
      %vm3092 = vcmask 588800
      %v3094 = vsel %vm3092, %v3075, 0
      %v3097 = vsel %vm3092, %v3076, 0
      %v3100 = vsel %vm3092, %v3077, 0
      %v3103 = vsel %vm3092, %v3078, 0
      %v3106 = vsel %vm3092, %v3079, 0
      %v3109 = vsel %vm3092, %v3080, 0
      %v3112 = vsel %vm3092, %v3081, 0
      %v3115 = vsel %vm3092, %v3082, 0
      %3117 = vmatprep.subr.mxu0 0.0
      %3118 = vmatpush1.msra.mxu0 %v3083
      %3119 = vmatprep.subr.mxu0 0.0
      %3120 = vmatpush1.msra.mxu0 %v3084
      %3121 = vmatprep.subr.mxu0 0.0
      %3122 = vmatpush1.msra.mxu0 %v3085
      %3123 = vmatprep.subr.mxu0 0.0
      %3124 = vmatpush1.msra.mxu0 %v3086
      %3125 = vmatprep.subr.mxu0 0.0
      %3126 = vmatpush1.msra.mxu0 %v3087
      %3127 = vmatprep.subr.mxu0 0.0
      %3128 = vmatpush1.msra.mxu0 %v3088
      %3129 = vmatprep.subr.mxu0 0.0
      %3130 = vmatpush1.msra.mxu0 %v3089
      %3131 = vmatprep.subr.mxu0 0.0
      %3132 = vmatpush1.msra.mxu0 %v3090
      %3133 = vmatprep.subr.mxu0 0.0
      %3134 = vmatpush1.msra.mxu0 %v3091
      %3135 = vmatprep.subr.mxu0 0.0
      %3136 = vmatpush1.msra.mxu0 0.0
      %3137 = vmatprep.subr.mxu0 0.0
      %3138 = vmatpush1.msra.mxu0 0.0
      %3139 = vmatprep.subr.mxu0 0.0
      %3140 = vmatpush1.msra.mxu0 0.0
      %3141 = vmatprep.subr.mxu0 0.0
      %3142 = vmatpush1.msra.mxu0 0.0
      %3143 = vmatprep.subr.mxu0 0.0
      %3144 = vmatpush1.msra.mxu0 0.0
      %3145 = vmatprep.subr.mxu0 0.0
      %3146 = vmatpush1.msra.mxu0 0.0
      %3147 = vmatprep.subr.mxu0 0.0
      %3148 = vmatpush1.msra.mxu0 0.0
      %3149 = vmatprep.subr.mxu0 0.0
      %3150 = vmatpush1.msra.mxu0 0.0
      %3151 = vmatprep.subr.mxu0 0.0
      %3152 = vmatpush1.msra.mxu0 0.0
      %3153 = vmatprep.subr.mxu0 0.0
      %3154 = vmatpush1.msra.mxu0 0.0
      %3155 = vmatprep.subr.mxu0 0.0
      %3156 = vmatpush1.msra.mxu0 0.0
      %3157 = vmatprep.subr.mxu0 0.0
      %3158 = vmatpush1.msra.mxu0 0.0
      %3159 = vmatprep.subr.mxu0 0.0
      %3160 = vmatpush1.msra.mxu0 0.0
      %3161 = vmatprep.subr.mxu0 0.0
      %3162 = vmatpush1.msra.mxu0 0.0
      %3163 = vmatprep.subr.mxu0 0.0
      %3164 = vmatpush1.msra.mxu0 0.0
      %3165 = vmatprep.subr.mxu0 0.0
      %3166 = vmatpush1.msra.mxu0 0.0
      %3167 = vmatprep.subr.mxu0 0.0
      %3168 = vmatpush1.msra.mxu0 0.0
      %3169 = vmatprep.subr.mxu0 0.0
      %3170 = vmatpush1.msra.mxu0 0.0
      %3171 = vmatprep.subr.mxu0 0.0
      %3172 = vmatpush1.msra.mxu0 0.0
      %3173 = vmatprep.subr.mxu0 0.0
      %3174 = vmatpush1.msra.mxu0 0.0
      %3175 = vmatprep.subr.mxu0 0.0
      %3176 = vmatpush1.msra.mxu0 0.0
      %3177 = vmatprep.subr.mxu0 0.0
      %3178 = vmatpush1.msra.mxu0 0.0
      %3179 = vmatprep.subr.mxu0 0.0
      %3180 = vmatpush1.msra.mxu0 0.0
      %3181 = vmatprep.mubr.f32.mxu0 0.0
      %3182 = vmatmul.mubr.f32.gmra.mrb[0].mxu0 %v3094
      %v3183 = vpop.f32.mrb[0].mxu0
      %v3184 = vadd.f32 0.0, %v3183
      %v3185 = vpop.f32.mrb[0].mxu0
      %3186 = vmatprep.mubr.f32.mxu0 0.0
      %3187 = vmatmul.mubr.f32.gmra.mrb[0].mxu0 %v3097
      %v3188 = vpop.f32.mrb[0].mxu0
      %v3189 = vadd.f32 0.0, %v3188
      %v3190 = vpop.f32.mrb[0].mxu0
      %3191 = vmatprep.mubr.f32.mxu0 0.0
      %3192 = vmatmul.mubr.f32.gmra.mrb[0].mxu0 %v3100
      %v3193 = vpop.f32.mrb[0].mxu0
      %v3194 = vadd.f32 0.0, %v3193
      %v3195 = vpop.f32.mrb[0].mxu0
      %3196 = vmatprep.mubr.f32.mxu0 0.0
      %3197 = vmatmul.mubr.f32.gmra.mrb[0].mxu0 %v3103
      %v3198 = vpop.f32.mrb[0].mxu0
      %v3199 = vadd.f32 0.0, %v3198
      %v3200 = vpop.f32.mrb[0].mxu0
      %3201 = vmatprep.mubr.f32.mxu0 0.0
      %3202 = vmatmul.mubr.f32.gmra.mrb[0].mxu0 %v3106
      %v3203 = vpop.f32.mrb[0].mxu0
      %v3204 = vadd.f32 0.0, %v3203
      %v3205 = vpop.f32.mrb[0].mxu0
      %3206 = vmatprep.mubr.f32.mxu0 0.0
      %3207 = vmatmul.mubr.f32.gmra.mrb[0].mxu0 %v3109
      %v3208 = vpop.f32.mrb[0].mxu0
      %v3209 = vadd.f32 0.0, %v3208
      %v3210 = vpop.f32.mrb[0].mxu0
      %3211 = vmatprep.mubr.f32.mxu0 0.0
      %3212 = vmatmul.mubr.f32.gmra.mrb[0].mxu0 %v3112
      %v3213 = vpop.f32.mrb[0].mxu0
      %v3214 = vadd.f32 0.0, %v3213
      %v3215 = vpop.f32.mrb[0].mxu0
      %3216 = vmatprep.mubr.f32.mxu0 0.0
      %3217 = vmatmul.mubr.f32.gmra.mrb[0].mxu0 %v3115
      %v3218 = vpop.f32.mrb[0].mxu0
      %v3219 = vadd.f32 0.0, %v3218
      %v3220 = vpop.f32.mrb[0].mxu0
      %3221 = vdwg.mxu0
      %v3222 = vld [vmem:[%s5] sm:$0x1]
      %v3224 = vlaneseq
      %v3225 = vshrl.u32 %v3224, 7
      %v3226 = vsub.s32 0, %v3225
      %v3227 = vrot.slane %v3222, %v3226
      %v3229 = vmul.f32 %v3184, %v3227
      %v3230 = vmul.f32 %v3189, %v3227
      %v3231 = vmul.f32 %v3194, %v3227
      %v3232 = vmul.f32 %v3199, %v3227
      %v3233 = vmul.f32 %v3204, %v3227
      %v3234 = vmul.f32 %v3209, %v3227
      %v3235 = vmul.f32 %v3214, %v3227
      %v3236 = vmul.f32 %v3219, %v3227
      %v3237 = vld [vmem:[%s6] sm:$0x1]
      %v3239 = vlaneseq
      %v3240 = vshrl.u32 %v3239, 7
      %v3241 = vsub.s32 0, %v3240
      %v3242 = vrot.slane %v3237, %v3241
      %v3244 = vadd.f32 %v3229, %v3242
      %v3245 = vadd.f32 %v3230, %v3242
      %v3246 = vadd.f32 %v3231, %v3242
      %v3247 = vadd.f32 %v3232, %v3242
      %v3248 = vadd.f32 %v3233, %v3242
      %v3249 = vadd.f32 %v3234, %v3242
      %v3250 = vadd.f32 %v3235, %v3242
      %v3251 = vadd.f32 %v3236, %v3242
      %v3252 = vld [vmem:[%s401] sm:$0xff]
      %v3253 = vld [vmem:[%s401 + $0x8] sm:$0xff]
      %v3254 = vld [vmem:[%s401 + $0x10] sm:$0xff]
      %v3255 = vld [vmem:[%s401 + $0x18] sm:$0xff]
      %v3256 = vld [vmem:[%s401 + $0x20] sm:$0xff]
      %v3257 = vld [vmem:[%s401 + $0x28] sm:$0xff]
      %v3258 = vld [vmem:[%s401 + $0x30] sm:$0xff]
      %v3259 = vld [vmem:[%s401 + $0x38] sm:$0xff]
      %v3260 = vld [vmem:[%s8] sm:$0xf]
      %v3262 = vsel %vm1465, %v3252, 0
      %v3265 = vsel %vm1465, %v3253, 0
      %v3268 = vsel %vm1465, %v3254, 0
      %v3271 = vsel %vm1465, %v3255, 0
      %v3274 = vsel %vm1465, %v3256, 0
      %v3277 = vsel %vm1465, %v3257, 0
      %v3280 = vsel %vm1465, %v3258, 0
      %v3283 = vsel %vm1465, %v3259, 0
      %v3286 = vsel %vm1831, %v3260, 0
      %3288 = vmatprep.subr.mxu0 0.0
      %3289 = vmatpush1.msra.mxu0 %v3286
      %3290 = vmatprep.subr.mxu0 0.0
      %3291 = vmatpush1.msra.mxu0 0.0
      %3292 = vmatprep.subr.mxu0 0.0
      %3293 = vmatpush1.msra.mxu0 0.0
      %3294 = vmatprep.subr.mxu0 0.0
      %3295 = vmatpush1.msra.mxu0 0.0
      %3296 = vmatprep.subr.mxu0 0.0
      %3297 = vmatpush1.msra.mxu0 0.0
      %3298 = vmatprep.subr.mxu0 0.0
      %3299 = vmatpush1.msra.mxu0 0.0
      %3300 = vmatprep.subr.mxu0 0.0
      %3301 = vmatpush1.msra.mxu0 0.0
      %3302 = vmatprep.subr.mxu0 0.0
      %3303 = vmatpush1.msra.mxu0 0.0
      %3304 = vmatprep.subr.mxu0 0.0
      %3305 = vmatpush1.msra.mxu0 0.0
      %3306 = vmatprep.subr.mxu0 0.0
      %3307 = vmatpush1.msra.mxu0 0.0
      %3308 = vmatprep.subr.mxu0 0.0
      %3309 = vmatpush1.msra.mxu0 0.0
      %3310 = vmatprep.subr.mxu0 0.0
      %3311 = vmatpush1.msra.mxu0 0.0
      %3312 = vmatprep.subr.mxu0 0.0
      %3313 = vmatpush1.msra.mxu0 0.0
      %3314 = vmatprep.subr.mxu0 0.0
      %3315 = vmatpush1.msra.mxu0 0.0
      %3316 = vmatprep.subr.mxu0 0.0
      %3317 = vmatpush1.msra.mxu0 0.0
      %3318 = vmatprep.subr.mxu0 0.0
      %3319 = vmatpush1.msra.mxu0 0.0
      %3320 = vmatprep.subr.mxu0 0.0
      %3321 = vmatpush1.msra.mxu0 0.0
      %3322 = vmatprep.subr.mxu0 0.0
      %3323 = vmatpush1.msra.mxu0 0.0
      %3324 = vmatprep.subr.mxu0 0.0
      %3325 = vmatpush1.msra.mxu0 0.0
      %3326 = vmatprep.subr.mxu0 0.0
      %3327 = vmatpush1.msra.mxu0 0.0
      %3328 = vmatprep.subr.mxu0 0.0
      %3329 = vmatpush1.msra.mxu0 0.0
      %3330 = vmatprep.subr.mxu0 0.0
      %3331 = vmatpush1.msra.mxu0 0.0
      %3332 = vmatprep.subr.mxu0 0.0
      %3333 = vmatpush1.msra.mxu0 0.0
      %3334 = vmatprep.subr.mxu0 0.0
      %3335 = vmatpush1.msra.mxu0 0.0
      %3336 = vmatprep.subr.mxu0 0.0
      %3337 = vmatpush1.msra.mxu0 0.0
      %3338 = vmatprep.subr.mxu0 0.0
      %3339 = vmatpush1.msra.mxu0 0.0
      %3340 = vmatprep.subr.mxu0 0.0
      %3341 = vmatpush1.msra.mxu0 0.0
      %3342 = vmatprep.subr.mxu0 0.0
      %3343 = vmatpush1.msra.mxu0 0.0
      %3344 = vmatprep.subr.mxu0 0.0
      %3345 = vmatpush1.msra.mxu0 0.0
      %3346 = vmatprep.subr.mxu0 0.0
      %3347 = vmatpush1.msra.mxu0 0.0
      %3348 = vmatprep.subr.mxu0 0.0
      %3349 = vmatpush1.msra.mxu0 0.0
      %3350 = vmatprep.subr.mxu0 0.0
      %3351 = vmatpush1.msra.mxu0 0.0
      %3352 = vmatprep.mubr.f32.mxu0 0.0
      %3353 = vmatmul.mubr.f32.gmra.mrb[0].mxu0 %v3262
      %v3354 = vpop.f32.mrb[0].mxu0
      %v3355 = vadd.f32 0.0, %v3354
      %v3356 = vpop.f32.mrb[0].mxu0
      %3357 = vmatprep.mubr.f32.mxu0 0.0
      %3358 = vmatmul.mubr.f32.gmra.mrb[0].mxu0 %v3265
      %v3359 = vpop.f32.mrb[0].mxu0
      %v3360 = vadd.f32 0.0, %v3359
      %v3361 = vpop.f32.mrb[0].mxu0
      %3362 = vmatprep.mubr.f32.mxu0 0.0
      %3363 = vmatmul.mubr.f32.gmra.mrb[0].mxu0 %v3268
      %v3364 = vpop.f32.mrb[0].mxu0
      %v3365 = vadd.f32 0.0, %v3364
      %v3366 = vpop.f32.mrb[0].mxu0
      %3367 = vmatprep.mubr.f32.mxu0 0.0
      %3368 = vmatmul.mubr.f32.gmra.mrb[0].mxu0 %v3271
      %v3369 = vpop.f32.mrb[0].mxu0
      %v3370 = vadd.f32 0.0, %v3369
      %v3371 = vpop.f32.mrb[0].mxu0
      %3372 = vmatprep.mubr.f32.mxu0 0.0
      %3373 = vmatmul.mubr.f32.gmra.mrb[0].mxu0 %v3274
      %v3374 = vpop.f32.mrb[0].mxu0
      %v3375 = vadd.f32 0.0, %v3374
      %v3376 = vpop.f32.mrb[0].mxu0
      %3377 = vmatprep.mubr.f32.mxu0 0.0
      %3378 = vmatmul.mubr.f32.gmra.mrb[0].mxu0 %v3277
      %v3379 = vpop.f32.mrb[0].mxu0
      %v3380 = vadd.f32 0.0, %v3379
      %v3381 = vpop.f32.mrb[0].mxu0
      %3382 = vmatprep.mubr.f32.mxu0 0.0
      %3383 = vmatmul.mubr.f32.gmra.mrb[0].mxu0 %v3280
      %v3384 = vpop.f32.mrb[0].mxu0
      %v3385 = vadd.f32 0.0, %v3384
      %v3386 = vpop.f32.mrb[0].mxu0
      %3387 = vmatprep.mubr.f32.mxu0 0.0
      %3388 = vmatmul.mubr.f32.gmra.mrb[0].mxu0 %v3283
      %v3389 = vpop.f32.mrb[0].mxu0
      %v3390 = vadd.f32 0.0, %v3389
      %v3391 = vpop.f32.mrb[0].mxu0
      %3392 = vdwg.mxu0
      %v3393 = vld [vmem:[%s9] sm:$0x1]
      %v3395 = vlaneseq
      %v3396 = vshrl.u32 %v3395, 7
      %v3397 = vsub.s32 0, %v3396
      %v3398 = vrot.slane %v3393, %v3397
      %v3400 = vmul.f32 %v3355, %v3398
      %v3401 = vmul.f32 %v3360, %v3398
      %v3402 = vmul.f32 %v3365, %v3398
      %v3403 = vmul.f32 %v3370, %v3398
      %v3404 = vmul.f32 %v3375, %v3398
      %v3405 = vmul.f32 %v3380, %v3398
      %v3406 = vmul.f32 %v3385, %v3398
      %v3407 = vmul.f32 %v3390, %v3398
      %v3408 = vld [vmem:[%s10] sm:$0x1]
      %v3410 = vlaneseq
      %v3411 = vshrl.u32 %v3410, 7
      %v3412 = vsub.s32 0, %v3411
      %v3413 = vrot.slane %v3408, %v3412
      %v3415 = vadd.f32 %v3400, %v3413
      %v3416 = vadd.f32 %v3401, %v3413
      %v3417 = vadd.f32 %v3402, %v3413
      %v3418 = vadd.f32 %v3403, %v3413
      %v3419 = vadd.f32 %v3404, %v3413
      %v3420 = vadd.f32 %v3405, %v3413
      %v3421 = vadd.f32 %v3406, %v3413
      %v3422 = vadd.f32 %v3407, %v3413
      %v3423 = vadd.f32 %v3244, %v3415
      %v3424 = vadd.f32 %v3245, %v3416
      %v3425 = vadd.f32 %v3246, %v3417
      %v3426 = vadd.f32 %v3247, %v3418
      %v3427 = vadd.f32 %v3248, %v3419
      %v3428 = vadd.f32 %v3249, %v3420
      %v3429 = vadd.f32 %v3250, %v3421
      %v3430 = vadd.f32 %v3251, %v3422
      %v3431 = vmax.f32 %v3423, 0.0
      %v3432 = vmax.f32 %v3424, 0.0
      %v3433 = vmax.f32 %v3425, 0.0
      %v3434 = vmax.f32 %v3426, 0.0
      %v3435 = vmax.f32 %v3427, 0.0
      %v3436 = vmax.f32 %v3428, 0.0
      %v3437 = vmax.f32 %v3429, 0.0
      %v3438 = vmax.f32 %v3430, 0.0
      %3439 = vst.msk [vmem:[%s406] sm:$0xff] %vm1498, %v3431
      %3440 = vst.msk [vmem:[%s406 + $0x8] sm:$0xff] %vm1498, %v3432
      %3441 = vst.msk [vmem:[%s406 + $0x10] sm:$0xff] %vm1498, %v3433
      %3442 = vst.msk [vmem:[%s406 + $0x18] sm:$0xff] %vm1498, %v3434
      %3443 = vst.msk [vmem:[%s406 + $0x20] sm:$0xff] %vm1498, %v3435
      %3444 = vst.msk [vmem:[%s406 + $0x28] sm:$0xff] %vm1498, %v3436
      %3445 = vst.msk [vmem:[%s406 + $0x30] sm:$0xff] %vm1498, %v3437
      %3446 = vst.msk [vmem:[%s406 + $0x38] sm:$0xff] %vm1498, %v3438
      %p3447 = scmp.lt.s32.totalorder %s22, 1
      %s3448 = scalar_select %p3447, %s22, 1
      %s3449 = smul.addr %s3448, 8
      %s3450 = smul.addr %s3449, 8
      %s3451 = scalar_lea.vmem %s11, %s3450
      // Predicated region
      $region65: #{tpu_custom_call.1} parent=63 // pred_check
        %p3452 = pneg %p281
      $region66: #{tpu_custom_call.1} parent=63 // pred_check_branch
        %3454 = sbr.rel (%p3452) target = $region68
      $region67: #{tpu_custom_call.1} parent=63 // pred_region
        _
      $region68: #{tpu_custom_call.1} parent=63 // pred_fallthru
        _
    $region64: #{tpu_custom_call.1} parent=5 // pred_fallthru
      _
    %p3455 = scmp.le.s32.totalorder 2, %s17
    // Predicated region
    $region69: #{tpu_custom_call.1} parent=5 // pred_check
      %p3456 = pneg %p3455
    $region70: #{tpu_custom_call.1} parent=5 // pred_check_branch
      %3458 = sbr.rel (%p3456) target = $region72
    $region71: #{tpu_custom_call.1} parent=5 // pred_region
      %s3459 = ssub.s32 %s17, 2
      // Predicated region
      $region73: #{tpu_custom_call.1} parent=71 // pred_check
        %p3460 = pneg %p287
      $region74: #{tpu_custom_call.1} parent=71 // pred_check_branch
        %3462 = sbr.rel (%p3460) target = $region76
      $region75: #{tpu_custom_call.1} parent=71 // pred_region
        %p3463 = scmp.lt.s32.totalorder %s23, 1
        %s3464 = scalar_select %p3463, %s23, 1
        %s3465 = smul.addr %s3464, 8
        %s3466 = smul.addr %s3465, 8
        %s3467 = scalar_lea.vmem %s11, %s3466
      $region76: #{tpu_custom_call.1} parent=71 // pred_fallthru
        _
    $region72: #{tpu_custom_call.1} parent=5 // pred_fallthru
      _
  $region6: #{tpu_custom_call.1} parent=0 // loop_footer
    %s21 = sadd.s32 1, %s17
  $region7: #{tpu_custom_call.1} parent=0 // loop_footer_branch
    %16 = sbr.rel target = $region3
  $region8: #{tpu_custom_call.1} parent=0 // loop_exit
    _

</llo_original>
